<compile_context>
chip_gen: v7x
topology: tpu7x:2x2x1
jax: 0.10.0
libtpu: 0.0.40
codegen_flags: <defaults>
</compile_context>

<pallas_src>
import jax
import jax.numpy as jnp
from jax.experimental import pallas as pl
from jax.experimental.pallas import tpu as pltpu


# ----------------------------------------------------------------------------
# Fused Pallas kernel (all layers + both directions + linear + softmax)
# ----------------------------------------------------------------------------

def _make_fused_kernel(num_layers, bidirectional, B, T, H):
    D = 2 if bidirectional else 1
    DH = D * H

    def kernel(*refs):
        it = iter(refs)
        x_ref = next(it)                                      # (B*T, E)
        layer_refs = [(next(it), next(it), next(it)) for _ in range(num_layers)]
        wlin_ref = next(it)                                   # (DH, OPAD)
        blin_ref = next(it)                                   # (1, OPAD); pad lanes = -1e30
        out_ref = next(it)                                    # (B, OPAD)
        act_f_ref = next(it)                                  # VMEM (B, T, H)
        act_b_ref = next(it) if bidirectional else None       # VMEM (B, T, H)

        layer_in = x_ref[...]                                 # (B*T, in_features)
        for wih_ref, whh_ref, b_ref in layer_refs:
            # Hoisted input projection for all timesteps: one MXU pass / layer.
            proj = (jnp.dot(layer_in, wih_ref[...],
                            preferred_element_type=jnp.float32)
                    + b_ref[...]).reshape(B, T, DH)
            whh = whh_ref[...]                                # block-diagonal if bidir
            h = jnp.zeros((B, DH), jnp.float32)               # [h_fwd | h_bwd]
            for t in range(T):                                # T is small & static
                if bidirectional:
                    # forward half reads time t, backward half reads time T-1-t
                    p_t = jnp.concatenate(
                        [proj[:, t, :H], proj[:, T - 1 - t, H:]], axis=-1)
                else:
                    p_t = proj[:, t, :]
                h = jnp.tanh(p_t + jnp.dot(h, whh,
                                           preferred_element_type=jnp.float32))
                act_f_ref[:, t, :] = h[:, :H]
                if bidirectional:
                    act_b_ref[:, T - 1 - t, :] = h[:, H:]
            if bidirectional:
                layer_out = jnp.concatenate(
                    [act_f_ref[...], act_b_ref[...]], axis=-1)     # (B, T, 2H)
            else:
                layer_out = act_f_ref[...]
            layer_in = layer_out.reshape(B * T, DH)

        # Final Linear + softmax on the last timestep of the last layer.
        if bidirectional:
            last = jnp.concatenate(
                [act_f_ref[:, T - 1, :], act_b_ref[:, T - 1, :]], axis=-1)
        else:
            last = act_f_ref[:, T - 1, :]
        logits = (jnp.dot(last, wlin_ref[...],
                          preferred_element_type=jnp.float32) + blin_ref[...])
        m = jnp.max(logits, axis=-1, keepdims=True)
        e = jnp.exp(logits - m)                               # padded lanes -> exp(-1e30) == 0
        out_ref[...] = e / jnp.sum(e, axis=-1, keepdims=True)

    return kernel


def _full_block_spec(arr):
    ndim = arr.ndim

    def imap(i):
        return (0,) * ndim

    return pl.BlockSpec(arr.shape, imap)


# ----------------------------------------------------------------------------
# Parameter fusion + model forward
# ----------------------------------------------------------------------------

def _fuse_params(params, opad):
    """Fuse per-direction RNN weights and pad the classifier to lane width.

    All matrices are in (in_features, out_features) layout for `x @ W`."""
    fused_layers = []
    for dirs in params["rnn"]:
        if len(dirs) == 2:
            (wf, whf, bf), (wb, whb, bb) = dirs
            H = whf.shape[0]
            wih = jnp.concatenate([wf, wb], axis=1)                 # (in, 2H)
            whh = jnp.zeros((2 * H, 2 * H), jnp.float32)
            whh = whh.at[:H, :H].set(whf).at[H:, H:].set(whb)       # block-diagonal
            b = jnp.concatenate([bf, bb], axis=1)                   # (1, 2H)
            fused_layers.append((wih, whh, b))
        else:
            fused_layers.append(dirs[0])
    w_lin = params["linear_w"]
    b_lin = params["linear_b"]
    dh, out_dim = w_lin.shape
    w_pad = jnp.zeros((dh, opad), jnp.float32).at[:, :out_dim].set(w_lin)
    b_pad = jnp.full((1, opad), -1e30, jnp.float32).at[:, :out_dim].set(b_lin)
    return fused_layers, w_pad, b_pad


def forward(params, X_batch):
    # Embedding lookup (glue: gather stays in plain JAX/XLA).
    emb = params["embedding"][X_batch].astype(jnp.float32)          # (B, T, E)
    B, T, E = emb.shape
    num_layers = len(params["rnn"])
    bidirectional = len(params["rnn"][0]) == 2
    D = 2 if bidirectional else 1
    H = params["rnn"][0][0][1].shape[0]
    out_dim = params["linear_w"].shape[1]
    opad = max(128, ((out_dim + 127) // 128) * 128)                 # lane-dense output

    fused_layers, w_pad, b_pad = _fuse_params(params, opad)

    inputs = [emb.reshape(B * T, E)]
    for layer in fused_layers:
        inputs.extend(layer)
    inputs.extend([w_pad, b_pad])

    kernel = _make_fused_kernel(num_layers, bidirectional, B, T, H)
    out = pl.pallas_call(
        kernel,
        out_shape=jax.ShapeDtypeStruct((B, opad), jnp.float32),
        grid=(1,),
        in_specs=[_full_block_spec(a) for a in inputs],
        out_specs=pl.BlockSpec((B, opad), lambda i: (0, 0)),
        scratch_shapes=[pltpu.VMEM((B, T, H), jnp.float32)] * D,
        compiler_params=pltpu.CompilerParams(
            dimension_semantics=("arbitrary",)),
    )(*inputs)
    return out[:, :out_dim]


# ----------------------------------------------------------------------------
# Parameter init (synthetic, deterministic) and pure-JAX reference
# ----------------------------------------------------------------------------

def init_params(key, vocab_size, embedding_dim, hidden_dim, num_layers,
                bidirectional, output_dim):
    D = 2 if bidirectional else 1
    params = {}

    key, k = jax.random.split(key)
    # Stand-in for pretrained GloVe embeddings (synthetic, deterministic).
    params["embedding"] = jax.random.normal(k, (vocab_size, embedding_dim), jnp.float32)

    k_rnn = 1.0 / float(jnp.sqrt(hidden_dim))
    layers = []
    in_size = embedding_dim
    for _ in range(num_layers):
        dirs = []
        for _ in range(D):
            key, k1, k2, k3, k4 = jax.random.split(key, 5)
            w_ih = jax.random.uniform(k1, (in_size, hidden_dim), jnp.float32, -k_rnn, k_rnn)
            w_hh = jax.random.uniform(k2, (hidden_dim, hidden_dim), jnp.float32, -k_rnn, k_rnn)
            b_ih = jax.random.uniform(k3, (hidden_dim,), jnp.float32, -k_rnn, k_rnn)
            b_hh = jax.random.uniform(k4, (hidden_dim,), jnp.float32, -k_rnn, k_rnn)
            dirs.append((w_ih, w_hh, (b_ih + b_hh)[None, :]))
        layers.append(dirs)
        in_size = hidden_dim * D
    params["rnn"] = layers

    key, k1, k2 = jax.random.split(key, 3)
    k_lin = 1.0 / float(jnp.sqrt(hidden_dim * D))
    params["linear_w"] = jax.random.uniform(
        k1, (hidden_dim * D, output_dim), jnp.float32, -k_lin, k_lin)
    params["linear_b"] = jax.random.uniform(
        k2, (output_dim,), jnp.float32, -k_lin, k_lin)[None, :]
    return params


def reference_forward(params, X_batch):
    """Pure-JAX reference reproducing nn.RNN / nn.Linear / softmax semantics."""
    x = params["embedding"][X_batch]

    def scan(x, w_ih, w_hh, b):
        B, T, _ = x.shape
        H = w_hh.shape[0]
        h = jnp.zeros((B, H), jnp.float32)
        outs = []
        for t in range(T):
            h = jnp.tanh(x[:, t, :] @ w_ih + h @ w_hh + b)
            outs.append(h)
        return jnp.stack(outs, axis=1)

    for dirs in params["rnn"]:
        outs = [scan(x, *dirs[0])]
        if len(dirs) == 2:
            outs.append(scan(x[:, ::-1, :], *dirs[1])[:, ::-1, :])
        x = jnp.concatenate(outs, axis=-1)
    logits = x[:, -1, :] @ params["linear_w"] + params["linear_b"]
    return jax.nn.softmax(logits, axis=-1)


if __name__ == "__main__":
    VOCAB_SIZE = 50      # input_dim
    EMBED_DIM = 32       # embedding_dim
    HIDDEN_DIM = 32      # hidden_dim
    NUM_LAYERS = 2
    BIDIRECTIONAL = True
    OUTPUT_DIM = 4
    B, T = 2, 8          # T kept a multiple of 8 so in-kernel reshapes are layout no-ops

    params = init_params(jax.random.PRNGKey(0), VOCAB_SIZE, EMBED_DIM, HIDDEN_DIM,
                         NUM_LAYERS, BIDIRECTIONAL, OUTPUT_DIM)
    X_batch = jax.random.randint(jax.random.PRNGKey(1), (B, T), 0, VOCAB_SIZE, jnp.int32)

    fwd = jax.jit(forward)
    probs = jax.block_until_ready(fwd(params, X_batch))
    ref = reference_forward(params, X_batch)

    assert probs.shape == (B, OUTPUT_DIM)
    assert jnp.allclose(jnp.sum(probs, axis=-1), 1.0, atol=1e-5)
    assert jnp.allclose(probs, ref, atol=1e-4, rtol=1e-4)
    print("KERNEL_OK")
</pallas_src>

<mosaic_0001>
module attributes {stable_mosaic.version = 11 : i64} {
  func.func @kernel(%arg0: i32, %arg1: memref<16x32xf32, #tpu.memory_space<vmem>>, %arg2: memref<32x64xf32, #tpu.memory_space<vmem>>, %arg3: memref<64x64xf32, #tpu.memory_space<vmem>>, %arg4: memref<1x64xf32, #tpu.memory_space<vmem>>, %arg5: memref<64x64xf32, #tpu.memory_space<vmem>>, %arg6: memref<64x64xf32, #tpu.memory_space<vmem>>, %arg7: memref<1x64xf32, #tpu.memory_space<vmem>>, %arg8: memref<64x128xf32, #tpu.memory_space<vmem>>, %arg9: memref<1x128xf32, #tpu.memory_space<vmem>>, %arg10: memref<2x128xf32, #tpu.memory_space<vmem>>, %arg11: memref<2x8x32xf32, #tpu.memory_space<vmem>>, %arg12: memref<2x8x32xf32, #tpu.memory_space<vmem>>) attributes {dimension_semantics = [#tpu.dimension_semantics<arbitrary>], iteration_bounds = array<i64: 1>, scalar_prefetch = 0 : i64, scratch_operands = 2 : i64, tpu.core_type = #tpu.core_type<tc>, window_params = [{pipeline_mode = #tpu.pipeline_mode<synchronous>, transform_indices = @transform_0, window_bounds = array<i64: 16, 32>}, {pipeline_mode = #tpu.pipeline_mode<synchronous>, transform_indices = @transform_1, window_bounds = array<i64: 32, 64>}, {pipeline_mode = #tpu.pipeline_mode<synchronous>, transform_indices = @transform_2, window_bounds = array<i64: 64, 64>}, {pipeline_mode = #tpu.pipeline_mode<synchronous>, transform_indices = @transform_3, window_bounds = array<i64: 1, 64>}, {pipeline_mode = #tpu.pipeline_mode<synchronous>, transform_indices = @transform_4, window_bounds = array<i64: 64, 64>}, {pipeline_mode = #tpu.pipeline_mode<synchronous>, transform_indices = @transform_5, window_bounds = array<i64: 64, 64>}, {pipeline_mode = #tpu.pipeline_mode<synchronous>, transform_indices = @transform_6, window_bounds = array<i64: 1, 64>}, {pipeline_mode = #tpu.pipeline_mode<synchronous>, transform_indices = @transform_7, window_bounds = array<i64: 64, 128>}, {pipeline_mode = #tpu.pipeline_mode<synchronous>, transform_indices = @transform_8, window_bounds = array<i64: 1, 128>}, {pipeline_mode = #tpu.pipeline_mode<synchronous>, transform_indices = @transform_9, window_bounds = array<i64: 2, 128>}]} {
    %c0 = arith.constant 0 : index
    %c0_0 = arith.constant 0 : index
    %0 = vector.load %arg1[%c0, %c0_0] : memref<16x32xf32, #tpu.memory_space<vmem>>, vector<16x32xf32>
    %c0_1 = arith.constant 0 : index
    %c0_2 = arith.constant 0 : index
    %1 = vector.load %arg2[%c0_1, %c0_2] : memref<32x64xf32, #tpu.memory_space<vmem>>, vector<32x64xf32>
    %cst = arith.constant dense<0.000000e+00> : vector<16x64xf32>
    %2 = tpu.matmul %0, %1, %cst {dimension_numbers = #tpu.dot_dimension_numbers<[1], [0], [0], [1], [0, 0, 1, 1], [], []>} : vector<16x32xf32>, vector<32x64xf32>, vector<16x64xf32> -> vector<16x64xf32>
    %c0_3 = arith.constant 0 : index
    %c0_4 = arith.constant 0 : index
    %3 = vector.load %arg4[%c0_3, %c0_4] : memref<1x64xf32, #tpu.memory_space<vmem>>, vector<1x64xf32>
    %4 = vector.broadcast %3 : vector<1x64xf32> to vector<16x64xf32>
    %5 = arith.addf %2, %4 : vector<16x64xf32>
    %6 = vector.shape_cast %5 : vector<16x64xf32> to vector<2x8x64xf32>
    %c0_5 = arith.constant 0 : index
    %c0_6 = arith.constant 0 : index
    %7 = vector.load %arg3[%c0_5, %c0_6] : memref<64x64xf32, #tpu.memory_space<vmem>>, vector<64x64xf32>
    %cst_7 = arith.constant 0.000000e+00 : f32
    %8 = vector.broadcast %cst_7 : f32 to vector<2x64xf32>
    %9 = vector.extract_strided_slice %6 {offsets = [0, 0, 0], sizes = [2, 1, 32], strides = [1, 1, 1]} : vector<2x8x64xf32> to vector<2x1x32xf32>
    %10 = vector.shape_cast %9 : vector<2x1x32xf32> to vector<2x32xf32>
    %11 = vector.extract_strided_slice %6 {offsets = [0, 7, 32], sizes = [2, 1, 32], strides = [1, 1, 1]} : vector<2x8x64xf32> to vector<2x1x32xf32>
    %12 = vector.shape_cast %11 : vector<2x1x32xf32> to vector<2x32xf32>
    %13 = tpu.concatenate %10, %12 in 1 : vector<2x32xf32>, vector<2x32xf32> -> vector<2x64xf32>
    %cst_8 = arith.constant dense<0.000000e+00> : vector<2x64xf32>
    %14 = tpu.matmul %8, %7, %cst_8 {dimension_numbers = #tpu.dot_dimension_numbers<[1], [0], [0], [1], [0, 0, 1, 1], [], []>} : vector<2x64xf32>, vector<64x64xf32>, vector<2x64xf32> -> vector<2x64xf32>
    %15 = arith.addf %13, %14 : vector<2x64xf32>
    %16 = math.tanh %15 : vector<2x64xf32>
    %17 = vector.extract_strided_slice %16 {offsets = [0, 0], sizes = [2, 32], strides = [1, 1]} : vector<2x64xf32> to vector<2x32xf32>
    %c0_9 = arith.constant 0 : index
    %c0_10 = arith.constant 0 : index
    %c0_11 = arith.constant 0 : index
    %18 = vector.load %arg11[%c0_9, %c0_10, %c0_11] : memref<2x8x32xf32, #tpu.memory_space<vmem>>, vector<2x1x32xf32>
    %19 = vector.shape_cast %18 : vector<2x1x32xf32> to vector<2x32xf32>
    %20 = vector.shape_cast %17 : vector<2x32xf32> to vector<2x1x32xf32>
    tpu.vector_store %arg11[%c0_9, %c0_10, %c0_11], %20 {strides = array<i32>} : memref<2x8x32xf32, #tpu.memory_space<vmem>>, vector<2x1x32xf32>,
    %21 = vector.extract_strided_slice %16 {offsets = [0, 32], sizes = [2, 32], strides = [1, 1]} : vector<2x64xf32> to vector<2x32xf32>
    %c0_12 = arith.constant 0 : index
    %c7 = arith.constant 7 : index
    %c0_13 = arith.constant 0 : index
    %22 = vector.load %arg12[%c0_12, %c7, %c0_13] : memref<2x8x32xf32, #tpu.memory_space<vmem>>, vector<2x1x32xf32>
    %23 = vector.shape_cast %22 : vector<2x1x32xf32> to vector<2x32xf32>
    %24 = vector.shape_cast %21 : vector<2x32xf32> to vector<2x1x32xf32>
    tpu.vector_store %arg12[%c0_12, %c7, %c0_13], %24 {strides = array<i32>} : memref<2x8x32xf32, #tpu.memory_space<vmem>>, vector<2x1x32xf32>,
    %25 = vector.extract_strided_slice %6 {offsets = [0, 1, 0], sizes = [2, 1, 32], strides = [1, 1, 1]} : vector<2x8x64xf32> to vector<2x1x32xf32>
    %26 = vector.shape_cast %25 : vector<2x1x32xf32> to vector<2x32xf32>
    %27 = vector.extract_strided_slice %6 {offsets = [0, 6, 32], sizes = [2, 1, 32], strides = [1, 1, 1]} : vector<2x8x64xf32> to vector<2x1x32xf32>
    %28 = vector.shape_cast %27 : vector<2x1x32xf32> to vector<2x32xf32>
    %29 = tpu.concatenate %26, %28 in 1 : vector<2x32xf32>, vector<2x32xf32> -> vector<2x64xf32>
    %cst_14 = arith.constant dense<0.000000e+00> : vector<2x64xf32>
    %30 = tpu.matmul %16, %7, %cst_14 {dimension_numbers = #tpu.dot_dimension_numbers<[1], [0], [0], [1], [0, 0, 1, 1], [], []>} : vector<2x64xf32>, vector<64x64xf32>, vector<2x64xf32> -> vector<2x64xf32>
    %31 = arith.addf %29, %30 : vector<2x64xf32>
    %32 = math.tanh %31 : vector<2x64xf32>
    %33 = vector.extract_strided_slice %32 {offsets = [0, 0], sizes = [2, 32], strides = [1, 1]} : vector<2x64xf32> to vector<2x32xf32>
    %c0_15 = arith.constant 0 : index
    %c1 = arith.constant 1 : index
    %c0_16 = arith.constant 0 : index
    %34 = vector.load %arg11[%c0_15, %c1, %c0_16] : memref<2x8x32xf32, #tpu.memory_space<vmem>>, vector<2x1x32xf32>
    %35 = vector.shape_cast %34 : vector<2x1x32xf32> to vector<2x32xf32>
    %36 = vector.shape_cast %33 : vector<2x32xf32> to vector<2x1x32xf32>
    tpu.vector_store %arg11[%c0_15, %c1, %c0_16], %36 {strides = array<i32>} : memref<2x8x32xf32, #tpu.memory_space<vmem>>, vector<2x1x32xf32>,
    %37 = vector.extract_strided_slice %32 {offsets = [0, 32], sizes = [2, 32], strides = [1, 1]} : vector<2x64xf32> to vector<2x32xf32>
    %c0_17 = arith.constant 0 : index
    %c6 = arith.constant 6 : index
    %c0_18 = arith.constant 0 : index
    %38 = vector.load %arg12[%c0_17, %c6, %c0_18] : memref<2x8x32xf32, #tpu.memory_space<vmem>>, vector<2x1x32xf32>
    %39 = vector.shape_cast %38 : vector<2x1x32xf32> to vector<2x32xf32>
    %40 = vector.shape_cast %37 : vector<2x32xf32> to vector<2x1x32xf32>
    tpu.vector_store %arg12[%c0_17, %c6, %c0_18], %40 {strides = array<i32>} : memref<2x8x32xf32, #tpu.memory_space<vmem>>, vector<2x1x32xf32>,
    %41 = vector.extract_strided_slice %6 {offsets = [0, 2, 0], sizes = [2, 1, 32], strides = [1, 1, 1]} : vector<2x8x64xf32> to vector<2x1x32xf32>
    %42 = vector.shape_cast %41 : vector<2x1x32xf32> to vector<2x32xf32>
    %43 = vector.extract_strided_slice %6 {offsets = [0, 5, 32], sizes = [2, 1, 32], strides = [1, 1, 1]} : vector<2x8x64xf32> to vector<2x1x32xf32>
    %44 = vector.shape_cast %43 : vector<2x1x32xf32> to vector<2x32xf32>
    %45 = tpu.concatenate %42, %44 in 1 : vector<2x32xf32>, vector<2x32xf32> -> vector<2x64xf32>
    %cst_19 = arith.constant dense<0.000000e+00> : vector<2x64xf32>
    %46 = tpu.matmul %32, %7, %cst_19 {dimension_numbers = #tpu.dot_dimension_numbers<[1], [0], [0], [1], [0, 0, 1, 1], [], []>} : vector<2x64xf32>, vector<64x64xf32>, vector<2x64xf32> -> vector<2x64xf32>
    %47 = arith.addf %45, %46 : vector<2x64xf32>
    %48 = math.tanh %47 : vector<2x64xf32>
    %49 = vector.extract_strided_slice %48 {offsets = [0, 0], sizes = [2, 32], strides = [1, 1]} : vector<2x64xf32> to vector<2x32xf32>
    %c0_20 = arith.constant 0 : index
    %c2 = arith.constant 2 : index
    %c0_21 = arith.constant 0 : index
    %50 = vector.load %arg11[%c0_20, %c2, %c0_21] : memref<2x8x32xf32, #tpu.memory_space<vmem>>, vector<2x1x32xf32>
    %51 = vector.shape_cast %50 : vector<2x1x32xf32> to vector<2x32xf32>
    %52 = vector.shape_cast %49 : vector<2x32xf32> to vector<2x1x32xf32>
    tpu.vector_store %arg11[%c0_20, %c2, %c0_21], %52 {strides = array<i32>} : memref<2x8x32xf32, #tpu.memory_space<vmem>>, vector<2x1x32xf32>,
    %53 = vector.extract_strided_slice %48 {offsets = [0, 32], sizes = [2, 32], strides = [1, 1]} : vector<2x64xf32> to vector<2x32xf32>
    %c0_22 = arith.constant 0 : index
    %c5 = arith.constant 5 : index
    %c0_23 = arith.constant 0 : index
    %54 = vector.load %arg12[%c0_22, %c5, %c0_23] : memref<2x8x32xf32, #tpu.memory_space<vmem>>, vector<2x1x32xf32>
    %55 = vector.shape_cast %54 : vector<2x1x32xf32> to vector<2x32xf32>
    %56 = vector.shape_cast %53 : vector<2x32xf32> to vector<2x1x32xf32>
    tpu.vector_store %arg12[%c0_22, %c5, %c0_23], %56 {strides = array<i32>} : memref<2x8x32xf32, #tpu.memory_space<vmem>>, vector<2x1x32xf32>,
    %57 = vector.extract_strided_slice %6 {offsets = [0, 3, 0], sizes = [2, 1, 32], strides = [1, 1, 1]} : vector<2x8x64xf32> to vector<2x1x32xf32>
    %58 = vector.shape_cast %57 : vector<2x1x32xf32> to vector<2x32xf32>
    %59 = vector.extract_strided_slice %6 {offsets = [0, 4, 32], sizes = [2, 1, 32], strides = [1, 1, 1]} : vector<2x8x64xf32> to vector<2x1x32xf32>
    %60 = vector.shape_cast %59 : vector<2x1x32xf32> to vector<2x32xf32>
    %61 = tpu.concatenate %58, %60 in 1 : vector<2x32xf32>, vector<2x32xf32> -> vector<2x64xf32>
    %cst_24 = arith.constant dense<0.000000e+00> : vector<2x64xf32>
    %62 = tpu.matmul %48, %7, %cst_24 {dimension_numbers = #tpu.dot_dimension_numbers<[1], [0], [0], [1], [0, 0, 1, 1], [], []>} : vector<2x64xf32>, vector<64x64xf32>, vector<2x64xf32> -> vector<2x64xf32>
    %63 = arith.addf %61, %62 : vector<2x64xf32>
    %64 = math.tanh %63 : vector<2x64xf32>
    %65 = vector.extract_strided_slice %64 {offsets = [0, 0], sizes = [2, 32], strides = [1, 1]} : vector<2x64xf32> to vector<2x32xf32>
    %c0_25 = arith.constant 0 : index
    %c3 = arith.constant 3 : index
    %c0_26 = arith.constant 0 : index
    %66 = vector.load %arg11[%c0_25, %c3, %c0_26] : memref<2x8x32xf32, #tpu.memory_space<vmem>>, vector<2x1x32xf32>
    %67 = vector.shape_cast %66 : vector<2x1x32xf32> to vector<2x32xf32>
    %68 = vector.shape_cast %65 : vector<2x32xf32> to vector<2x1x32xf32>
    tpu.vector_store %arg11[%c0_25, %c3, %c0_26], %68 {strides = array<i32>} : memref<2x8x32xf32, #tpu.memory_space<vmem>>, vector<2x1x32xf32>,
    %69 = vector.extract_strided_slice %64 {offsets = [0, 32], sizes = [2, 32], strides = [1, 1]} : vector<2x64xf32> to vector<2x32xf32>
    %c0_27 = arith.constant 0 : index
    %c4 = arith.constant 4 : index
    %c0_28 = arith.constant 0 : index
    %70 = vector.load %arg12[%c0_27, %c4, %c0_28] : memref<2x8x32xf32, #tpu.memory_space<vmem>>, vector<2x1x32xf32>
    %71 = vector.shape_cast %70 : vector<2x1x32xf32> to vector<2x32xf32>
    %72 = vector.shape_cast %69 : vector<2x32xf32> to vector<2x1x32xf32>
    tpu.vector_store %arg12[%c0_27, %c4, %c0_28], %72 {strides = array<i32>} : memref<2x8x32xf32, #tpu.memory_space<vmem>>, vector<2x1x32xf32>,
    %73 = vector.extract_strided_slice %6 {offsets = [0, 4, 0], sizes = [2, 1, 32], strides = [1, 1, 1]} : vector<2x8x64xf32> to vector<2x1x32xf32>
    %74 = vector.shape_cast %73 : vector<2x1x32xf32> to vector<2x32xf32>
    %75 = vector.extract_strided_slice %6 {offsets = [0, 3, 32], sizes = [2, 1, 32], strides = [1, 1, 1]} : vector<2x8x64xf32> to vector<2x1x32xf32>
    %76 = vector.shape_cast %75 : vector<2x1x32xf32> to vector<2x32xf32>
    %77 = tpu.concatenate %74, %76 in 1 : vector<2x32xf32>, vector<2x32xf32> -> vector<2x64xf32>
    %cst_29 = arith.constant dense<0.000000e+00> : vector<2x64xf32>
    %78 = tpu.matmul %64, %7, %cst_29 {dimension_numbers = #tpu.dot_dimension_numbers<[1], [0], [0], [1], [0, 0, 1, 1], [], []>} : vector<2x64xf32>, vector<64x64xf32>, vector<2x64xf32> -> vector<2x64xf32>
    %79 = arith.addf %77, %78 : vector<2x64xf32>
    %80 = math.tanh %79 : vector<2x64xf32>
    %81 = vector.extract_strided_slice %80 {offsets = [0, 0], sizes = [2, 32], strides = [1, 1]} : vector<2x64xf32> to vector<2x32xf32>
    %c0_30 = arith.constant 0 : index
    %c4_31 = arith.constant 4 : index
    %c0_32 = arith.constant 0 : index
    %82 = vector.load %arg11[%c0_30, %c4_31, %c0_32] : memref<2x8x32xf32, #tpu.memory_space<vmem>>, vector<2x1x32xf32>
    %83 = vector.shape_cast %82 : vector<2x1x32xf32> to vector<2x32xf32>
    %84 = vector.shape_cast %81 : vector<2x32xf32> to vector<2x1x32xf32>
    tpu.vector_store %arg11[%c0_30, %c4_31, %c0_32], %84 {strides = array<i32>} : memref<2x8x32xf32, #tpu.memory_space<vmem>>, vector<2x1x32xf32>,
    %85 = vector.extract_strided_slice %80 {offsets = [0, 32], sizes = [2, 32], strides = [1, 1]} : vector<2x64xf32> to vector<2x32xf32>
    %c0_33 = arith.constant 0 : index
    %c3_34 = arith.constant 3 : index
    %c0_35 = arith.constant 0 : index
    %86 = vector.load %arg12[%c0_33, %c3_34, %c0_35] : memref<2x8x32xf32, #tpu.memory_space<vmem>>, vector<2x1x32xf32>
    %87 = vector.shape_cast %86 : vector<2x1x32xf32> to vector<2x32xf32>
    %88 = vector.shape_cast %85 : vector<2x32xf32> to vector<2x1x32xf32>
    tpu.vector_store %arg12[%c0_33, %c3_34, %c0_35], %88 {strides = array<i32>} : memref<2x8x32xf32, #tpu.memory_space<vmem>>, vector<2x1x32xf32>,
    %89 = vector.extract_strided_slice %6 {offsets = [0, 5, 0], sizes = [2, 1, 32], strides = [1, 1, 1]} : vector<2x8x64xf32> to vector<2x1x32xf32>
    %90 = vector.shape_cast %89 : vector<2x1x32xf32> to vector<2x32xf32>
    %91 = vector.extract_strided_slice %6 {offsets = [0, 2, 32], sizes = [2, 1, 32], strides = [1, 1, 1]} : vector<2x8x64xf32> to vector<2x1x32xf32>
    %92 = vector.shape_cast %91 : vector<2x1x32xf32> to vector<2x32xf32>
    %93 = tpu.concatenate %90, %92 in 1 : vector<2x32xf32>, vector<2x32xf32> -> vector<2x64xf32>
    %cst_36 = arith.constant dense<0.000000e+00> : vector<2x64xf32>
    %94 = tpu.matmul %80, %7, %cst_36 {dimension_numbers = #tpu.dot_dimension_numbers<[1], [0], [0], [1], [0, 0, 1, 1], [], []>} : vector<2x64xf32>, vector<64x64xf32>, vector<2x64xf32> -> vector<2x64xf32>
    %95 = arith.addf %93, %94 : vector<2x64xf32>
    %96 = math.tanh %95 : vector<2x64xf32>
    %97 = vector.extract_strided_slice %96 {offsets = [0, 0], sizes = [2, 32], strides = [1, 1]} : vector<2x64xf32> to vector<2x32xf32>
    %c0_37 = arith.constant 0 : index
    %c5_38 = arith.constant 5 : index
    %c0_39 = arith.constant 0 : index
    %98 = vector.load %arg11[%c0_37, %c5_38, %c0_39] : memref<2x8x32xf32, #tpu.memory_space<vmem>>, vector<2x1x32xf32>
    %99 = vector.shape_cast %98 : vector<2x1x32xf32> to vector<2x32xf32>
    %100 = vector.shape_cast %97 : vector<2x32xf32> to vector<2x1x32xf32>
    tpu.vector_store %arg11[%c0_37, %c5_38, %c0_39], %100 {strides = array<i32>} : memref<2x8x32xf32, #tpu.memory_space<vmem>>, vector<2x1x32xf32>,
    %101 = vector.extract_strided_slice %96 {offsets = [0, 32], sizes = [2, 32], strides = [1, 1]} : vector<2x64xf32> to vector<2x32xf32>
    %c0_40 = arith.constant 0 : index
    %c2_41 = arith.constant 2 : index
    %c0_42 = arith.constant 0 : index
    %102 = vector.load %arg12[%c0_40, %c2_41, %c0_42] : memref<2x8x32xf32, #tpu.memory_space<vmem>>, vector<2x1x32xf32>
    %103 = vector.shape_cast %102 : vector<2x1x32xf32> to vector<2x32xf32>
    %104 = vector.shape_cast %101 : vector<2x32xf32> to vector<2x1x32xf32>
    tpu.vector_store %arg12[%c0_40, %c2_41, %c0_42], %104 {strides = array<i32>} : memref<2x8x32xf32, #tpu.memory_space<vmem>>, vector<2x1x32xf32>,
    %105 = vector.extract_strided_slice %6 {offsets = [0, 6, 0], sizes = [2, 1, 32], strides = [1, 1, 1]} : vector<2x8x64xf32> to vector<2x1x32xf32>
    %106 = vector.shape_cast %105 : vector<2x1x32xf32> to vector<2x32xf32>
    %107 = vector.extract_strided_slice %6 {offsets = [0, 1, 32], sizes = [2, 1, 32], strides = [1, 1, 1]} : vector<2x8x64xf32> to vector<2x1x32xf32>
    %108 = vector.shape_cast %107 : vector<2x1x32xf32> to vector<2x32xf32>
    %109 = tpu.concatenate %106, %108 in 1 : vector<2x32xf32>, vector<2x32xf32> -> vector<2x64xf32>
    %cst_43 = arith.constant dense<0.000000e+00> : vector<2x64xf32>
    %110 = tpu.matmul %96, %7, %cst_43 {dimension_numbers = #tpu.dot_dimension_numbers<[1], [0], [0], [1], [0, 0, 1, 1], [], []>} : vector<2x64xf32>, vector<64x64xf32>, vector<2x64xf32> -> vector<2x64xf32>
    %111 = arith.addf %109, %110 : vector<2x64xf32>
    %112 = math.tanh %111 : vector<2x64xf32>
    %113 = vector.extract_strided_slice %112 {offsets = [0, 0], sizes = [2, 32], strides = [1, 1]} : vector<2x64xf32> to vector<2x32xf32>
    %c0_44 = arith.constant 0 : index
    %c6_45 = arith.constant 6 : index
    %c0_46 = arith.constant 0 : index
    %114 = vector.load %arg11[%c0_44, %c6_45, %c0_46] : memref<2x8x32xf32, #tpu.memory_space<vmem>>, vector<2x1x32xf32>
    %115 = vector.shape_cast %114 : vector<2x1x32xf32> to vector<2x32xf32>
    %116 = vector.shape_cast %113 : vector<2x32xf32> to vector<2x1x32xf32>
    tpu.vector_store %arg11[%c0_44, %c6_45, %c0_46], %116 {strides = array<i32>} : memref<2x8x32xf32, #tpu.memory_space<vmem>>, vector<2x1x32xf32>,
    %117 = vector.extract_strided_slice %112 {offsets = [0, 32], sizes = [2, 32], strides = [1, 1]} : vector<2x64xf32> to vector<2x32xf32>
    %c0_47 = arith.constant 0 : index
    %c1_48 = arith.constant 1 : index
    %c0_49 = arith.constant 0 : index
    %118 = vector.load %arg12[%c0_47, %c1_48, %c0_49] : memref<2x8x32xf32, #tpu.memory_space<vmem>>, vector<2x1x32xf32>
    %119 = vector.shape_cast %118 : vector<2x1x32xf32> to vector<2x32xf32>
    %120 = vector.shape_cast %117 : vector<2x32xf32> to vector<2x1x32xf32>
    tpu.vector_store %arg12[%c0_47, %c1_48, %c0_49], %120 {strides = array<i32>} : memref<2x8x32xf32, #tpu.memory_space<vmem>>, vector<2x1x32xf32>,
    %121 = vector.extract_strided_slice %6 {offsets = [0, 7, 0], sizes = [2, 1, 32], strides = [1, 1, 1]} : vector<2x8x64xf32> to vector<2x1x32xf32>
    %122 = vector.shape_cast %121 : vector<2x1x32xf32> to vector<2x32xf32>
    %123 = vector.extract_strided_slice %6 {offsets = [0, 0, 32], sizes = [2, 1, 32], strides = [1, 1, 1]} : vector<2x8x64xf32> to vector<2x1x32xf32>
    %124 = vector.shape_cast %123 : vector<2x1x32xf32> to vector<2x32xf32>
    %125 = tpu.concatenate %122, %124 in 1 : vector<2x32xf32>, vector<2x32xf32> -> vector<2x64xf32>
    %cst_50 = arith.constant dense<0.000000e+00> : vector<2x64xf32>
    %126 = tpu.matmul %112, %7, %cst_50 {dimension_numbers = #tpu.dot_dimension_numbers<[1], [0], [0], [1], [0, 0, 1, 1], [], []>} : vector<2x64xf32>, vector<64x64xf32>, vector<2x64xf32> -> vector<2x64xf32>
    %127 = arith.addf %125, %126 : vector<2x64xf32>
    %128 = math.tanh %127 : vector<2x64xf32>
    %129 = vector.extract_strided_slice %128 {offsets = [0, 0], sizes = [2, 32], strides = [1, 1]} : vector<2x64xf32> to vector<2x32xf32>
    %c0_51 = arith.constant 0 : index
    %c7_52 = arith.constant 7 : index
    %c0_53 = arith.constant 0 : index
    %130 = vector.load %arg11[%c0_51, %c7_52, %c0_53] : memref<2x8x32xf32, #tpu.memory_space<vmem>>, vector<2x1x32xf32>
    %131 = vector.shape_cast %130 : vector<2x1x32xf32> to vector<2x32xf32>
    %132 = vector.shape_cast %129 : vector<2x32xf32> to vector<2x1x32xf32>
    tpu.vector_store %arg11[%c0_51, %c7_52, %c0_53], %132 {strides = array<i32>} : memref<2x8x32xf32, #tpu.memory_space<vmem>>, vector<2x1x32xf32>,
    %133 = vector.extract_strided_slice %128 {offsets = [0, 32], sizes = [2, 32], strides = [1, 1]} : vector<2x64xf32> to vector<2x32xf32>
    %c0_54 = arith.constant 0 : index
    %c0_55 = arith.constant 0 : index
    %c0_56 = arith.constant 0 : index
    %134 = vector.load %arg12[%c0_54, %c0_55, %c0_56] : memref<2x8x32xf32, #tpu.memory_space<vmem>>, vector<2x1x32xf32>
    %135 = vector.shape_cast %134 : vector<2x1x32xf32> to vector<2x32xf32>
    %136 = vector.shape_cast %133 : vector<2x32xf32> to vector<2x1x32xf32>
    tpu.vector_store %arg12[%c0_54, %c0_55, %c0_56], %136 {strides = array<i32>} : memref<2x8x32xf32, #tpu.memory_space<vmem>>, vector<2x1x32xf32>,
    %c0_57 = arith.constant 0 : index
    %c0_58 = arith.constant 0 : index
    %c0_59 = arith.constant 0 : index
    %137 = vector.load %arg11[%c0_57, %c0_58, %c0_59] : memref<2x8x32xf32, #tpu.memory_space<vmem>>, vector<2x8x32xf32>
    %c0_60 = arith.constant 0 : index
    %c0_61 = arith.constant 0 : index
    %c0_62 = arith.constant 0 : index
    %138 = vector.load %arg12[%c0_60, %c0_61, %c0_62] : memref<2x8x32xf32, #tpu.memory_space<vmem>>, vector<2x8x32xf32>
    %139 = tpu.concatenate %137, %138 in 2 : vector<2x8x32xf32>, vector<2x8x32xf32> -> vector<2x8x64xf32>
    %140 = vector.shape_cast %139 : vector<2x8x64xf32> to vector<16x64xf32>
    %c0_63 = arith.constant 0 : index
    %c0_64 = arith.constant 0 : index
    %141 = vector.load %arg5[%c0_63, %c0_64] : memref<64x64xf32, #tpu.memory_space<vmem>>, vector<64x64xf32>
    %cst_65 = arith.constant dense<0.000000e+00> : vector<16x64xf32>
    %142 = tpu.matmul %140, %141, %cst_65 {dimension_numbers = #tpu.dot_dimension_numbers<[1], [0], [0], [1], [0, 0, 1, 1], [], []>} : vector<16x64xf32>, vector<64x64xf32>, vector<16x64xf32> -> vector<16x64xf32>
    %c0_66 = arith.constant 0 : index
    %c0_67 = arith.constant 0 : index
    %143 = vector.load %arg7[%c0_66, %c0_67] : memref<1x64xf32, #tpu.memory_space<vmem>>, vector<1x64xf32>
    %144 = vector.broadcast %143 : vector<1x64xf32> to vector<16x64xf32>
    %145 = arith.addf %142, %144 : vector<16x64xf32>
    %146 = vector.shape_cast %145 : vector<16x64xf32> to vector<2x8x64xf32>
    %c0_68 = arith.constant 0 : index
    %c0_69 = arith.constant 0 : index
    %147 = vector.load %arg6[%c0_68, %c0_69] : memref<64x64xf32, #tpu.memory_space<vmem>>, vector<64x64xf32>
    %cst_70 = arith.constant 0.000000e+00 : f32
    %148 = vector.broadcast %cst_70 : f32 to vector<2x64xf32>
    %149 = vector.extract_strided_slice %146 {offsets = [0, 0, 0], sizes = [2, 1, 32], strides = [1, 1, 1]} : vector<2x8x64xf32> to vector<2x1x32xf32>
    %150 = vector.shape_cast %149 : vector<2x1x32xf32> to vector<2x32xf32>
    %151 = vector.extract_strided_slice %146 {offsets = [0, 7, 32], sizes = [2, 1, 32], strides = [1, 1, 1]} : vector<2x8x64xf32> to vector<2x1x32xf32>
    %152 = vector.shape_cast %151 : vector<2x1x32xf32> to vector<2x32xf32>
    %153 = tpu.concatenate %150, %152 in 1 : vector<2x32xf32>, vector<2x32xf32> -> vector<2x64xf32>
    %cst_71 = arith.constant dense<0.000000e+00> : vector<2x64xf32>
    %154 = tpu.matmul %148, %147, %cst_71 {dimension_numbers = #tpu.dot_dimension_numbers<[1], [0], [0], [1], [0, 0, 1, 1], [], []>} : vector<2x64xf32>, vector<64x64xf32>, vector<2x64xf32> -> vector<2x64xf32>
    %155 = arith.addf %153, %154 : vector<2x64xf32>
    %156 = math.tanh %155 : vector<2x64xf32>
    %157 = vector.extract_strided_slice %156 {offsets = [0, 0], sizes = [2, 32], strides = [1, 1]} : vector<2x64xf32> to vector<2x32xf32>
    %c0_72 = arith.constant 0 : index
    %c0_73 = arith.constant 0 : index
    %c0_74 = arith.constant 0 : index
    %158 = vector.load %arg11[%c0_72, %c0_73, %c0_74] : memref<2x8x32xf32, #tpu.memory_space<vmem>>, vector<2x1x32xf32>
    %159 = vector.shape_cast %158 : vector<2x1x32xf32> to vector<2x32xf32>
    %160 = vector.shape_cast %157 : vector<2x32xf32> to vector<2x1x32xf32>
    tpu.vector_store %arg11[%c0_72, %c0_73, %c0_74], %160 {strides = array<i32>} : memref<2x8x32xf32, #tpu.memory_space<vmem>>, vector<2x1x32xf32>,
    %161 = vector.extract_strided_slice %156 {offsets = [0, 32], sizes = [2, 32], strides = [1, 1]} : vector<2x64xf32> to vector<2x32xf32>
    %c0_75 = arith.constant 0 : index
    %c7_76 = arith.constant 7 : index
    %c0_77 = arith.constant 0 : index
    %162 = vector.load %arg12[%c0_75, %c7_76, %c0_77] : memref<2x8x32xf32, #tpu.memory_space<vmem>>, vector<2x1x32xf32>
    %163 = vector.shape_cast %162 : vector<2x1x32xf32> to vector<2x32xf32>
    %164 = vector.shape_cast %161 : vector<2x32xf32> to vector<2x1x32xf32>
    tpu.vector_store %arg12[%c0_75, %c7_76, %c0_77], %164 {strides = array<i32>} : memref<2x8x32xf32, #tpu.memory_space<vmem>>, vector<2x1x32xf32>,
    %165 = vector.extract_strided_slice %146 {offsets = [0, 1, 0], sizes = [2, 1, 32], strides = [1, 1, 1]} : vector<2x8x64xf32> to vector<2x1x32xf32>
    %166 = vector.shape_cast %165 : vector<2x1x32xf32> to vector<2x32xf32>
    %167 = vector.extract_strided_slice %146 {offsets = [0, 6, 32], sizes = [2, 1, 32], strides = [1, 1, 1]} : vector<2x8x64xf32> to vector<2x1x32xf32>
    %168 = vector.shape_cast %167 : vector<2x1x32xf32> to vector<2x32xf32>
    %169 = tpu.concatenate %166, %168 in 1 : vector<2x32xf32>, vector<2x32xf32> -> vector<2x64xf32>
    %cst_78 = arith.constant dense<0.000000e+00> : vector<2x64xf32>
    %170 = tpu.matmul %156, %147, %cst_78 {dimension_numbers = #tpu.dot_dimension_numbers<[1], [0], [0], [1], [0, 0, 1, 1], [], []>} : vector<2x64xf32>, vector<64x64xf32>, vector<2x64xf32> -> vector<2x64xf32>
    %171 = arith.addf %169, %170 : vector<2x64xf32>
    %172 = math.tanh %171 : vector<2x64xf32>
    %173 = vector.extract_strided_slice %172 {offsets = [0, 0], sizes = [2, 32], strides = [1, 1]} : vector<2x64xf32> to vector<2x32xf32>
    %c0_79 = arith.constant 0 : index
    %c1_80 = arith.constant 1 : index
    %c0_81 = arith.constant 0 : index
    %174 = vector.load %arg11[%c0_79, %c1_80, %c0_81] : memref<2x8x32xf32, #tpu.memory_space<vmem>>, vector<2x1x32xf32>
    %175 = vector.shape_cast %174 : vector<2x1x32xf32> to vector<2x32xf32>
    %176 = vector.shape_cast %173 : vector<2x32xf32> to vector<2x1x32xf32>
    tpu.vector_store %arg11[%c0_79, %c1_80, %c0_81], %176 {strides = array<i32>} : memref<2x8x32xf32, #tpu.memory_space<vmem>>, vector<2x1x32xf32>,
    %177 = vector.extract_strided_slice %172 {offsets = [0, 32], sizes = [2, 32], strides = [1, 1]} : vector<2x64xf32> to vector<2x32xf32>
    %c0_82 = arith.constant 0 : index
    %c6_83 = arith.constant 6 : index
    %c0_84 = arith.constant 0 : index
    %178 = vector.load %arg12[%c0_82, %c6_83, %c0_84] : memref<2x8x32xf32, #tpu.memory_space<vmem>>, vector<2x1x32xf32>
    %179 = vector.shape_cast %178 : vector<2x1x32xf32> to vector<2x32xf32>
    %180 = vector.shape_cast %177 : vector<2x32xf32> to vector<2x1x32xf32>
    tpu.vector_store %arg12[%c0_82, %c6_83, %c0_84], %180 {strides = array<i32>} : memref<2x8x32xf32, #tpu.memory_space<vmem>>, vector<2x1x32xf32>,
    %181 = vector.extract_strided_slice %146 {offsets = [0, 2, 0], sizes = [2, 1, 32], strides = [1, 1, 1]} : vector<2x8x64xf32> to vector<2x1x32xf32>
    %182 = vector.shape_cast %181 : vector<2x1x32xf32> to vector<2x32xf32>
    %183 = vector.extract_strided_slice %146 {offsets = [0, 5, 32], sizes = [2, 1, 32], strides = [1, 1, 1]} : vector<2x8x64xf32> to vector<2x1x32xf32>
    %184 = vector.shape_cast %183 : vector<2x1x32xf32> to vector<2x32xf32>
    %185 = tpu.concatenate %182, %184 in 1 : vector<2x32xf32>, vector<2x32xf32> -> vector<2x64xf32>
    %cst_85 = arith.constant dense<0.000000e+00> : vector<2x64xf32>
    %186 = tpu.matmul %172, %147, %cst_85 {dimension_numbers = #tpu.dot_dimension_numbers<[1], [0], [0], [1], [0, 0, 1, 1], [], []>} : vector<2x64xf32>, vector<64x64xf32>, vector<2x64xf32> -> vector<2x64xf32>
    %187 = arith.addf %185, %186 : vector<2x64xf32>
    %188 = math.tanh %187 : vector<2x64xf32>
    %189 = vector.extract_strided_slice %188 {offsets = [0, 0], sizes = [2, 32], strides = [1, 1]} : vector<2x64xf32> to vector<2x32xf32>
    %c0_86 = arith.constant 0 : index
    %c2_87 = arith.constant 2 : index
    %c0_88 = arith.constant 0 : index
    %190 = vector.load %arg11[%c0_86, %c2_87, %c0_88] : memref<2x8x32xf32, #tpu.memory_space<vmem>>, vector<2x1x32xf32>
    %191 = vector.shape_cast %190 : vector<2x1x32xf32> to vector<2x32xf32>
    %192 = vector.shape_cast %189 : vector<2x32xf32> to vector<2x1x32xf32>
    tpu.vector_store %arg11[%c0_86, %c2_87, %c0_88], %192 {strides = array<i32>} : memref<2x8x32xf32, #tpu.memory_space<vmem>>, vector<2x1x32xf32>,
    %193 = vector.extract_strided_slice %188 {offsets = [0, 32], sizes = [2, 32], strides = [1, 1]} : vector<2x64xf32> to vector<2x32xf32>
    %c0_89 = arith.constant 0 : index
    %c5_90 = arith.constant 5 : index
    %c0_91 = arith.constant 0 : index
    %194 = vector.load %arg12[%c0_89, %c5_90, %c0_91] : memref<2x8x32xf32, #tpu.memory_space<vmem>>, vector<2x1x32xf32>
    %195 = vector.shape_cast %194 : vector<2x1x32xf32> to vector<2x32xf32>
    %196 = vector.shape_cast %193 : vector<2x32xf32> to vector<2x1x32xf32>
    tpu.vector_store %arg12[%c0_89, %c5_90, %c0_91], %196 {strides = array<i32>} : memref<2x8x32xf32, #tpu.memory_space<vmem>>, vector<2x1x32xf32>,
    %197 = vector.extract_strided_slice %146 {offsets = [0, 3, 0], sizes = [2, 1, 32], strides = [1, 1, 1]} : vector<2x8x64xf32> to vector<2x1x32xf32>
    %198 = vector.shape_cast %197 : vector<2x1x32xf32> to vector<2x32xf32>
    %199 = vector.extract_strided_slice %146 {offsets = [0, 4, 32], sizes = [2, 1, 32], strides = [1, 1, 1]} : vector<2x8x64xf32> to vector<2x1x32xf32>
    %200 = vector.shape_cast %199 : vector<2x1x32xf32> to vector<2x32xf32>
    %201 = tpu.concatenate %198, %200 in 1 : vector<2x32xf32>, vector<2x32xf32> -> vector<2x64xf32>
    %cst_92 = arith.constant dense<0.000000e+00> : vector<2x64xf32>
    %202 = tpu.matmul %188, %147, %cst_92 {dimension_numbers = #tpu.dot_dimension_numbers<[1], [0], [0], [1], [0, 0, 1, 1], [], []>} : vector<2x64xf32>, vector<64x64xf32>, vector<2x64xf32> -> vector<2x64xf32>
    %203 = arith.addf %201, %202 : vector<2x64xf32>
    %204 = math.tanh %203 : vector<2x64xf32>
    %205 = vector.extract_strided_slice %204 {offsets = [0, 0], sizes = [2, 32], strides = [1, 1]} : vector<2x64xf32> to vector<2x32xf32>
    %c0_93 = arith.constant 0 : index
    %c3_94 = arith.constant 3 : index
    %c0_95 = arith.constant 0 : index
    %206 = vector.load %arg11[%c0_93, %c3_94, %c0_95] : memref<2x8x32xf32, #tpu.memory_space<vmem>>, vector<2x1x32xf32>
    %207 = vector.shape_cast %206 : vector<2x1x32xf32> to vector<2x32xf32>
    %208 = vector.shape_cast %205 : vector<2x32xf32> to vector<2x1x32xf32>
    tpu.vector_store %arg11[%c0_93, %c3_94, %c0_95], %208 {strides = array<i32>} : memref<2x8x32xf32, #tpu.memory_space<vmem>>, vector<2x1x32xf32>,
    %209 = vector.extract_strided_slice %204 {offsets = [0, 32], sizes = [2, 32], strides = [1, 1]} : vector<2x64xf32> to vector<2x32xf32>
    %c0_96 = arith.constant 0 : index
    %c4_97 = arith.constant 4 : index
    %c0_98 = arith.constant 0 : index
    %210 = vector.load %arg12[%c0_96, %c4_97, %c0_98] : memref<2x8x32xf32, #tpu.memory_space<vmem>>, vector<2x1x32xf32>
    %211 = vector.shape_cast %210 : vector<2x1x32xf32> to vector<2x32xf32>
    %212 = vector.shape_cast %209 : vector<2x32xf32> to vector<2x1x32xf32>
    tpu.vector_store %arg12[%c0_96, %c4_97, %c0_98], %212 {strides = array<i32>} : memref<2x8x32xf32, #tpu.memory_space<vmem>>, vector<2x1x32xf32>,
    %213 = vector.extract_strided_slice %146 {offsets = [0, 4, 0], sizes = [2, 1, 32], strides = [1, 1, 1]} : vector<2x8x64xf32> to vector<2x1x32xf32>
    %214 = vector.shape_cast %213 : vector<2x1x32xf32> to vector<2x32xf32>
    %215 = vector.extract_strided_slice %146 {offsets = [0, 3, 32], sizes = [2, 1, 32], strides = [1, 1, 1]} : vector<2x8x64xf32> to vector<2x1x32xf32>
    %216 = vector.shape_cast %215 : vector<2x1x32xf32> to vector<2x32xf32>
    %217 = tpu.concatenate %214, %216 in 1 : vector<2x32xf32>, vector<2x32xf32> -> vector<2x64xf32>
    %cst_99 = arith.constant dense<0.000000e+00> : vector<2x64xf32>
    %218 = tpu.matmul %204, %147, %cst_99 {dimension_numbers = #tpu.dot_dimension_numbers<[1], [0], [0], [1], [0, 0, 1, 1], [], []>} : vector<2x64xf32>, vector<64x64xf32>, vector<2x64xf32> -> vector<2x64xf32>
    %219 = arith.addf %217, %218 : vector<2x64xf32>
    %220 = math.tanh %219 : vector<2x64xf32>
    %221 = vector.extract_strided_slice %220 {offsets = [0, 0], sizes = [2, 32], strides = [1, 1]} : vector<2x64xf32> to vector<2x32xf32>
    %c0_100 = arith.constant 0 : index
    %c4_101 = arith.constant 4 : index
    %c0_102 = arith.constant 0 : index
    %222 = vector.load %arg11[%c0_100, %c4_101, %c0_102] : memref<2x8x32xf32, #tpu.memory_space<vmem>>, vector<2x1x32xf32>
    %223 = vector.shape_cast %222 : vector<2x1x32xf32> to vector<2x32xf32>
    %224 = vector.shape_cast %221 : vector<2x32xf32> to vector<2x1x32xf32>
    tpu.vector_store %arg11[%c0_100, %c4_101, %c0_102], %224 {strides = array<i32>} : memref<2x8x32xf32, #tpu.memory_space<vmem>>, vector<2x1x32xf32>,
    %225 = vector.extract_strided_slice %220 {offsets = [0, 32], sizes = [2, 32], strides = [1, 1]} : vector<2x64xf32> to vector<2x32xf32>
    %c0_103 = arith.constant 0 : index
    %c3_104 = arith.constant 3 : index
    %c0_105 = arith.constant 0 : index
    %226 = vector.load %arg12[%c0_103, %c3_104, %c0_105] : memref<2x8x32xf32, #tpu.memory_space<vmem>>, vector<2x1x32xf32>
    %227 = vector.shape_cast %226 : vector<2x1x32xf32> to vector<2x32xf32>
    %228 = vector.shape_cast %225 : vector<2x32xf32> to vector<2x1x32xf32>
    tpu.vector_store %arg12[%c0_103, %c3_104, %c0_105], %228 {strides = array<i32>} : memref<2x8x32xf32, #tpu.memory_space<vmem>>, vector<2x1x32xf32>,
    %229 = vector.extract_strided_slice %146 {offsets = [0, 5, 0], sizes = [2, 1, 32], strides = [1, 1, 1]} : vector<2x8x64xf32> to vector<2x1x32xf32>
    %230 = vector.shape_cast %229 : vector<2x1x32xf32> to vector<2x32xf32>
    %231 = vector.extract_strided_slice %146 {offsets = [0, 2, 32], sizes = [2, 1, 32], strides = [1, 1, 1]} : vector<2x8x64xf32> to vector<2x1x32xf32>
    %232 = vector.shape_cast %231 : vector<2x1x32xf32> to vector<2x32xf32>
    %233 = tpu.concatenate %230, %232 in 1 : vector<2x32xf32>, vector<2x32xf32> -> vector<2x64xf32>
    %cst_106 = arith.constant dense<0.000000e+00> : vector<2x64xf32>
    %234 = tpu.matmul %220, %147, %cst_106 {dimension_numbers = #tpu.dot_dimension_numbers<[1], [0], [0], [1], [0, 0, 1, 1], [], []>} : vector<2x64xf32>, vector<64x64xf32>, vector<2x64xf32> -> vector<2x64xf32>
    %235 = arith.addf %233, %234 : vector<2x64xf32>
    %236 = math.tanh %235 : vector<2x64xf32>
    %237 = vector.extract_strided_slice %236 {offsets = [0, 0], sizes = [2, 32], strides = [1, 1]} : vector<2x64xf32> to vector<2x32xf32>
    %c0_107 = arith.constant 0 : index
    %c5_108 = arith.constant 5 : index
    %c0_109 = arith.constant 0 : index
    %238 = vector.load %arg11[%c0_107, %c5_108, %c0_109] : memref<2x8x32xf32, #tpu.memory_space<vmem>>, vector<2x1x32xf32>
    %239 = vector.shape_cast %238 : vector<2x1x32xf32> to vector<2x32xf32>
    %240 = vector.shape_cast %237 : vector<2x32xf32> to vector<2x1x32xf32>
    tpu.vector_store %arg11[%c0_107, %c5_108, %c0_109], %240 {strides = array<i32>} : memref<2x8x32xf32, #tpu.memory_space<vmem>>, vector<2x1x32xf32>,
    %241 = vector.extract_strided_slice %236 {offsets = [0, 32], sizes = [2, 32], strides = [1, 1]} : vector<2x64xf32> to vector<2x32xf32>
    %c0_110 = arith.constant 0 : index
    %c2_111 = arith.constant 2 : index
    %c0_112 = arith.constant 0 : index
    %242 = vector.load %arg12[%c0_110, %c2_111, %c0_112] : memref<2x8x32xf32, #tpu.memory_space<vmem>>, vector<2x1x32xf32>
    %243 = vector.shape_cast %242 : vector<2x1x32xf32> to vector<2x32xf32>
    %244 = vector.shape_cast %241 : vector<2x32xf32> to vector<2x1x32xf32>
    tpu.vector_store %arg12[%c0_110, %c2_111, %c0_112], %244 {strides = array<i32>} : memref<2x8x32xf32, #tpu.memory_space<vmem>>, vector<2x1x32xf32>,
    %245 = vector.extract_strided_slice %146 {offsets = [0, 6, 0], sizes = [2, 1, 32], strides = [1, 1, 1]} : vector<2x8x64xf32> to vector<2x1x32xf32>
    %246 = vector.shape_cast %245 : vector<2x1x32xf32> to vector<2x32xf32>
    %247 = vector.extract_strided_slice %146 {offsets = [0, 1, 32], sizes = [2, 1, 32], strides = [1, 1, 1]} : vector<2x8x64xf32> to vector<2x1x32xf32>
    %248 = vector.shape_cast %247 : vector<2x1x32xf32> to vector<2x32xf32>
    %249 = tpu.concatenate %246, %248 in 1 : vector<2x32xf32>, vector<2x32xf32> -> vector<2x64xf32>
    %cst_113 = arith.constant dense<0.000000e+00> : vector<2x64xf32>
    %250 = tpu.matmul %236, %147, %cst_113 {dimension_numbers = #tpu.dot_dimension_numbers<[1], [0], [0], [1], [0, 0, 1, 1], [], []>} : vector<2x64xf32>, vector<64x64xf32>, vector<2x64xf32> -> vector<2x64xf32>
    %251 = arith.addf %249, %250 : vector<2x64xf32>
    %252 = math.tanh %251 : vector<2x64xf32>
    %253 = vector.extract_strided_slice %252 {offsets = [0, 0], sizes = [2, 32], strides = [1, 1]} : vector<2x64xf32> to vector<2x32xf32>
    %c0_114 = arith.constant 0 : index
    %c6_115 = arith.constant 6 : index
    %c0_116 = arith.constant 0 : index
    %254 = vector.load %arg11[%c0_114, %c6_115, %c0_116] : memref<2x8x32xf32, #tpu.memory_space<vmem>>, vector<2x1x32xf32>
    %255 = vector.shape_cast %254 : vector<2x1x32xf32> to vector<2x32xf32>
    %256 = vector.shape_cast %253 : vector<2x32xf32> to vector<2x1x32xf32>
    tpu.vector_store %arg11[%c0_114, %c6_115, %c0_116], %256 {strides = array<i32>} : memref<2x8x32xf32, #tpu.memory_space<vmem>>, vector<2x1x32xf32>,
    %257 = vector.extract_strided_slice %252 {offsets = [0, 32], sizes = [2, 32], strides = [1, 1]} : vector<2x64xf32> to vector<2x32xf32>
    %c0_117 = arith.constant 0 : index
    %c1_118 = arith.constant 1 : index
    %c0_119 = arith.constant 0 : index
    %258 = vector.load %arg12[%c0_117, %c1_118, %c0_119] : memref<2x8x32xf32, #tpu.memory_space<vmem>>, vector<2x1x32xf32>
    %259 = vector.shape_cast %258 : vector<2x1x32xf32> to vector<2x32xf32>
    %260 = vector.shape_cast %257 : vector<2x32xf32> to vector<2x1x32xf32>
    tpu.vector_store %arg12[%c0_117, %c1_118, %c0_119], %260 {strides = array<i32>} : memref<2x8x32xf32, #tpu.memory_space<vmem>>, vector<2x1x32xf32>,
    %261 = vector.extract_strided_slice %146 {offsets = [0, 7, 0], sizes = [2, 1, 32], strides = [1, 1, 1]} : vector<2x8x64xf32> to vector<2x1x32xf32>
    %262 = vector.shape_cast %261 : vector<2x1x32xf32> to vector<2x32xf32>
    %263 = vector.extract_strided_slice %146 {offsets = [0, 0, 32], sizes = [2, 1, 32], strides = [1, 1, 1]} : vector<2x8x64xf32> to vector<2x1x32xf32>
    %264 = vector.shape_cast %263 : vector<2x1x32xf32> to vector<2x32xf32>
    %265 = tpu.concatenate %262, %264 in 1 : vector<2x32xf32>, vector<2x32xf32> -> vector<2x64xf32>
    %cst_120 = arith.constant dense<0.000000e+00> : vector<2x64xf32>
    %266 = tpu.matmul %252, %147, %cst_120 {dimension_numbers = #tpu.dot_dimension_numbers<[1], [0], [0], [1], [0, 0, 1, 1], [], []>} : vector<2x64xf32>, vector<64x64xf32>, vector<2x64xf32> -> vector<2x64xf32>
    %267 = arith.addf %265, %266 : vector<2x64xf32>
    %268 = math.tanh %267 : vector<2x64xf32>
    %269 = vector.extract_strided_slice %268 {offsets = [0, 0], sizes = [2, 32], strides = [1, 1]} : vector<2x64xf32> to vector<2x32xf32>
    %c0_121 = arith.constant 0 : index
    %c7_122 = arith.constant 7 : index
    %c0_123 = arith.constant 0 : index
    %270 = vector.load %arg11[%c0_121, %c7_122, %c0_123] : memref<2x8x32xf32, #tpu.memory_space<vmem>>, vector<2x1x32xf32>
    %271 = vector.shape_cast %270 : vector<2x1x32xf32> to vector<2x32xf32>
    %272 = vector.shape_cast %269 : vector<2x32xf32> to vector<2x1x32xf32>
    tpu.vector_store %arg11[%c0_121, %c7_122, %c0_123], %272 {strides = array<i32>} : memref<2x8x32xf32, #tpu.memory_space<vmem>>, vector<2x1x32xf32>,
    %273 = vector.extract_strided_slice %268 {offsets = [0, 32], sizes = [2, 32], strides = [1, 1]} : vector<2x64xf32> to vector<2x32xf32>
    %c0_124 = arith.constant 0 : index
    %c0_125 = arith.constant 0 : index
    %c0_126 = arith.constant 0 : index
    %274 = vector.load %arg12[%c0_124, %c0_125, %c0_126] : memref<2x8x32xf32, #tpu.memory_space<vmem>>, vector<2x1x32xf32>
    %275 = vector.shape_cast %274 : vector<2x1x32xf32> to vector<2x32xf32>
    %276 = vector.shape_cast %273 : vector<2x32xf32> to vector<2x1x32xf32>
    tpu.vector_store %arg12[%c0_124, %c0_125, %c0_126], %276 {strides = array<i32>} : memref<2x8x32xf32, #tpu.memory_space<vmem>>, vector<2x1x32xf32>,
    %c0_127 = arith.constant 0 : index
    %c7_128 = arith.constant 7 : index
    %c0_129 = arith.constant 0 : index
    %277 = vector.load %arg11[%c0_127, %c7_128, %c0_129] : memref<2x8x32xf32, #tpu.memory_space<vmem>>, vector<2x1x32xf32>
    %278 = vector.shape_cast %277 : vector<2x1x32xf32> to vector<2x32xf32>
    %c0_130 = arith.constant 0 : index
    %c7_131 = arith.constant 7 : index
    %c0_132 = arith.constant 0 : index
    %279 = vector.load %arg12[%c0_130, %c7_131, %c0_132] : memref<2x8x32xf32, #tpu.memory_space<vmem>>, vector<2x1x32xf32>
    %280 = vector.shape_cast %279 : vector<2x1x32xf32> to vector<2x32xf32>
    %281 = tpu.concatenate %278, %280 in 1 : vector<2x32xf32>, vector<2x32xf32> -> vector<2x64xf32>
    %c0_133 = arith.constant 0 : index
    %c0_134 = arith.constant 0 : index
    %282 = vector.load %arg8[%c0_133, %c0_134] : memref<64x128xf32, #tpu.memory_space<vmem>>, vector<64x128xf32>
    %cst_135 = arith.constant dense<0.000000e+00> : vector<2x128xf32>
    %283 = tpu.matmul %281, %282, %cst_135 {dimension_numbers = #tpu.dot_dimension_numbers<[1], [0], [0], [1], [0, 0, 1, 1], [], []>} : vector<2x64xf32>, vector<64x128xf32>, vector<2x128xf32> -> vector<2x128xf32>
    %c0_136 = arith.constant 0 : index
    %c0_137 = arith.constant 0 : index
    %284 = vector.load %arg9[%c0_136, %c0_137] : memref<1x128xf32, #tpu.memory_space<vmem>>, vector<1x128xf32>
    %285 = vector.broadcast %284 : vector<1x128xf32> to vector<2x128xf32>
    %286 = arith.addf %283, %285 : vector<2x128xf32>
    %cst_138 = arith.constant dense<0xFF800000> : vector<2xf32>
    %287 = vector.multi_reduction <maximumf>, %286, %cst_138 [1] : vector<2x128xf32> to vector<2xf32>
    %288 = vector.shape_cast %287 : vector<2xf32> to vector<2x1xf32>
    %289 = vector.broadcast %288 : vector<2x1xf32> to vector<2x128xf32>
    %290 = arith.subf %286, %289 : vector<2x128xf32>
    %291 = math.exp %290 : vector<2x128xf32>
    %cst_139 = arith.constant dense<0.000000e+00> : vector<2xf32>
    %292 = vector.multi_reduction <add>, %291, %cst_139 [1] : vector<2x128xf32> to vector<2xf32>
    %293 = vector.shape_cast %292 : vector<2xf32> to vector<2x1xf32>
    %294 = vector.broadcast %293 : vector<2x1xf32> to vector<2x128xf32>
    %295 = arith.divf %291, %294 : vector<2x128xf32>
    %c0_140 = arith.constant 0 : index
    %c0_141 = arith.constant 0 : index
    %296 = vector.load %arg10[%c0_140, %c0_141] : memref<2x128xf32, #tpu.memory_space<vmem>>, vector<2x128xf32>
    tpu.vector_store %arg10[%c0_140, %c0_141], %295 {strides = array<i32>} : memref<2x128xf32, #tpu.memory_space<vmem>>, vector<2x128xf32>,
    return
  }
  func.func @transform_0(%arg0: i32) -> (i32, i32) {
    %c0_i32 = arith.constant 0 : i32
    %c0_i32_0 = arith.constant 0 : i32
    %c0_i32_1 = arith.constant 0 : i32
    return %c0_i32, %c0_i32_0 : i32, i32
  }
  func.func @transform_1(%arg0: i32) -> (i32, i32) {
    %c0_i32 = arith.constant 0 : i32
    %c0_i32_0 = arith.constant 0 : i32
    %c0_i32_1 = arith.constant 0 : i32
    return %c0_i32, %c0_i32_0 : i32, i32
  }
  func.func @transform_2(%arg0: i32) -> (i32, i32) {
    %c0_i32 = arith.constant 0 : i32
    %c0_i32_0 = arith.constant 0 : i32
    %c0_i32_1 = arith.constant 0 : i32
    return %c0_i32, %c0_i32_0 : i32, i32
  }
  func.func @transform_3(%arg0: i32) -> (i32, i32) {
    %c0_i32 = arith.constant 0 : i32
    %c0_i32_0 = arith.constant 0 : i32
    %c0_i32_1 = arith.constant 0 : i32
    return %c0_i32, %c0_i32_0 : i32, i32
  }
  func.func @transform_4(%arg0: i32) -> (i32, i32) {
    %c0_i32 = arith.constant 0 : i32
    %c0_i32_0 = arith.constant 0 : i32
    %c0_i32_1 = arith.constant 0 : i32
    return %c0_i32, %c0_i32_0 : i32, i32
  }
  func.func @transform_5(%arg0: i32) -> (i32, i32) {
    %c0_i32 = arith.constant 0 : i32
    %c0_i32_0 = arith.constant 0 : i32
    %c0_i32_1 = arith.constant 0 : i32
    return %c0_i32, %c0_i32_0 : i32, i32
  }
  func.func @transform_6(%arg0: i32) -> (i32, i32) {
    %c0_i32 = arith.constant 0 : i32
    %c0_i32_0 = arith.constant 0 : i32
    %c0_i32_1 = arith.constant 0 : i32
    return %c0_i32, %c0_i32_0 : i32, i32
  }
  func.func @transform_7(%arg0: i32) -> (i32, i32) {
    %c0_i32 = arith.constant 0 : i32
    %c0_i32_0 = arith.constant 0 : i32
    %c0_i32_1 = arith.constant 0 : i32
    return %c0_i32, %c0_i32_0 : i32, i32
  }
  func.func @transform_8(%arg0: i32) -> (i32, i32) {
    %c0_i32 = arith.constant 0 : i32
    %c0_i32_0 = arith.constant 0 : i32
    %c0_i32_1 = arith.constant 0 : i32
    return %c0_i32, %c0_i32_0 : i32, i32
  }
  func.func @transform_9(%arg0: i32) -> (i32, i32) {
    %c0_i32 = arith.constant 0 : i32
    %c0_i32_0 = arith.constant 0 : i32
    %c0_i32_1 = arith.constant 0 : i32
    return %c0_i32, %c0_i32_0 : i32, i32
  }
}

</mosaic_0001>

<llo_original>
// kernel: forward.1
$region0: #{forward.1}
  #allocation0 [shape = 'u32[]', space=smem, size = 0x4, offset = 0x4, fixed_abs, tag = 'smem constant byte address 0x4 - core index']
  #allocation1 [shape = 'u32[144,128]{1,0:T(1,128)}', space=vmem, size = 0x12000, scoped, tag = 'internal scratch']
  #allocation2 [shape = 'f32[2,8,32]{2,1,0:T(8,128)}', space=vmem, size = 0x2000, scoped, tag = 'scratch operand']
  #allocation3 [shape = 'f32[2,8,32]{2,1,0:T(8,128)}', space=vmem, size = 0x2000, scoped, tag = 'scratch operand']
  %s0 = inlined_call_operand.vmem [shape: f32[16,32], index: 0, kind: input, shape index: {}]
  %s1 = inlined_call_operand.vmem [shape: f32[32,64], index: 1, kind: input, shape index: {}]
  %s2 = inlined_call_operand.vmem [shape: f32[64,64], index: 2, kind: input, shape index: {}]
  %s3 = inlined_call_operand.vmem [shape: f32[1,64], index: 3, kind: input, shape index: {}]
  %s4 = inlined_call_operand.vmem [shape: f32[64,64], index: 4, kind: input, shape index: {}]
  %s5 = inlined_call_operand.vmem [shape: f32[64,64], index: 5, kind: input, shape index: {}]
  %s6 = inlined_call_operand.vmem [shape: f32[1,64], index: 6, kind: input, shape index: {}]
  %s7 = inlined_call_operand.vmem [shape: f32[64,128], index: 7, kind: input, shape index: {}]
  %s8 = inlined_call_operand.vmem [shape: f32[1,128], index: 8, kind: input, shape index: {}]
  %s9 = inlined_call_operand.hbm [shape: f32[2,128], index: 9, kind: output, shape index: {}]
  %s10 = sld [smem:[#allocation0]]
  $region46: #{forward.1} parent=0
    _
  %s12 = ssub.s32 1, %s10
  %s13 = scalar_select 0, %s12, %s10
  $region1: #{forward.1} parent=0
    #allocation4 [shape = 'u8[1024]{0}', space=vmem, size = 0x400, scoped, tag = 'output window, operand 0, single buffered']
    #allocation5 [shape = 's32[1]{0}', space=sflag, size = 0x4, scoped, tag = 'scoped memory for forward.1']
    %14 = vsyncpa [#allocation5], 0
    // Predicated region
    $region2: #{forward.1} parent=1 // pred_check
      _
    $region3: #{forward.1} parent=1 // pred_check_branch
      %16 = sbr.rel (0) target = $region5
    $region4: #{forward.1} parent=1 // pred_region
      _
    $region5: #{forward.1} parent=1 // pred_fallthru
      _
    // Predicated region
    $region6: #{forward.1} parent=1 // pred_check
      _
    $region7: #{forward.1} parent=1 // pred_check_branch
      %18 = sbr.rel (0) target = $region9
    $region8: #{forward.1} parent=1 // pred_region
      _
    $region9: #{forward.1} parent=1 // pred_fallthru
      _
    // Predicated region
    $region10: #{forward.1} parent=1 // pred_check
      _
    $region11: #{forward.1} parent=1 // pred_check_branch
      %20 = sbr.rel (0) target = $region13
    $region12: #{forward.1} parent=1 // pred_region
      _
    $region13: #{forward.1} parent=1 // pred_fallthru
      _
    // Predicated region
    $region14: #{forward.1} parent=1 // pred_check
      _
    $region15: #{forward.1} parent=1 // pred_check_branch
      %22 = sbr.rel (0) target = $region17
    $region16: #{forward.1} parent=1 // pred_region
      _
    $region17: #{forward.1} parent=1 // pred_fallthru
      _
    // Predicated region
    $region18: #{forward.1} parent=1 // pred_check
      _
    $region19: #{forward.1} parent=1 // pred_check_branch
      %24 = sbr.rel (0) target = $region21
    $region20: #{forward.1} parent=1 // pred_region
      _
    $region21: #{forward.1} parent=1 // pred_fallthru
      _
    // Predicated region
    $region22: #{forward.1} parent=1 // pred_check
      _
    $region23: #{forward.1} parent=1 // pred_check_branch
      %26 = sbr.rel (0) target = $region25
    $region24: #{forward.1} parent=1 // pred_region
      _
    $region25: #{forward.1} parent=1 // pred_fallthru
      _
    // Predicated region
    $region26: #{forward.1} parent=1 // pred_check
      _
    $region27: #{forward.1} parent=1 // pred_check_branch
      %28 = sbr.rel (0) target = $region29
    $region28: #{forward.1} parent=1 // pred_region
      _
    $region29: #{forward.1} parent=1 // pred_fallthru
      _
    // Predicated region
    $region30: #{forward.1} parent=1 // pred_check
      _
    $region31: #{forward.1} parent=1 // pred_check_branch
      %30 = sbr.rel (0) target = $region33
    $region32: #{forward.1} parent=1 // pred_region
      _
    $region33: #{forward.1} parent=1 // pred_fallthru
      _
    // Predicated region
    $region34: #{forward.1} parent=1 // pred_check
      _
    $region35: #{forward.1} parent=1 // pred_check_branch
      %32 = sbr.rel (0) target = $region37
    $region36: #{forward.1} parent=1 // pred_region
      _
    $region37: #{forward.1} parent=1 // pred_fallthru
      _
    %v33 = vld [vmem:[%s0] sm:$0xff]
    %v34 = vld [vmem:[%s0 + $0x8] sm:$0xff]
    %v35 = vld [vmem:[%s1] sm:$0xff]
    %v36 = vld [vmem:[%s1 + $0x8] sm:$0xff]
    %v37 = vld [vmem:[%s1 + $0x10] sm:$0xff]
    %v38 = vld [vmem:[%s1 + $0x18] sm:$0xff]
    %v39 = vld [vmem:[%s3] sm:$0x1]
    %v41 = vlaneseq
    %v42 = vshrl.u32 %v41, 7
    %v43 = vsub.s32 0, %v42
    %v44 = vrot.slane %v39, %v43
    %vm46 = vcmask 261120
    %v48 = vsel %vm46, %v33, 0
    %v51 = vsel %vm46, %v34, 0
    %53 = vmatprep.subr.mxu0 0.0
    %54 = vmatpush1.msra.mxu0 %v35
    %55 = vmatprep.subr.mxu0 0.0
    %56 = vmatpush1.msra.mxu0 %v36
    %57 = vmatprep.subr.mxu0 0.0
    %58 = vmatpush1.msra.mxu0 %v37
    %59 = vmatprep.subr.mxu0 0.0
    %60 = vmatpush1.msra.mxu0 %v38
    %61 = vmatprep.subr.mxu0 0.0
    %62 = vmatpush1.msra.mxu0 0.0
    %63 = vmatprep.subr.mxu0 0.0
    %64 = vmatpush1.msra.mxu0 0.0
    %65 = vmatprep.subr.mxu0 0.0
    %66 = vmatpush1.msra.mxu0 0.0
    %67 = vmatprep.subr.mxu0 0.0
    %68 = vmatpush1.msra.mxu0 0.0
    %69 = vmatprep.subr.mxu0 0.0
    %70 = vmatpush1.msra.mxu0 0.0
    %71 = vmatprep.subr.mxu0 0.0
    %72 = vmatpush1.msra.mxu0 0.0
    %73 = vmatprep.subr.mxu0 0.0
    %74 = vmatpush1.msra.mxu0 0.0
    %75 = vmatprep.subr.mxu0 0.0
    %76 = vmatpush1.msra.mxu0 0.0
    %77 = vmatprep.subr.mxu0 0.0
    %78 = vmatpush1.msra.mxu0 0.0
    %79 = vmatprep.subr.mxu0 0.0
    %80 = vmatpush1.msra.mxu0 0.0
    %81 = vmatprep.subr.mxu0 0.0
    %82 = vmatpush1.msra.mxu0 0.0
    %83 = vmatprep.subr.mxu0 0.0
    %84 = vmatpush1.msra.mxu0 0.0
    %85 = vmatprep.subr.mxu0 0.0
    %86 = vmatpush1.msra.mxu0 0.0
    %87 = vmatprep.subr.mxu0 0.0
    %88 = vmatpush1.msra.mxu0 0.0
    %89 = vmatprep.subr.mxu0 0.0
    %90 = vmatpush1.msra.mxu0 0.0
    %91 = vmatprep.subr.mxu0 0.0
    %92 = vmatpush1.msra.mxu0 0.0
    %93 = vmatprep.subr.mxu0 0.0
    %94 = vmatpush1.msra.mxu0 0.0
    %95 = vmatprep.subr.mxu0 0.0
    %96 = vmatpush1.msra.mxu0 0.0
    %97 = vmatprep.subr.mxu0 0.0
    %98 = vmatpush1.msra.mxu0 0.0
    %99 = vmatprep.subr.mxu0 0.0
    %100 = vmatpush1.msra.mxu0 0.0
    %101 = vmatprep.subr.mxu0 0.0
    %102 = vmatpush1.msra.mxu0 0.0
    %103 = vmatprep.subr.mxu0 0.0
    %104 = vmatpush1.msra.mxu0 0.0
    %105 = vmatprep.subr.mxu0 0.0
    %106 = vmatpush1.msra.mxu0 0.0
    %107 = vmatprep.subr.mxu0 0.0
    %108 = vmatpush1.msra.mxu0 0.0
    %109 = vmatprep.subr.mxu0 0.0
    %110 = vmatpush1.msra.mxu0 0.0
    %111 = vmatprep.subr.mxu0 0.0
    %112 = vmatpush1.msra.mxu0 0.0
    %113 = vmatprep.subr.mxu0 0.0
    %114 = vmatpush1.msra.mxu0 0.0
    %115 = vmatprep.subr.mxu0 0.0
    %116 = vmatpush1.msra.mxu0 0.0
    %117 = vmatprep.mubr.f32.mxu0 0.0
    %118 = vmatmul.mubr.f32.gmra.mrb[0].mxu0 %v48
    %v119 = vpop.f32.mrb[0].mxu0
    %v120 = vadd.f32 %v44, %v119
    %v121 = vpop.f32.mrb[0].mxu0
    %122 = vmatprep.mubr.f32.mxu0 0.0
    %123 = vmatmul.mubr.f32.gmra.mrb[0].mxu0 %v51
    %v124 = vpop.f32.mrb[0].mxu0
    %v125 = vadd.f32 %v44, %v124
    %v126 = vpop.f32.mrb[0].mxu0
    %127 = vdwg.mxu0
    %v128 = vld [vmem:[%s2] sm:$0xff]
    %v129 = vld [vmem:[%s2 + $0x8] sm:$0xff]
    %v130 = vld [vmem:[%s2 + $0x10] sm:$0xff]
    %v131 = vld [vmem:[%s2 + $0x18] sm:$0xff]
    %v132 = vld [vmem:[%s2 + $0x20] sm:$0xff]
    %v133 = vld [vmem:[%s2 + $0x28] sm:$0xff]
    %v134 = vld [vmem:[%s2 + $0x30] sm:$0xff]
    %v135 = vld [vmem:[%s2 + $0x38] sm:$0xff]
    %v138 = vrot.slane %v125, 7
    %vm139 = vcmask 1041409
    %v140 = vsel %vm139, %v138, %v120
    %v142 = vrot.slane %v120, 7
    %v143 = vrot.slane %v125, 6
    %v144 = vsel %vm139, %v143, %v142
    %v146 = vsel %vm46, %v140, %v144
    %vm147 = vcmask 523264
    %v149 = vsel %vm147, 0.0, 0
    %151 = vmatprep.subr.mxu0 0.0
    %152 = vmatpush1.msra.mxu0 %v128
    %153 = vmatprep.subr.mxu0 0.0
    %154 = vmatpush1.msra.mxu0 %v129
    %155 = vmatprep.subr.mxu0 0.0
    %156 = vmatpush1.msra.mxu0 %v130
    %157 = vmatprep.subr.mxu0 0.0
    %158 = vmatpush1.msra.mxu0 %v131
    %159 = vmatprep.subr.mxu0 0.0
    %160 = vmatpush1.msra.mxu0 %v132
    %161 = vmatprep.subr.mxu0 0.0
    %162 = vmatpush1.msra.mxu0 %v133
    %163 = vmatprep.subr.mxu0 0.0
    %164 = vmatpush1.msra.mxu0 %v134
    %165 = vmatprep.subr.mxu0 0.0
    %166 = vmatpush1.msra.mxu0 %v135
    %167 = vmatprep.subr.mxu0 0.0
    %168 = vmatpush1.msra.mxu0 0.0
    %169 = vmatprep.subr.mxu0 0.0
    %170 = vmatpush1.msra.mxu0 0.0
    %171 = vmatprep.subr.mxu0 0.0
    %172 = vmatpush1.msra.mxu0 0.0
    %173 = vmatprep.subr.mxu0 0.0
    %174 = vmatpush1.msra.mxu0 0.0
    %175 = vmatprep.subr.mxu0 0.0
    %176 = vmatpush1.msra.mxu0 0.0
    %177 = vmatprep.subr.mxu0 0.0
    %178 = vmatpush1.msra.mxu0 0.0
    %179 = vmatprep.subr.mxu0 0.0
    %180 = vmatpush1.msra.mxu0 0.0
    %181 = vmatprep.subr.mxu0 0.0
    %182 = vmatpush1.msra.mxu0 0.0
    %183 = vmatprep.subr.mxu0 0.0
    %184 = vmatpush1.msra.mxu0 0.0
    %185 = vmatprep.subr.mxu0 0.0
    %186 = vmatpush1.msra.mxu0 0.0
    %187 = vmatprep.subr.mxu0 0.0
    %188 = vmatpush1.msra.mxu0 0.0
    %189 = vmatprep.subr.mxu0 0.0
    %190 = vmatpush1.msra.mxu0 0.0
    %191 = vmatprep.subr.mxu0 0.0
    %192 = vmatpush1.msra.mxu0 0.0
    %193 = vmatprep.subr.mxu0 0.0
    %194 = vmatpush1.msra.mxu0 0.0
    %195 = vmatprep.subr.mxu0 0.0
    %196 = vmatpush1.msra.mxu0 0.0
    %197 = vmatprep.subr.mxu0 0.0
    %198 = vmatpush1.msra.mxu0 0.0
    %199 = vmatprep.subr.mxu0 0.0
    %200 = vmatpush1.msra.mxu0 0.0
    %201 = vmatprep.subr.mxu0 0.0
    %202 = vmatpush1.msra.mxu0 0.0
    %203 = vmatprep.subr.mxu0 0.0
    %204 = vmatpush1.msra.mxu0 0.0
    %205 = vmatprep.subr.mxu0 0.0
    %206 = vmatpush1.msra.mxu0 0.0
    %207 = vmatprep.subr.mxu0 0.0
    %208 = vmatpush1.msra.mxu0 0.0
    %209 = vmatprep.subr.mxu0 0.0
    %210 = vmatpush1.msra.mxu0 0.0
    %211 = vmatprep.subr.mxu0 0.0
    %212 = vmatpush1.msra.mxu0 0.0
    %213 = vmatprep.subr.mxu0 0.0
    %214 = vmatpush1.msra.mxu0 0.0
    %215 = vmatprep.mubr.f32.mxu0 0.0
    %216 = vmatmul.mubr.f32.gmra.mrb[0].mxu0 %v149
    %v217 = vpop.f32.mrb[0].mxu0
    %v218 = vadd.f32 0.0, %v217
    %v219 = vpop.f32.mrb[0].mxu0
    %220 = vdwg.mxu0
    %v221 = vadd.f32 %v146, %v218
    %v222 = vtanh.pop %v221
    %v225 = vunpack.c.l.s4 1966171168
    %v226 = vunpack.c.0.s8 %v225
    %v227 = vlaneseq
    %v228 = vshrl.u32 %v227, 7
    %v229 = vsub.s32 %v226, %v228
    %v230 = vrot.slane %v222, %v229
    %v231 = vcombine.high %v230, %v230
    %v233 = vunpack.c.l.s4 1966171168
    %v234 = vunpack.c.0.s8 %v233
    %v235 = vlaneseq
    %v236 = vshrl.u32 %v235, 7
    %v237 = vsub.s32 %v234, %v236
    %v238 = vrot.slane %v230, %v237
    %v240 = vunpack.c.l.s4 1966171168
    %v241 = vunpack.c.0.s8 %v240
    %v242 = vlaneseq
    %v243 = vshrl.u32 %v242, 7
    %v244 = vsub.s32 %v241, %v243
    %v245 = vrot.slane %v231, %v244
    %vm248 = vcmask 253952
    %249 = vst.msk [vmem:[#allocation2] sm:$0x1] %vm248, %v238
    %250 = vst.msk [vmem:[#allocation2 + $0x8] sm:$0x1] %vm248, %v245
    %v251 = vlaneseq
    %v252 = vshrl.u32 %v251, 7
    %v253 = vsub.s32 0, %v252
    %v254 = vrot.slane %v238, %v253
    %v255 = vlaneseq
    %v256 = vshrl.u32 %v255, 7
    %v257 = vsub.s32 0, %v256
    %v258 = vrot.slane %v245, %v257
    %259 = vrot.lane.b32.xlu0 %v254, 96
    %v260 = vpop.permute.xlu0 %259
    %261 = vrot.lane.b32.xlu0 %v258, 96
    %v262 = vpop.permute.xlu0 %261
    %265 = vst.msk [vmem:[#allocation3 + $0x7] sm:$0x1] %vm248, %v260
    %266 = vst.msk [vmem:[#allocation3 + $0xf] sm:$0x1] %vm248, %v262
    %vm267 = vcmask 1042434
    %v268 = vsel %vm267, %v138, %v120
    %v270 = vrot.slane %v120, 5
    %v271 = vrot.slane %v125, 4
    %v272 = vsel %vm267, %v271, %v270
    %v274 = vsel %vm46, %v268, %v272
    %v275 = vsel %vm147, %v222, 0
    %277 = vmatprep.subr.mxu0 0.0
    %278 = vmatpush1.msra.mxu0 %v128
    %279 = vmatprep.subr.mxu0 0.0
    %280 = vmatpush1.msra.mxu0 %v129
    %281 = vmatprep.subr.mxu0 0.0
    %282 = vmatpush1.msra.mxu0 %v130
    %283 = vmatprep.subr.mxu0 0.0
    %284 = vmatpush1.msra.mxu0 %v131
    %285 = vmatprep.subr.mxu0 0.0
    %286 = vmatpush1.msra.mxu0 %v132
    %287 = vmatprep.subr.mxu0 0.0
    %288 = vmatpush1.msra.mxu0 %v133
    %289 = vmatprep.subr.mxu0 0.0
    %290 = vmatpush1.msra.mxu0 %v134
    %291 = vmatprep.subr.mxu0 0.0
    %292 = vmatpush1.msra.mxu0 %v135
    %293 = vmatprep.subr.mxu0 0.0
    %294 = vmatpush1.msra.mxu0 0.0
    %295 = vmatprep.subr.mxu0 0.0
    %296 = vmatpush1.msra.mxu0 0.0
    %297 = vmatprep.subr.mxu0 0.0
    %298 = vmatpush1.msra.mxu0 0.0
    %299 = vmatprep.subr.mxu0 0.0
    %300 = vmatpush1.msra.mxu0 0.0
    %301 = vmatprep.subr.mxu0 0.0
    %302 = vmatpush1.msra.mxu0 0.0
    %303 = vmatprep.subr.mxu0 0.0
    %304 = vmatpush1.msra.mxu0 0.0
    %305 = vmatprep.subr.mxu0 0.0
    %306 = vmatpush1.msra.mxu0 0.0
    %307 = vmatprep.subr.mxu0 0.0
    %308 = vmatpush1.msra.mxu0 0.0
    %309 = vmatprep.subr.mxu0 0.0
    %310 = vmatpush1.msra.mxu0 0.0
    %311 = vmatprep.subr.mxu0 0.0
    %312 = vmatpush1.msra.mxu0 0.0
    %313 = vmatprep.subr.mxu0 0.0
    %314 = vmatpush1.msra.mxu0 0.0
    %315 = vmatprep.subr.mxu0 0.0
    %316 = vmatpush1.msra.mxu0 0.0
    %317 = vmatprep.subr.mxu0 0.0
    %318 = vmatpush1.msra.mxu0 0.0
    %319 = vmatprep.subr.mxu0 0.0
    %320 = vmatpush1.msra.mxu0 0.0
    %321 = vmatprep.subr.mxu0 0.0
    %322 = vmatpush1.msra.mxu0 0.0
    %323 = vmatprep.subr.mxu0 0.0
    %324 = vmatpush1.msra.mxu0 0.0
    %325 = vmatprep.subr.mxu0 0.0
    %326 = vmatpush1.msra.mxu0 0.0
    %327 = vmatprep.subr.mxu0 0.0
    %328 = vmatpush1.msra.mxu0 0.0
    %329 = vmatprep.subr.mxu0 0.0
    %330 = vmatpush1.msra.mxu0 0.0
    %331 = vmatprep.subr.mxu0 0.0
    %332 = vmatpush1.msra.mxu0 0.0
    %333 = vmatprep.subr.mxu0 0.0
    %334 = vmatpush1.msra.mxu0 0.0
    %335 = vmatprep.subr.mxu0 0.0
    %336 = vmatpush1.msra.mxu0 0.0
    %337 = vmatprep.subr.mxu0 0.0
    %338 = vmatpush1.msra.mxu0 0.0
    %339 = vmatprep.subr.mxu0 0.0
    %340 = vmatpush1.msra.mxu0 0.0
    %341 = vmatprep.mubr.f32.mxu0 0.0
    %342 = vmatmul.mubr.f32.gmra.mrb[0].mxu0 %v275
    %v343 = vpop.f32.mrb[0].mxu0
    %v344 = vadd.f32 0.0, %v343
    %v345 = vpop.f32.mrb[0].mxu0
    %346 = vdwg.mxu0
    %v348 = vrot.slane %v344, 7
    %v350 = vadd.f32 %v274, %v348
    %v351 = vtanh.pop %v350
    %v354 = vunpack.c.l.s4 1966171168
    %v355 = vunpack.c.0.s8 %v354
    %v356 = vlaneseq
    %v357 = vshrl.u32 %v356, 7
    %v358 = vsub.s32 %v355, %v357
    %v359 = vrot.slane %v351, %v358
    %v360 = vcombine.high %v359, %v359
    %v362 = vunpack.c.l.s4 1966171168
    %v363 = vunpack.c.0.s8 %v362
    %v364 = vlaneseq
    %v365 = vshrl.u32 %v364, 7
    %v366 = vsub.s32 %v363, %v365
    %v367 = vrot.slane %v359, %v366
    %v369 = vunpack.c.l.s4 1966171168
    %v370 = vunpack.c.0.s8 %v369
    %v371 = vlaneseq
    %v372 = vshrl.u32 %v371, 7
    %v373 = vsub.s32 %v370, %v372
    %v374 = vrot.slane %v360, %v373
    %v375 = vcombine.high %v367, %v367
    %378 = vst.msk [vmem:[#allocation2 + $0x1] sm:$0x1] %vm248, %v374
    %379 = vst.msk [vmem:[#allocation2 + $0x9] sm:$0x1] %vm248, %v375
    %v380 = vlaneseq
    %v381 = vshrl.u32 %v380, 7
    %v382 = vsub.s32 0, %v381
    %v383 = vrot.slane %v374, %v382
    %v384 = vlaneseq
    %v385 = vshrl.u32 %v384, 7
    %v386 = vsub.s32 0, %v385
    %v387 = vrot.slane %v375, %v386
    %388 = vrot.lane.b32.xlu0 %v383, 96
    %v389 = vpop.permute.xlu0 %388
    %390 = vrot.lane.b32.xlu0 %v387, 96
    %v391 = vpop.permute.xlu0 %390
    %394 = vst.msk [vmem:[#allocation3 + $0x6] sm:$0x1] %vm248, %v389
    %395 = vst.msk [vmem:[#allocation3 + $0xe] sm:$0x1] %vm248, %v391
    %vm396 = vcmask 1043459
    %v397 = vsel %vm396, %v138, %v120
    %v399 = vrot.slane %v120, 3
    %v400 = vrot.slane %v125, 2
    %v401 = vsel %vm396, %v400, %v399
    %v403 = vsel %vm46, %v397, %v401
    %v404 = vrot.slane %v351, 1
    %v405 = vsel %vm147, %v404, 0
    %407 = vmatprep.subr.mxu0 0.0
    %408 = vmatpush1.msra.mxu0 %v128
    %409 = vmatprep.subr.mxu0 0.0
    %410 = vmatpush1.msra.mxu0 %v129
    %411 = vmatprep.subr.mxu0 0.0
    %412 = vmatpush1.msra.mxu0 %v130
    %413 = vmatprep.subr.mxu0 0.0
    %414 = vmatpush1.msra.mxu0 %v131
    %415 = vmatprep.subr.mxu0 0.0
    %416 = vmatpush1.msra.mxu0 %v132
    %417 = vmatprep.subr.mxu0 0.0
    %418 = vmatpush1.msra.mxu0 %v133
    %419 = vmatprep.subr.mxu0 0.0
    %420 = vmatpush1.msra.mxu0 %v134
    %421 = vmatprep.subr.mxu0 0.0
    %422 = vmatpush1.msra.mxu0 %v135
    %423 = vmatprep.subr.mxu0 0.0
    %424 = vmatpush1.msra.mxu0 0.0
    %425 = vmatprep.subr.mxu0 0.0
    %426 = vmatpush1.msra.mxu0 0.0
    %427 = vmatprep.subr.mxu0 0.0
    %428 = vmatpush1.msra.mxu0 0.0
    %429 = vmatprep.subr.mxu0 0.0
    %430 = vmatpush1.msra.mxu0 0.0
    %431 = vmatprep.subr.mxu0 0.0
    %432 = vmatpush1.msra.mxu0 0.0
    %433 = vmatprep.subr.mxu0 0.0
    %434 = vmatpush1.msra.mxu0 0.0
    %435 = vmatprep.subr.mxu0 0.0
    %436 = vmatpush1.msra.mxu0 0.0
    %437 = vmatprep.subr.mxu0 0.0
    %438 = vmatpush1.msra.mxu0 0.0
    %439 = vmatprep.subr.mxu0 0.0
    %440 = vmatpush1.msra.mxu0 0.0
    %441 = vmatprep.subr.mxu0 0.0
    %442 = vmatpush1.msra.mxu0 0.0
    %443 = vmatprep.subr.mxu0 0.0
    %444 = vmatpush1.msra.mxu0 0.0
    %445 = vmatprep.subr.mxu0 0.0
    %446 = vmatpush1.msra.mxu0 0.0
    %447 = vmatprep.subr.mxu0 0.0
    %448 = vmatpush1.msra.mxu0 0.0
    %449 = vmatprep.subr.mxu0 0.0
    %450 = vmatpush1.msra.mxu0 0.0
    %451 = vmatprep.subr.mxu0 0.0
    %452 = vmatpush1.msra.mxu0 0.0
    %453 = vmatprep.subr.mxu0 0.0
    %454 = vmatpush1.msra.mxu0 0.0
    %455 = vmatprep.subr.mxu0 0.0
    %456 = vmatpush1.msra.mxu0 0.0
    %457 = vmatprep.subr.mxu0 0.0
    %458 = vmatpush1.msra.mxu0 0.0
    %459 = vmatprep.subr.mxu0 0.0
    %460 = vmatpush1.msra.mxu0 0.0
    %461 = vmatprep.subr.mxu0 0.0
    %462 = vmatpush1.msra.mxu0 0.0
    %463 = vmatprep.subr.mxu0 0.0
    %464 = vmatpush1.msra.mxu0 0.0
    %465 = vmatprep.subr.mxu0 0.0
    %466 = vmatpush1.msra.mxu0 0.0
    %467 = vmatprep.subr.mxu0 0.0
    %468 = vmatpush1.msra.mxu0 0.0
    %469 = vmatprep.subr.mxu0 0.0
    %470 = vmatpush1.msra.mxu0 0.0
    %471 = vmatprep.mubr.f32.mxu0 0.0
    %472 = vmatmul.mubr.f32.gmra.mrb[0].mxu0 %v405
    %v473 = vpop.f32.mrb[0].mxu0
    %v474 = vadd.f32 0.0, %v473
    %v475 = vpop.f32.mrb[0].mxu0
    %476 = vdwg.mxu0
    %v478 = vrot.slane %v474, 6
    %v480 = vadd.f32 %v403, %v478
    %v481 = vtanh.pop %v480
    %v484 = vunpack.c.l.s4 1966171168
    %v485 = vunpack.c.0.s8 %v484
    %v486 = vlaneseq
    %v487 = vshrl.u32 %v486, 7
    %v488 = vsub.s32 %v485, %v487
    %v489 = vrot.slane %v481, %v488
    %v490 = vcombine.high %v489, %v489
    %v492 = vunpack.c.l.s4 1966171168
    %v493 = vunpack.c.0.s8 %v492
    %v494 = vlaneseq
    %v495 = vshrl.u32 %v494, 7
    %v496 = vsub.s32 %v493, %v495
    %v497 = vrot.slane %v489, %v496
    %v499 = vunpack.c.l.s4 1966171168
    %v500 = vunpack.c.0.s8 %v499
    %v501 = vlaneseq
    %v502 = vshrl.u32 %v501, 7
    %v503 = vsub.s32 %v500, %v502
    %v504 = vrot.slane %v490, %v503
    %v505 = vcombine.high %v497, %v497
    %v506 = vcombine.high %v504, %v504
    %509 = vst.msk [vmem:[#allocation2 + $0x2] sm:$0x1] %vm248, %v505
    %510 = vst.msk [vmem:[#allocation2 + $0xa] sm:$0x1] %vm248, %v506
    %v511 = vlaneseq
    %v512 = vshrl.u32 %v511, 7
    %v513 = vsub.s32 0, %v512
    %v514 = vrot.slane %v505, %v513
    %v515 = vlaneseq
    %v516 = vshrl.u32 %v515, 7
    %v517 = vsub.s32 0, %v516
    %v518 = vrot.slane %v506, %v517
    %519 = vrot.lane.b32.xlu0 %v514, 96
    %v520 = vpop.permute.xlu0 %519
    %521 = vrot.lane.b32.xlu0 %v518, 96
    %v522 = vpop.permute.xlu0 %521
    %525 = vst.msk [vmem:[#allocation3 + $0x5] sm:$0x1] %vm248, %v520
    %526 = vst.msk [vmem:[#allocation3 + $0xd] sm:$0x1] %vm248, %v522
    %vm527 = vcmask 1044484
    %v528 = vsel %vm527, %v138, %v120
    %v530 = vrot.slane %v120, 1
    %v531 = vsel %vm527, %v125, %v530
    %v533 = vsel %vm46, %v528, %v531
    %v534 = vrot.slane %v481, 2
    %v535 = vsel %vm147, %v534, 0
    %537 = vmatprep.subr.mxu0 0.0
    %538 = vmatpush1.msra.mxu0 %v128
    %539 = vmatprep.subr.mxu0 0.0
    %540 = vmatpush1.msra.mxu0 %v129
    %541 = vmatprep.subr.mxu0 0.0
    %542 = vmatpush1.msra.mxu0 %v130
    %543 = vmatprep.subr.mxu0 0.0
    %544 = vmatpush1.msra.mxu0 %v131
    %545 = vmatprep.subr.mxu0 0.0
    %546 = vmatpush1.msra.mxu0 %v132
    %547 = vmatprep.subr.mxu0 0.0
    %548 = vmatpush1.msra.mxu0 %v133
    %549 = vmatprep.subr.mxu0 0.0
    %550 = vmatpush1.msra.mxu0 %v134
    %551 = vmatprep.subr.mxu0 0.0
    %552 = vmatpush1.msra.mxu0 %v135
    %553 = vmatprep.subr.mxu0 0.0
    %554 = vmatpush1.msra.mxu0 0.0
    %555 = vmatprep.subr.mxu0 0.0
    %556 = vmatpush1.msra.mxu0 0.0
    %557 = vmatprep.subr.mxu0 0.0
    %558 = vmatpush1.msra.mxu0 0.0
    %559 = vmatprep.subr.mxu0 0.0
    %560 = vmatpush1.msra.mxu0 0.0
    %561 = vmatprep.subr.mxu0 0.0
    %562 = vmatpush1.msra.mxu0 0.0
    %563 = vmatprep.subr.mxu0 0.0
    %564 = vmatpush1.msra.mxu0 0.0
    %565 = vmatprep.subr.mxu0 0.0
    %566 = vmatpush1.msra.mxu0 0.0
    %567 = vmatprep.subr.mxu0 0.0
    %568 = vmatpush1.msra.mxu0 0.0
    %569 = vmatprep.subr.mxu0 0.0
    %570 = vmatpush1.msra.mxu0 0.0
    %571 = vmatprep.subr.mxu0 0.0
    %572 = vmatpush1.msra.mxu0 0.0
    %573 = vmatprep.subr.mxu0 0.0
    %574 = vmatpush1.msra.mxu0 0.0
    %575 = vmatprep.subr.mxu0 0.0
    %576 = vmatpush1.msra.mxu0 0.0
    %577 = vmatprep.subr.mxu0 0.0
    %578 = vmatpush1.msra.mxu0 0.0
    %579 = vmatprep.subr.mxu0 0.0
    %580 = vmatpush1.msra.mxu0 0.0
    %581 = vmatprep.subr.mxu0 0.0
    %582 = vmatpush1.msra.mxu0 0.0
    %583 = vmatprep.subr.mxu0 0.0
    %584 = vmatpush1.msra.mxu0 0.0
    %585 = vmatprep.subr.mxu0 0.0
    %586 = vmatpush1.msra.mxu0 0.0
    %587 = vmatprep.subr.mxu0 0.0
    %588 = vmatpush1.msra.mxu0 0.0
    %589 = vmatprep.subr.mxu0 0.0
    %590 = vmatpush1.msra.mxu0 0.0
    %591 = vmatprep.subr.mxu0 0.0
    %592 = vmatpush1.msra.mxu0 0.0
    %593 = vmatprep.subr.mxu0 0.0
    %594 = vmatpush1.msra.mxu0 0.0
    %595 = vmatprep.subr.mxu0 0.0
    %596 = vmatpush1.msra.mxu0 0.0
    %597 = vmatprep.subr.mxu0 0.0
    %598 = vmatpush1.msra.mxu0 0.0
    %599 = vmatprep.subr.mxu0 0.0
    %600 = vmatpush1.msra.mxu0 0.0
    %601 = vmatprep.mubr.f32.mxu0 0.0
    %602 = vmatmul.mubr.f32.gmra.mrb[0].mxu0 %v535
    %v603 = vpop.f32.mrb[0].mxu0
    %v604 = vadd.f32 0.0, %v603
    %v605 = vpop.f32.mrb[0].mxu0
    %606 = vdwg.mxu0
    %v608 = vrot.slane %v604, 5
    %v610 = vadd.f32 %v533, %v608
    %v611 = vtanh.pop %v610
    %v613 = vcombine.high %v611, %v611
    %v615 = vunpack.c.l.s4 1966171168
    %v616 = vunpack.c.0.s8 %v615
    %v617 = vlaneseq
    %v618 = vshrl.u32 %v617, 7
    %v619 = vsub.s32 %v616, %v618
    %v620 = vrot.slane %v611, %v619
    %v622 = vunpack.c.l.s4 1966171168
    %v623 = vunpack.c.0.s8 %v622
    %v624 = vlaneseq
    %v625 = vshrl.u32 %v624, 7
    %v626 = vsub.s32 %v623, %v625
    %v627 = vrot.slane %v613, %v626
    %v628 = vcombine.high %v620, %v620
    %v630 = vunpack.c.l.s4 1966171168
    %v631 = vunpack.c.0.s8 %v630
    %v632 = vlaneseq
    %v633 = vshrl.u32 %v632, 7
    %v634 = vsub.s32 %v631, %v633
    %v635 = vrot.slane %v627, %v634
    %v637 = vunpack.c.l.s4 1966171168
    %v638 = vunpack.c.0.s8 %v637
    %v639 = vlaneseq
    %v640 = vshrl.u32 %v639, 7
    %v641 = vsub.s32 %v638, %v640
    %v642 = vrot.slane %v628, %v641
    %v643 = vcombine.high %v642, %v642
    %646 = vst.msk [vmem:[#allocation2 + $0x3] sm:$0x1] %vm248, %v643
    %647 = vst.msk [vmem:[#allocation2 + $0xb] sm:$0x1] %vm248, %v635
    %v648 = vlaneseq
    %v649 = vshrl.u32 %v648, 7
    %v650 = vsub.s32 0, %v649
    %v651 = vrot.slane %v643, %v650
    %v652 = vlaneseq
    %v653 = vshrl.u32 %v652, 7
    %v654 = vsub.s32 0, %v653
    %v655 = vrot.slane %v635, %v654
    %656 = vrot.lane.b32.xlu0 %v651, 96
    %v657 = vpop.permute.xlu0 %656
    %658 = vrot.lane.b32.xlu0 %v655, 96
    %v659 = vpop.permute.xlu0 %658
    %662 = vst.msk [vmem:[#allocation3 + $0x4] sm:$0x1] %vm248, %v657
    %663 = vst.msk [vmem:[#allocation3 + $0xc] sm:$0x1] %vm248, %v659
    %vm664 = vcmask 1045509
    %v665 = vsel %vm664, %v138, %v120
    %v667 = vsel %vm664, %v143, %v142
    %v669 = vsel %vm46, %v665, %v667
    %v670 = vrot.slane %v611, 3
    %v671 = vsel %vm147, %v670, 0
    %673 = vmatprep.subr.mxu0 0.0
    %674 = vmatpush1.msra.mxu0 %v128
    %675 = vmatprep.subr.mxu0 0.0
    %676 = vmatpush1.msra.mxu0 %v129
    %677 = vmatprep.subr.mxu0 0.0
    %678 = vmatpush1.msra.mxu0 %v130
    %679 = vmatprep.subr.mxu0 0.0
    %680 = vmatpush1.msra.mxu0 %v131
    %681 = vmatprep.subr.mxu0 0.0
    %682 = vmatpush1.msra.mxu0 %v132
    %683 = vmatprep.subr.mxu0 0.0
    %684 = vmatpush1.msra.mxu0 %v133
    %685 = vmatprep.subr.mxu0 0.0
    %686 = vmatpush1.msra.mxu0 %v134
    %687 = vmatprep.subr.mxu0 0.0
    %688 = vmatpush1.msra.mxu0 %v135
    %689 = vmatprep.subr.mxu0 0.0
    %690 = vmatpush1.msra.mxu0 0.0
    %691 = vmatprep.subr.mxu0 0.0
    %692 = vmatpush1.msra.mxu0 0.0
    %693 = vmatprep.subr.mxu0 0.0
    %694 = vmatpush1.msra.mxu0 0.0
    %695 = vmatprep.subr.mxu0 0.0
    %696 = vmatpush1.msra.mxu0 0.0
    %697 = vmatprep.subr.mxu0 0.0
    %698 = vmatpush1.msra.mxu0 0.0
    %699 = vmatprep.subr.mxu0 0.0
    %700 = vmatpush1.msra.mxu0 0.0
    %701 = vmatprep.subr.mxu0 0.0
    %702 = vmatpush1.msra.mxu0 0.0
    %703 = vmatprep.subr.mxu0 0.0
    %704 = vmatpush1.msra.mxu0 0.0
    %705 = vmatprep.subr.mxu0 0.0
    %706 = vmatpush1.msra.mxu0 0.0
    %707 = vmatprep.subr.mxu0 0.0
    %708 = vmatpush1.msra.mxu0 0.0
    %709 = vmatprep.subr.mxu0 0.0
    %710 = vmatpush1.msra.mxu0 0.0
    %711 = vmatprep.subr.mxu0 0.0
    %712 = vmatpush1.msra.mxu0 0.0
    %713 = vmatprep.subr.mxu0 0.0
    %714 = vmatpush1.msra.mxu0 0.0
    %715 = vmatprep.subr.mxu0 0.0
    %716 = vmatpush1.msra.mxu0 0.0
    %717 = vmatprep.subr.mxu0 0.0
    %718 = vmatpush1.msra.mxu0 0.0
    %719 = vmatprep.subr.mxu0 0.0
    %720 = vmatpush1.msra.mxu0 0.0
    %721 = vmatprep.subr.mxu0 0.0
    %722 = vmatpush1.msra.mxu0 0.0
    %723 = vmatprep.subr.mxu0 0.0
    %724 = vmatpush1.msra.mxu0 0.0
    %725 = vmatprep.subr.mxu0 0.0
    %726 = vmatpush1.msra.mxu0 0.0
    %727 = vmatprep.subr.mxu0 0.0
    %728 = vmatpush1.msra.mxu0 0.0
    %729 = vmatprep.subr.mxu0 0.0
    %730 = vmatpush1.msra.mxu0 0.0
    %731 = vmatprep.subr.mxu0 0.0
    %732 = vmatpush1.msra.mxu0 0.0
    %733 = vmatprep.subr.mxu0 0.0
    %734 = vmatpush1.msra.mxu0 0.0
    %735 = vmatprep.subr.mxu0 0.0
    %736 = vmatpush1.msra.mxu0 0.0
    %737 = vmatprep.mubr.f32.mxu0 0.0
    %738 = vmatmul.mubr.f32.gmra.mrb[0].mxu0 %v671
    %v739 = vpop.f32.mrb[0].mxu0
    %v740 = vadd.f32 0.0, %v739
    %v741 = vpop.f32.mrb[0].mxu0
    %742 = vdwg.mxu0
    %v744 = vrot.slane %v740, 4
    %v746 = vadd.f32 %v669, %v744
    %v747 = vtanh.pop %v746
    %v749 = vcombine.high %v747, %v747
    %v751 = vunpack.c.l.s4 1966171168
    %v752 = vunpack.c.0.s8 %v751
    %v753 = vlaneseq
    %v754 = vshrl.u32 %v753, 7
    %v755 = vsub.s32 %v752, %v754
    %v756 = vrot.slane %v749, %v755
    %v757 = vcombine.high %v756, %v756
    %v759 = vunpack.c.l.s4 1966171168
    %v760 = vunpack.c.0.s8 %v759
    %v761 = vlaneseq
    %v762 = vshrl.u32 %v761, 7
    %v763 = vsub.s32 %v760, %v762
    %v764 = vrot.slane %v756, %v763
    %v766 = vunpack.c.l.s4 1966171168
    %v767 = vunpack.c.0.s8 %v766
    %v768 = vlaneseq
    %v769 = vshrl.u32 %v768, 7
    %v770 = vsub.s32 %v767, %v769
    %v771 = vrot.slane %v757, %v770
    %774 = vst.msk [vmem:[#allocation2 + $0x4] sm:$0x1] %vm248, %v764
    %775 = vst.msk [vmem:[#allocation2 + $0xc] sm:$0x1] %vm248, %v771
    %v776 = vlaneseq
    %v777 = vshrl.u32 %v776, 7
    %v778 = vsub.s32 0, %v777
    %v779 = vrot.slane %v764, %v778
    %v780 = vlaneseq
    %v781 = vshrl.u32 %v780, 7
    %v782 = vsub.s32 0, %v781
    %v783 = vrot.slane %v771, %v782
    %784 = vrot.lane.b32.xlu0 %v779, 96
    %v785 = vpop.permute.xlu0 %784
    %786 = vrot.lane.b32.xlu0 %v783, 96
    %v787 = vpop.permute.xlu0 %786
    %790 = vst.msk [vmem:[#allocation3 + $0x3] sm:$0x1] %vm248, %v785
    %791 = vst.msk [vmem:[#allocation3 + $0xb] sm:$0x1] %vm248, %v787
    %vm792 = vcmask 1046534
    %v793 = vsel %vm792, %v138, %v120
    %v795 = vsel %vm792, %v271, %v270
    %v797 = vsel %vm46, %v793, %v795
    %v798 = vrot.slane %v747, 4
    %v799 = vsel %vm147, %v798, 0
    %801 = vmatprep.subr.mxu0 0.0
    %802 = vmatpush1.msra.mxu0 %v128
    %803 = vmatprep.subr.mxu0 0.0
    %804 = vmatpush1.msra.mxu0 %v129
    %805 = vmatprep.subr.mxu0 0.0
    %806 = vmatpush1.msra.mxu0 %v130
    %807 = vmatprep.subr.mxu0 0.0
    %808 = vmatpush1.msra.mxu0 %v131
    %809 = vmatprep.subr.mxu0 0.0
    %810 = vmatpush1.msra.mxu0 %v132
    %811 = vmatprep.subr.mxu0 0.0
    %812 = vmatpush1.msra.mxu0 %v133
    %813 = vmatprep.subr.mxu0 0.0
    %814 = vmatpush1.msra.mxu0 %v134
    %815 = vmatprep.subr.mxu0 0.0
    %816 = vmatpush1.msra.mxu0 %v135
    %817 = vmatprep.subr.mxu0 0.0
    %818 = vmatpush1.msra.mxu0 0.0
    %819 = vmatprep.subr.mxu0 0.0
    %820 = vmatpush1.msra.mxu0 0.0
    %821 = vmatprep.subr.mxu0 0.0
    %822 = vmatpush1.msra.mxu0 0.0
    %823 = vmatprep.subr.mxu0 0.0
    %824 = vmatpush1.msra.mxu0 0.0
    %825 = vmatprep.subr.mxu0 0.0
    %826 = vmatpush1.msra.mxu0 0.0
    %827 = vmatprep.subr.mxu0 0.0
    %828 = vmatpush1.msra.mxu0 0.0
    %829 = vmatprep.subr.mxu0 0.0
    %830 = vmatpush1.msra.mxu0 0.0
    %831 = vmatprep.subr.mxu0 0.0
    %832 = vmatpush1.msra.mxu0 0.0
    %833 = vmatprep.subr.mxu0 0.0
    %834 = vmatpush1.msra.mxu0 0.0
    %835 = vmatprep.subr.mxu0 0.0
    %836 = vmatpush1.msra.mxu0 0.0
    %837 = vmatprep.subr.mxu0 0.0
    %838 = vmatpush1.msra.mxu0 0.0
    %839 = vmatprep.subr.mxu0 0.0
    %840 = vmatpush1.msra.mxu0 0.0
    %841 = vmatprep.subr.mxu0 0.0
    %842 = vmatpush1.msra.mxu0 0.0
    %843 = vmatprep.subr.mxu0 0.0
    %844 = vmatpush1.msra.mxu0 0.0
    %845 = vmatprep.subr.mxu0 0.0
    %846 = vmatpush1.msra.mxu0 0.0
    %847 = vmatprep.subr.mxu0 0.0
    %848 = vmatpush1.msra.mxu0 0.0
    %849 = vmatprep.subr.mxu0 0.0
    %850 = vmatpush1.msra.mxu0 0.0
    %851 = vmatprep.subr.mxu0 0.0
    %852 = vmatpush1.msra.mxu0 0.0
    %853 = vmatprep.subr.mxu0 0.0
    %854 = vmatpush1.msra.mxu0 0.0
    %855 = vmatprep.subr.mxu0 0.0
    %856 = vmatpush1.msra.mxu0 0.0
    %857 = vmatprep.subr.mxu0 0.0
    %858 = vmatpush1.msra.mxu0 0.0
    %859 = vmatprep.subr.mxu0 0.0
    %860 = vmatpush1.msra.mxu0 0.0
    %861 = vmatprep.subr.mxu0 0.0
    %862 = vmatpush1.msra.mxu0 0.0
    %863 = vmatprep.subr.mxu0 0.0
    %864 = vmatpush1.msra.mxu0 0.0
    %865 = vmatprep.mubr.f32.mxu0 0.0
    %866 = vmatmul.mubr.f32.gmra.mrb[0].mxu0 %v799
    %v867 = vpop.f32.mrb[0].mxu0
    %v868 = vadd.f32 0.0, %v867
    %v869 = vpop.f32.mrb[0].mxu0
    %870 = vdwg.mxu0
    %v872 = vrot.slane %v868, 3
    %v874 = vadd.f32 %v797, %v872
    %v875 = vtanh.pop %v874
    %v877 = vcombine.high %v875, %v875
    %v879 = vunpack.c.l.s4 1966171168
    %v880 = vunpack.c.0.s8 %v879
    %v881 = vlaneseq
    %v882 = vshrl.u32 %v881, 7
    %v883 = vsub.s32 %v880, %v882
    %v884 = vrot.slane %v877, %v883
    %v885 = vcombine.high %v884, %v884
    %v887 = vunpack.c.l.s4 1966171168
    %v888 = vunpack.c.0.s8 %v887
    %v889 = vlaneseq
    %v890 = vshrl.u32 %v889, 7
    %v891 = vsub.s32 %v888, %v890
    %v892 = vrot.slane %v884, %v891
    %v894 = vunpack.c.l.s4 1966171168
    %v895 = vunpack.c.0.s8 %v894
    %v896 = vlaneseq
    %v897 = vshrl.u32 %v896, 7
    %v898 = vsub.s32 %v895, %v897
    %v899 = vrot.slane %v885, %v898
    %v900 = vcombine.high %v892, %v892
    %903 = vst.msk [vmem:[#allocation2 + $0x5] sm:$0x1] %vm248, %v899
    %904 = vst.msk [vmem:[#allocation2 + $0xd] sm:$0x1] %vm248, %v900
    %v905 = vlaneseq
    %v906 = vshrl.u32 %v905, 7
    %v907 = vsub.s32 0, %v906
    %v908 = vrot.slane %v899, %v907
    %v909 = vlaneseq
    %v910 = vshrl.u32 %v909, 7
    %v911 = vsub.s32 0, %v910
    %v912 = vrot.slane %v900, %v911
    %913 = vrot.lane.b32.xlu0 %v908, 96
    %v914 = vpop.permute.xlu0 %913
    %915 = vrot.lane.b32.xlu0 %v912, 96
    %v916 = vpop.permute.xlu0 %915
    %919 = vst.msk [vmem:[#allocation3 + $0x2] sm:$0x1] %vm248, %v914
    %920 = vst.msk [vmem:[#allocation3 + $0xa] sm:$0x1] %vm248, %v916
    %vm921 = vcmask 1047559
    %v922 = vsel %vm921, %v138, %v120
    %v924 = vsel %vm921, %v400, %v399
    %v926 = vsel %vm46, %v922, %v924
    %v927 = vrot.slane %v875, 5
    %v928 = vsel %vm147, %v927, 0
    %930 = vmatprep.subr.mxu0 0.0
    %931 = vmatpush1.msra.mxu0 %v128
    %932 = vmatprep.subr.mxu0 0.0
    %933 = vmatpush1.msra.mxu0 %v129
    %934 = vmatprep.subr.mxu0 0.0
    %935 = vmatpush1.msra.mxu0 %v130
    %936 = vmatprep.subr.mxu0 0.0
    %937 = vmatpush1.msra.mxu0 %v131
    %938 = vmatprep.subr.mxu0 0.0
    %939 = vmatpush1.msra.mxu0 %v132
    %940 = vmatprep.subr.mxu0 0.0
    %941 = vmatpush1.msra.mxu0 %v133
    %942 = vmatprep.subr.mxu0 0.0
    %943 = vmatpush1.msra.mxu0 %v134
    %944 = vmatprep.subr.mxu0 0.0
    %945 = vmatpush1.msra.mxu0 %v135
    %946 = vmatprep.subr.mxu0 0.0
    %947 = vmatpush1.msra.mxu0 0.0
    %948 = vmatprep.subr.mxu0 0.0
    %949 = vmatpush1.msra.mxu0 0.0
    %950 = vmatprep.subr.mxu0 0.0
    %951 = vmatpush1.msra.mxu0 0.0
    %952 = vmatprep.subr.mxu0 0.0
    %953 = vmatpush1.msra.mxu0 0.0
    %954 = vmatprep.subr.mxu0 0.0
    %955 = vmatpush1.msra.mxu0 0.0
    %956 = vmatprep.subr.mxu0 0.0
    %957 = vmatpush1.msra.mxu0 0.0
    %958 = vmatprep.subr.mxu0 0.0
    %959 = vmatpush1.msra.mxu0 0.0
    %960 = vmatprep.subr.mxu0 0.0
    %961 = vmatpush1.msra.mxu0 0.0
    %962 = vmatprep.subr.mxu0 0.0
    %963 = vmatpush1.msra.mxu0 0.0
    %964 = vmatprep.subr.mxu0 0.0
    %965 = vmatpush1.msra.mxu0 0.0
    %966 = vmatprep.subr.mxu0 0.0
    %967 = vmatpush1.msra.mxu0 0.0
    %968 = vmatprep.subr.mxu0 0.0
    %969 = vmatpush1.msra.mxu0 0.0
    %970 = vmatprep.subr.mxu0 0.0
    %971 = vmatpush1.msra.mxu0 0.0
    %972 = vmatprep.subr.mxu0 0.0
    %973 = vmatpush1.msra.mxu0 0.0
    %974 = vmatprep.subr.mxu0 0.0
    %975 = vmatpush1.msra.mxu0 0.0
    %976 = vmatprep.subr.mxu0 0.0
    %977 = vmatpush1.msra.mxu0 0.0
    %978 = vmatprep.subr.mxu0 0.0
    %979 = vmatpush1.msra.mxu0 0.0
    %980 = vmatprep.subr.mxu0 0.0
    %981 = vmatpush1.msra.mxu0 0.0
    %982 = vmatprep.subr.mxu0 0.0
    %983 = vmatpush1.msra.mxu0 0.0
    %984 = vmatprep.subr.mxu0 0.0
    %985 = vmatpush1.msra.mxu0 0.0
    %986 = vmatprep.subr.mxu0 0.0
    %987 = vmatpush1.msra.mxu0 0.0
    %988 = vmatprep.subr.mxu0 0.0
    %989 = vmatpush1.msra.mxu0 0.0
    %990 = vmatprep.subr.mxu0 0.0
    %991 = vmatpush1.msra.mxu0 0.0
    %992 = vmatprep.subr.mxu0 0.0
    %993 = vmatpush1.msra.mxu0 0.0
    %994 = vmatprep.mubr.f32.mxu0 0.0
    %995 = vmatmul.mubr.f32.gmra.mrb[0].mxu0 %v928
    %v996 = vpop.f32.mrb[0].mxu0
    %v997 = vadd.f32 0.0, %v996
    %v998 = vpop.f32.mrb[0].mxu0
    %999 = vdwg.mxu0
    %v1001 = vrot.slane %v997, 2
    %v1003 = vadd.f32 %v926, %v1001
    %v1004 = vtanh.pop %v1003
    %v1006 = vcombine.high %v1004, %v1004
    %v1008 = vunpack.c.l.s4 1966171168
    %v1009 = vunpack.c.0.s8 %v1008
    %v1010 = vlaneseq
    %v1011 = vshrl.u32 %v1010, 7
    %v1012 = vsub.s32 %v1009, %v1011
    %v1013 = vrot.slane %v1006, %v1012
    %v1014 = vcombine.high %v1013, %v1013
    %v1016 = vunpack.c.l.s4 1966171168
    %v1017 = vunpack.c.0.s8 %v1016
    %v1018 = vlaneseq
    %v1019 = vshrl.u32 %v1018, 7
    %v1020 = vsub.s32 %v1017, %v1019
    %v1021 = vrot.slane %v1013, %v1020
    %v1023 = vunpack.c.l.s4 1966171168
    %v1024 = vunpack.c.0.s8 %v1023
    %v1025 = vlaneseq
    %v1026 = vshrl.u32 %v1025, 7
    %v1027 = vsub.s32 %v1024, %v1026
    %v1028 = vrot.slane %v1014, %v1027
    %v1029 = vcombine.high %v1021, %v1021
    %v1030 = vcombine.high %v1028, %v1028
    %1033 = vst.msk [vmem:[#allocation2 + $0x6] sm:$0x1] %vm248, %v1029
    %1034 = vst.msk [vmem:[#allocation2 + $0xe] sm:$0x1] %vm248, %v1030
    %v1035 = vlaneseq
    %v1036 = vshrl.u32 %v1035, 7
    %v1037 = vsub.s32 0, %v1036
    %v1038 = vrot.slane %v1029, %v1037
    %v1039 = vlaneseq
    %v1040 = vshrl.u32 %v1039, 7
    %v1041 = vsub.s32 0, %v1040
    %v1042 = vrot.slane %v1030, %v1041
    %1043 = vrot.lane.b32.xlu0 %v1038, 96
    %v1044 = vpop.permute.xlu0 %1043
    %1045 = vrot.lane.b32.xlu0 %v1042, 96
    %v1046 = vpop.permute.xlu0 %1045
    %1049 = vst.msk [vmem:[#allocation3 + $0x1] sm:$0x1] %vm248, %v1044
    %1050 = vst.msk [vmem:[#allocation3 + $0x9] sm:$0x1] %vm248, %v1046
    %v1055 = vsel %vm46, %v120, %v530
    %v1056 = vsel %vm46, %v138, %v125
    %v1057 = vrot.slane %v1004, 6
    %v1058 = vsel %vm147, %v1057, 0
    %1060 = vmatprep.subr.mxu0 0.0
    %1061 = vmatpush1.msra.mxu0 %v128
    %1062 = vmatprep.subr.mxu0 0.0
    %1063 = vmatpush1.msra.mxu0 %v129
    %1064 = vmatprep.subr.mxu0 0.0
    %1065 = vmatpush1.msra.mxu0 %v130
    %1066 = vmatprep.subr.mxu0 0.0
    %1067 = vmatpush1.msra.mxu0 %v131
    %1068 = vmatprep.subr.mxu0 0.0
    %1069 = vmatpush1.msra.mxu0 %v132
    %1070 = vmatprep.subr.mxu0 0.0
    %1071 = vmatpush1.msra.mxu0 %v133
    %1072 = vmatprep.subr.mxu0 0.0
    %1073 = vmatpush1.msra.mxu0 %v134
    %1074 = vmatprep.subr.mxu0 0.0
    %1075 = vmatpush1.msra.mxu0 %v135
    %1076 = vmatprep.subr.mxu0 0.0
    %1077 = vmatpush1.msra.mxu0 0.0
    %1078 = vmatprep.subr.mxu0 0.0
    %1079 = vmatpush1.msra.mxu0 0.0
    %1080 = vmatprep.subr.mxu0 0.0
    %1081 = vmatpush1.msra.mxu0 0.0
    %1082 = vmatprep.subr.mxu0 0.0
    %1083 = vmatpush1.msra.mxu0 0.0
    %1084 = vmatprep.subr.mxu0 0.0
    %1085 = vmatpush1.msra.mxu0 0.0
    %1086 = vmatprep.subr.mxu0 0.0
    %1087 = vmatpush1.msra.mxu0 0.0
    %1088 = vmatprep.subr.mxu0 0.0
    %1089 = vmatpush1.msra.mxu0 0.0
    %1090 = vmatprep.subr.mxu0 0.0
    %1091 = vmatpush1.msra.mxu0 0.0
    %1092 = vmatprep.subr.mxu0 0.0
    %1093 = vmatpush1.msra.mxu0 0.0
    %1094 = vmatprep.subr.mxu0 0.0
    %1095 = vmatpush1.msra.mxu0 0.0
    %1096 = vmatprep.subr.mxu0 0.0
    %1097 = vmatpush1.msra.mxu0 0.0
    %1098 = vmatprep.subr.mxu0 0.0
    %1099 = vmatpush1.msra.mxu0 0.0
    %1100 = vmatprep.subr.mxu0 0.0
    %1101 = vmatpush1.msra.mxu0 0.0
    %1102 = vmatprep.subr.mxu0 0.0
    %1103 = vmatpush1.msra.mxu0 0.0
    %1104 = vmatprep.subr.mxu0 0.0
    %1105 = vmatpush1.msra.mxu0 0.0
    %1106 = vmatprep.subr.mxu0 0.0
    %1107 = vmatpush1.msra.mxu0 0.0
    %1108 = vmatprep.subr.mxu0 0.0
    %1109 = vmatpush1.msra.mxu0 0.0
    %1110 = vmatprep.subr.mxu0 0.0
    %1111 = vmatpush1.msra.mxu0 0.0
    %1112 = vmatprep.subr.mxu0 0.0
    %1113 = vmatpush1.msra.mxu0 0.0
    %1114 = vmatprep.subr.mxu0 0.0
    %1115 = vmatpush1.msra.mxu0 0.0
    %1116 = vmatprep.subr.mxu0 0.0
    %1117 = vmatpush1.msra.mxu0 0.0
    %1118 = vmatprep.subr.mxu0 0.0
    %1119 = vmatpush1.msra.mxu0 0.0
    %1120 = vmatprep.subr.mxu0 0.0
    %1121 = vmatpush1.msra.mxu0 0.0
    %1122 = vmatprep.subr.mxu0 0.0
    %1123 = vmatpush1.msra.mxu0 0.0
    %1124 = vmatprep.mubr.f32.mxu0 0.0
    %1125 = vmatmul.mubr.f32.gmra.mrb[0].mxu0 %v1058
    %v1126 = vpop.f32.mrb[0].mxu0
    %v1127 = vadd.f32 0.0, %v1126
    %v1128 = vpop.f32.mrb[0].mxu0
    %1129 = vdwg.mxu0
    %v1131 = vrot.slane %v1127, 1
    %v1133 = vadd.f32 %v1055, %v1131
    %v1134 = vadd.f32 %v1056, %v1131
    %v1135 = vtanh.pop %v1133
    %v1136 = vtanh.pop %v1134
    %v1139 = vcombine.high %v1135, %v1135
    %v1141 = vunpack.c.l.s4 1966171168
    %v1142 = vunpack.c.0.s8 %v1141
    %v1143 = vlaneseq
    %v1144 = vshrl.u32 %v1143, 7
    %v1145 = vsub.s32 %v1142, %v1144
    %v1146 = vrot.slane %v1139, %v1145
    %v1147 = vcombine.high %v1146, %v1146
    %v1149 = vunpack.c.l.s4 1966171168
    %v1150 = vunpack.c.0.s8 %v1149
    %v1151 = vlaneseq
    %v1152 = vshrl.u32 %v1151, 7
    %v1153 = vsub.s32 %v1150, %v1152
    %v1154 = vrot.slane %v1147, %v1153
    %v1155 = vcombine.high %v1154, %v1154
    %v1157 = vunpack.c.l.s4 1966171168
    %v1158 = vunpack.c.0.s8 %v1157
    %v1159 = vlaneseq
    %v1160 = vshrl.u32 %v1159, 7
    %v1161 = vsub.s32 %v1158, %v1160
    %v1162 = vrot.slane %v1136, %v1161
    %v1164 = vunpack.c.l.s4 1966171168
    %v1165 = vunpack.c.0.s8 %v1164
    %v1166 = vlaneseq
    %v1167 = vshrl.u32 %v1166, 7
    %v1168 = vsub.s32 %v1165, %v1167
    %v1169 = vrot.slane %v1162, %v1168
    %1172 = vst.msk [vmem:[#allocation2 + $0x7] sm:$0x1] %vm248, %v1155
    %1173 = vst.msk [vmem:[#allocation2 + $0xf] sm:$0x1] %vm248, %v1169
    %v1174 = vlaneseq
    %v1175 = vshrl.u32 %v1174, 7
    %v1176 = vsub.s32 0, %v1175
    %v1177 = vrot.slane %v1155, %v1176
    %v1178 = vlaneseq
    %v1179 = vshrl.u32 %v1178, 7
    %v1180 = vsub.s32 0, %v1179
    %v1181 = vrot.slane %v1169, %v1180
    %1182 = vrot.lane.b32.xlu0 %v1177, 96
    %v1183 = vpop.permute.xlu0 %1182
    %1184 = vrot.lane.b32.xlu0 %v1181, 96
    %v1185 = vpop.permute.xlu0 %1184
    %1188 = vst.msk [vmem:[#allocation3] sm:$0x1] %vm248, %v1183
    %1189 = vst.msk [vmem:[#allocation3 + $0x8] sm:$0x1] %vm248, %v1185
    %v1190 = vld [vmem:[#allocation2] sm:$0xff]
    %v1191 = vld [vmem:[#allocation2 + $0x8] sm:$0xff]
    %v1192 = vld [vmem:[#allocation3] sm:$0xff]
    %v1193 = vld [vmem:[#allocation3 + $0x8] sm:$0xff]
    %1196 = vrot.lane.b32.xlu0 %v1192, 32
    %v1197 = vpop.permute.xlu0 %1196
    %1198 = vrot.lane.b32.xlu0 %v1193, 32
    %v1199 = vpop.permute.xlu0 %1198
    %v1202 = vsel %vm46, %v1190, %v1197
    %v1203 = vsel %vm46, %v1191, %v1199
    %v1204 = vld [vmem:[%s4] sm:$0xff]
    %v1205 = vld [vmem:[%s4 + $0x8] sm:$0xff]
    %v1206 = vld [vmem:[%s4 + $0x10] sm:$0xff]
    %v1207 = vld [vmem:[%s4 + $0x18] sm:$0xff]
    %v1208 = vld [vmem:[%s4 + $0x20] sm:$0xff]
    %v1209 = vld [vmem:[%s4 + $0x28] sm:$0xff]
    %v1210 = vld [vmem:[%s4 + $0x30] sm:$0xff]
    %v1211 = vld [vmem:[%s4 + $0x38] sm:$0xff]
    %v1212 = vld [vmem:[%s6] sm:$0x1]
    %v1214 = vlaneseq
    %v1215 = vshrl.u32 %v1214, 7
    %v1216 = vsub.s32 0, %v1215
    %v1217 = vrot.slane %v1212, %v1216
    %v1220 = vsel %vm147, %v1202, 0
    %v1223 = vsel %vm147, %v1203, 0
    %1225 = vmatprep.subr.mxu0 0.0
    %1226 = vmatpush1.msra.mxu0 %v1204
    %1227 = vmatprep.subr.mxu0 0.0
    %1228 = vmatpush1.msra.mxu0 %v1205
    %1229 = vmatprep.subr.mxu0 0.0
    %1230 = vmatpush1.msra.mxu0 %v1206
    %1231 = vmatprep.subr.mxu0 0.0
    %1232 = vmatpush1.msra.mxu0 %v1207
    %1233 = vmatprep.subr.mxu0 0.0
    %1234 = vmatpush1.msra.mxu0 %v1208
    %1235 = vmatprep.subr.mxu0 0.0
    %1236 = vmatpush1.msra.mxu0 %v1209
    %1237 = vmatprep.subr.mxu0 0.0
    %1238 = vmatpush1.msra.mxu0 %v1210
    %1239 = vmatprep.subr.mxu0 0.0
    %1240 = vmatpush1.msra.mxu0 %v1211
    %1241 = vmatprep.subr.mxu0 0.0
    %1242 = vmatpush1.msra.mxu0 0.0
    %1243 = vmatprep.subr.mxu0 0.0
    %1244 = vmatpush1.msra.mxu0 0.0
    %1245 = vmatprep.subr.mxu0 0.0
    %1246 = vmatpush1.msra.mxu0 0.0
    %1247 = vmatprep.subr.mxu0 0.0
    %1248 = vmatpush1.msra.mxu0 0.0
    %1249 = vmatprep.subr.mxu0 0.0
    %1250 = vmatpush1.msra.mxu0 0.0
    %1251 = vmatprep.subr.mxu0 0.0
    %1252 = vmatpush1.msra.mxu0 0.0
    %1253 = vmatprep.subr.mxu0 0.0
    %1254 = vmatpush1.msra.mxu0 0.0
    %1255 = vmatprep.subr.mxu0 0.0
    %1256 = vmatpush1.msra.mxu0 0.0
    %1257 = vmatprep.subr.mxu0 0.0
    %1258 = vmatpush1.msra.mxu0 0.0
    %1259 = vmatprep.subr.mxu0 0.0
    %1260 = vmatpush1.msra.mxu0 0.0
    %1261 = vmatprep.subr.mxu0 0.0
    %1262 = vmatpush1.msra.mxu0 0.0
    %1263 = vmatprep.subr.mxu0 0.0
    %1264 = vmatpush1.msra.mxu0 0.0
    %1265 = vmatprep.subr.mxu0 0.0
    %1266 = vmatpush1.msra.mxu0 0.0
    %1267 = vmatprep.subr.mxu0 0.0
    %1268 = vmatpush1.msra.mxu0 0.0
    %1269 = vmatprep.subr.mxu0 0.0
    %1270 = vmatpush1.msra.mxu0 0.0
    %1271 = vmatprep.subr.mxu0 0.0
    %1272 = vmatpush1.msra.mxu0 0.0
    %1273 = vmatprep.subr.mxu0 0.0
    %1274 = vmatpush1.msra.mxu0 0.0
    %1275 = vmatprep.subr.mxu0 0.0
    %1276 = vmatpush1.msra.mxu0 0.0
    %1277 = vmatprep.subr.mxu0 0.0
    %1278 = vmatpush1.msra.mxu0 0.0
    %1279 = vmatprep.subr.mxu0 0.0
    %1280 = vmatpush1.msra.mxu0 0.0
    %1281 = vmatprep.subr.mxu0 0.0
    %1282 = vmatpush1.msra.mxu0 0.0
    %1283 = vmatprep.subr.mxu0 0.0
    %1284 = vmatpush1.msra.mxu0 0.0
    %1285 = vmatprep.subr.mxu0 0.0
    %1286 = vmatpush1.msra.mxu0 0.0
    %1287 = vmatprep.subr.mxu0 0.0
    %1288 = vmatpush1.msra.mxu0 0.0
    %1289 = vmatprep.mubr.f32.mxu0 0.0
    %1290 = vmatmul.mubr.f32.gmra.mrb[0].mxu0 %v1220
    %v1291 = vpop.f32.mrb[0].mxu0
    %v1292 = vadd.f32 %v1217, %v1291
    %v1293 = vpop.f32.mrb[0].mxu0
    %1294 = vmatprep.mubr.f32.mxu0 0.0
    %1295 = vmatmul.mubr.f32.gmra.mrb[0].mxu0 %v1223
    %v1296 = vpop.f32.mrb[0].mxu0
    %v1297 = vadd.f32 %v1217, %v1296
    %v1298 = vpop.f32.mrb[0].mxu0
    %1299 = vdwg.mxu0
    %v1300 = vld [vmem:[%s5] sm:$0xff]
    %v1301 = vld [vmem:[%s5 + $0x8] sm:$0xff]
    %v1302 = vld [vmem:[%s5 + $0x10] sm:$0xff]
    %v1303 = vld [vmem:[%s5 + $0x18] sm:$0xff]
    %v1304 = vld [vmem:[%s5 + $0x20] sm:$0xff]
    %v1305 = vld [vmem:[%s5 + $0x28] sm:$0xff]
    %v1306 = vld [vmem:[%s5 + $0x30] sm:$0xff]
    %v1307 = vld [vmem:[%s5 + $0x38] sm:$0xff]
    %v1310 = vrot.slane %v1297, 7
    %v1311 = vsel %vm139, %v1310, %v1292
    %v1313 = vrot.slane %v1292, 7
    %v1314 = vrot.slane %v1297, 6
    %v1315 = vsel %vm139, %v1314, %v1313
    %v1317 = vsel %vm46, %v1311, %v1315
    %1318 = vmatprep.subr.mxu0 0.0
    %1319 = vmatpush1.msra.mxu0 %v1300
    %1320 = vmatprep.subr.mxu0 0.0
    %1321 = vmatpush1.msra.mxu0 %v1301
    %1322 = vmatprep.subr.mxu0 0.0
    %1323 = vmatpush1.msra.mxu0 %v1302
    %1324 = vmatprep.subr.mxu0 0.0
    %1325 = vmatpush1.msra.mxu0 %v1303
    %1326 = vmatprep.subr.mxu0 0.0
    %1327 = vmatpush1.msra.mxu0 %v1304
    %1328 = vmatprep.subr.mxu0 0.0
    %1329 = vmatpush1.msra.mxu0 %v1305
    %1330 = vmatprep.subr.mxu0 0.0
    %1331 = vmatpush1.msra.mxu0 %v1306
    %1332 = vmatprep.subr.mxu0 0.0
    %1333 = vmatpush1.msra.mxu0 %v1307
    %1334 = vmatprep.subr.mxu0 0.0
    %1335 = vmatpush1.msra.mxu0 0.0
    %1336 = vmatprep.subr.mxu0 0.0
    %1337 = vmatpush1.msra.mxu0 0.0
    %1338 = vmatprep.subr.mxu0 0.0
    %1339 = vmatpush1.msra.mxu0 0.0
    %1340 = vmatprep.subr.mxu0 0.0
    %1341 = vmatpush1.msra.mxu0 0.0
    %1342 = vmatprep.subr.mxu0 0.0
    %1343 = vmatpush1.msra.mxu0 0.0
    %1344 = vmatprep.subr.mxu0 0.0
    %1345 = vmatpush1.msra.mxu0 0.0
    %1346 = vmatprep.subr.mxu0 0.0
    %1347 = vmatpush1.msra.mxu0 0.0
    %1348 = vmatprep.subr.mxu0 0.0
    %1349 = vmatpush1.msra.mxu0 0.0
    %1350 = vmatprep.subr.mxu0 0.0
    %1351 = vmatpush1.msra.mxu0 0.0
    %1352 = vmatprep.subr.mxu0 0.0
    %1353 = vmatpush1.msra.mxu0 0.0
    %1354 = vmatprep.subr.mxu0 0.0
    %1355 = vmatpush1.msra.mxu0 0.0
    %1356 = vmatprep.subr.mxu0 0.0
    %1357 = vmatpush1.msra.mxu0 0.0
    %1358 = vmatprep.subr.mxu0 0.0
    %1359 = vmatpush1.msra.mxu0 0.0
    %1360 = vmatprep.subr.mxu0 0.0
    %1361 = vmatpush1.msra.mxu0 0.0
    %1362 = vmatprep.subr.mxu0 0.0
    %1363 = vmatpush1.msra.mxu0 0.0
    %1364 = vmatprep.subr.mxu0 0.0
    %1365 = vmatpush1.msra.mxu0 0.0
    %1366 = vmatprep.subr.mxu0 0.0
    %1367 = vmatpush1.msra.mxu0 0.0
    %1368 = vmatprep.subr.mxu0 0.0
    %1369 = vmatpush1.msra.mxu0 0.0
    %1370 = vmatprep.subr.mxu0 0.0
    %1371 = vmatpush1.msra.mxu0 0.0
    %1372 = vmatprep.subr.mxu0 0.0
    %1373 = vmatpush1.msra.mxu0 0.0
    %1374 = vmatprep.subr.mxu0 0.0
    %1375 = vmatpush1.msra.mxu0 0.0
    %1376 = vmatprep.subr.mxu0 0.0
    %1377 = vmatpush1.msra.mxu0 0.0
    %1378 = vmatprep.subr.mxu0 0.0
    %1379 = vmatpush1.msra.mxu0 0.0
    %1380 = vmatprep.subr.mxu0 0.0
    %1381 = vmatpush1.msra.mxu0 0.0
    %1382 = vmatprep.mubr.f32.mxu0 0.0
    %1383 = vmatmul.mubr.f32.gmra.mrb[0].mxu0 %v149
    %v1384 = vpop.f32.mrb[0].mxu0
    %v1385 = vadd.f32 0.0, %v1384
    %v1386 = vpop.f32.mrb[0].mxu0
    %1387 = vdwg.mxu0
    %v1388 = vadd.f32 %v1317, %v1385
    %v1389 = vtanh.pop %v1388
    %v1392 = vunpack.c.l.s4 1966171168
    %v1393 = vunpack.c.0.s8 %v1392
    %v1394 = vlaneseq
    %v1395 = vshrl.u32 %v1394, 7
    %v1396 = vsub.s32 %v1393, %v1395
    %v1397 = vrot.slane %v1389, %v1396
    %v1398 = vcombine.high %v1397, %v1397
    %v1400 = vunpack.c.l.s4 1966171168
    %v1401 = vunpack.c.0.s8 %v1400
    %v1402 = vlaneseq
    %v1403 = vshrl.u32 %v1402, 7
    %v1404 = vsub.s32 %v1401, %v1403
    %v1405 = vrot.slane %v1397, %v1404
    %v1407 = vunpack.c.l.s4 1966171168
    %v1408 = vunpack.c.0.s8 %v1407
    %v1409 = vlaneseq
    %v1410 = vshrl.u32 %v1409, 7
    %v1411 = vsub.s32 %v1408, %v1410
    %v1412 = vrot.slane %v1398, %v1411
    %1415 = vst.msk [vmem:[#allocation2] sm:$0x1] %vm248, %v1405
    %1416 = vst.msk [vmem:[#allocation2 + $0x8] sm:$0x1] %vm248, %v1412
    %v1417 = vlaneseq
    %v1418 = vshrl.u32 %v1417, 7
    %v1419 = vsub.s32 0, %v1418
    %v1420 = vrot.slane %v1405, %v1419
    %v1421 = vlaneseq
    %v1422 = vshrl.u32 %v1421, 7
    %v1423 = vsub.s32 0, %v1422
    %v1424 = vrot.slane %v1412, %v1423
    %1425 = vrot.lane.b32.xlu0 %v1420, 96
    %v1426 = vpop.permute.xlu0 %1425
    %1427 = vrot.lane.b32.xlu0 %v1424, 96
    %v1428 = vpop.permute.xlu0 %1427
    %1431 = vst.msk [vmem:[#allocation3 + $0x7] sm:$0x1] %vm248, %v1426
    %1432 = vst.msk [vmem:[#allocation3 + $0xf] sm:$0x1] %vm248, %v1428
    %v1433 = vsel %vm267, %v1310, %v1292
    %v1435 = vrot.slane %v1292, 5
    %v1436 = vrot.slane %v1297, 4
    %v1437 = vsel %vm267, %v1436, %v1435
    %v1439 = vsel %vm46, %v1433, %v1437
    %v1440 = vsel %vm147, %v1389, 0
    %1442 = vmatprep.subr.mxu0 0.0
    %1443 = vmatpush1.msra.mxu0 %v1300
    %1444 = vmatprep.subr.mxu0 0.0
    %1445 = vmatpush1.msra.mxu0 %v1301
    %1446 = vmatprep.subr.mxu0 0.0
    %1447 = vmatpush1.msra.mxu0 %v1302
    %1448 = vmatprep.subr.mxu0 0.0
    %1449 = vmatpush1.msra.mxu0 %v1303
    %1450 = vmatprep.subr.mxu0 0.0
    %1451 = vmatpush1.msra.mxu0 %v1304
    %1452 = vmatprep.subr.mxu0 0.0
    %1453 = vmatpush1.msra.mxu0 %v1305
    %1454 = vmatprep.subr.mxu0 0.0
    %1455 = vmatpush1.msra.mxu0 %v1306
    %1456 = vmatprep.subr.mxu0 0.0
    %1457 = vmatpush1.msra.mxu0 %v1307
    %1458 = vmatprep.subr.mxu0 0.0
    %1459 = vmatpush1.msra.mxu0 0.0
    %1460 = vmatprep.subr.mxu0 0.0
    %1461 = vmatpush1.msra.mxu0 0.0
    %1462 = vmatprep.subr.mxu0 0.0
    %1463 = vmatpush1.msra.mxu0 0.0
    %1464 = vmatprep.subr.mxu0 0.0
    %1465 = vmatpush1.msra.mxu0 0.0
    %1466 = vmatprep.subr.mxu0 0.0
    %1467 = vmatpush1.msra.mxu0 0.0
    %1468 = vmatprep.subr.mxu0 0.0
    %1469 = vmatpush1.msra.mxu0 0.0
    %1470 = vmatprep.subr.mxu0 0.0
    %1471 = vmatpush1.msra.mxu0 0.0
    %1472 = vmatprep.subr.mxu0 0.0
    %1473 = vmatpush1.msra.mxu0 0.0
    %1474 = vmatprep.subr.mxu0 0.0
    %1475 = vmatpush1.msra.mxu0 0.0
    %1476 = vmatprep.subr.mxu0 0.0
    %1477 = vmatpush1.msra.mxu0 0.0
    %1478 = vmatprep.subr.mxu0 0.0
    %1479 = vmatpush1.msra.mxu0 0.0
    %1480 = vmatprep.subr.mxu0 0.0
    %1481 = vmatpush1.msra.mxu0 0.0
    %1482 = vmatprep.subr.mxu0 0.0
    %1483 = vmatpush1.msra.mxu0 0.0
    %1484 = vmatprep.subr.mxu0 0.0
    %1485 = vmatpush1.msra.mxu0 0.0
    %1486 = vmatprep.subr.mxu0 0.0
    %1487 = vmatpush1.msra.mxu0 0.0
    %1488 = vmatprep.subr.mxu0 0.0
    %1489 = vmatpush1.msra.mxu0 0.0
    %1490 = vmatprep.subr.mxu0 0.0
    %1491 = vmatpush1.msra.mxu0 0.0
    %1492 = vmatprep.subr.mxu0 0.0
    %1493 = vmatpush1.msra.mxu0 0.0
    %1494 = vmatprep.subr.mxu0 0.0
    %1495 = vmatpush1.msra.mxu0 0.0
    %1496 = vmatprep.subr.mxu0 0.0
    %1497 = vmatpush1.msra.mxu0 0.0
    %1498 = vmatprep.subr.mxu0 0.0
    %1499 = vmatpush1.msra.mxu0 0.0
    %1500 = vmatprep.subr.mxu0 0.0
    %1501 = vmatpush1.msra.mxu0 0.0
    %1502 = vmatprep.subr.mxu0 0.0
    %1503 = vmatpush1.msra.mxu0 0.0
    %1504 = vmatprep.subr.mxu0 0.0
    %1505 = vmatpush1.msra.mxu0 0.0
    %1506 = vmatprep.mubr.f32.mxu0 0.0
    %1507 = vmatmul.mubr.f32.gmra.mrb[0].mxu0 %v1440
    %v1508 = vpop.f32.mrb[0].mxu0
    %v1509 = vadd.f32 0.0, %v1508
    %v1510 = vpop.f32.mrb[0].mxu0
    %1511 = vdwg.mxu0
    %v1513 = vrot.slane %v1509, 7
    %v1515 = vadd.f32 %v1439, %v1513
    %v1516 = vtanh.pop %v1515
    %v1519 = vunpack.c.l.s4 1966171168
    %v1520 = vunpack.c.0.s8 %v1519
    %v1521 = vlaneseq
    %v1522 = vshrl.u32 %v1521, 7
    %v1523 = vsub.s32 %v1520, %v1522
    %v1524 = vrot.slane %v1516, %v1523
    %v1525 = vcombine.high %v1524, %v1524
    %v1527 = vunpack.c.l.s4 1966171168
    %v1528 = vunpack.c.0.s8 %v1527
    %v1529 = vlaneseq
    %v1530 = vshrl.u32 %v1529, 7
    %v1531 = vsub.s32 %v1528, %v1530
    %v1532 = vrot.slane %v1524, %v1531
    %v1534 = vunpack.c.l.s4 1966171168
    %v1535 = vunpack.c.0.s8 %v1534
    %v1536 = vlaneseq
    %v1537 = vshrl.u32 %v1536, 7
    %v1538 = vsub.s32 %v1535, %v1537
    %v1539 = vrot.slane %v1525, %v1538
    %v1540 = vcombine.high %v1532, %v1532
    %1543 = vst.msk [vmem:[#allocation2 + $0x1] sm:$0x1] %vm248, %v1539
    %1544 = vst.msk [vmem:[#allocation2 + $0x9] sm:$0x1] %vm248, %v1540
    %v1545 = vlaneseq
    %v1546 = vshrl.u32 %v1545, 7
    %v1547 = vsub.s32 0, %v1546
    %v1548 = vrot.slane %v1539, %v1547
    %v1549 = vlaneseq
    %v1550 = vshrl.u32 %v1549, 7
    %v1551 = vsub.s32 0, %v1550
    %v1552 = vrot.slane %v1540, %v1551
    %1553 = vrot.lane.b32.xlu0 %v1548, 96
    %v1554 = vpop.permute.xlu0 %1553
    %1555 = vrot.lane.b32.xlu0 %v1552, 96
    %v1556 = vpop.permute.xlu0 %1555
    %1559 = vst.msk [vmem:[#allocation3 + $0x6] sm:$0x1] %vm248, %v1554
    %1560 = vst.msk [vmem:[#allocation3 + $0xe] sm:$0x1] %vm248, %v1556
    %v1561 = vsel %vm396, %v1310, %v1292
    %v1563 = vrot.slane %v1292, 3
    %v1564 = vrot.slane %v1297, 2
    %v1565 = vsel %vm396, %v1564, %v1563
    %v1567 = vsel %vm46, %v1561, %v1565
    %v1568 = vrot.slane %v1516, 1
    %v1569 = vsel %vm147, %v1568, 0
    %1571 = vmatprep.subr.mxu0 0.0
    %1572 = vmatpush1.msra.mxu0 %v1300
    %1573 = vmatprep.subr.mxu0 0.0
    %1574 = vmatpush1.msra.mxu0 %v1301
    %1575 = vmatprep.subr.mxu0 0.0
    %1576 = vmatpush1.msra.mxu0 %v1302
    %1577 = vmatprep.subr.mxu0 0.0
    %1578 = vmatpush1.msra.mxu0 %v1303
    %1579 = vmatprep.subr.mxu0 0.0
    %1580 = vmatpush1.msra.mxu0 %v1304
    %1581 = vmatprep.subr.mxu0 0.0
    %1582 = vmatpush1.msra.mxu0 %v1305
    %1583 = vmatprep.subr.mxu0 0.0
    %1584 = vmatpush1.msra.mxu0 %v1306
    %1585 = vmatprep.subr.mxu0 0.0
    %1586 = vmatpush1.msra.mxu0 %v1307
    %1587 = vmatprep.subr.mxu0 0.0
    %1588 = vmatpush1.msra.mxu0 0.0
    %1589 = vmatprep.subr.mxu0 0.0
    %1590 = vmatpush1.msra.mxu0 0.0
    %1591 = vmatprep.subr.mxu0 0.0
    %1592 = vmatpush1.msra.mxu0 0.0
    %1593 = vmatprep.subr.mxu0 0.0
    %1594 = vmatpush1.msra.mxu0 0.0
    %1595 = vmatprep.subr.mxu0 0.0
    %1596 = vmatpush1.msra.mxu0 0.0
    %1597 = vmatprep.subr.mxu0 0.0
    %1598 = vmatpush1.msra.mxu0 0.0
    %1599 = vmatprep.subr.mxu0 0.0
    %1600 = vmatpush1.msra.mxu0 0.0
    %1601 = vmatprep.subr.mxu0 0.0
    %1602 = vmatpush1.msra.mxu0 0.0
    %1603 = vmatprep.subr.mxu0 0.0
    %1604 = vmatpush1.msra.mxu0 0.0
    %1605 = vmatprep.subr.mxu0 0.0
    %1606 = vmatpush1.msra.mxu0 0.0
    %1607 = vmatprep.subr.mxu0 0.0
    %1608 = vmatpush1.msra.mxu0 0.0
    %1609 = vmatprep.subr.mxu0 0.0
    %1610 = vmatpush1.msra.mxu0 0.0
    %1611 = vmatprep.subr.mxu0 0.0
    %1612 = vmatpush1.msra.mxu0 0.0
    %1613 = vmatprep.subr.mxu0 0.0
    %1614 = vmatpush1.msra.mxu0 0.0
    %1615 = vmatprep.subr.mxu0 0.0
    %1616 = vmatpush1.msra.mxu0 0.0
    %1617 = vmatprep.subr.mxu0 0.0
    %1618 = vmatpush1.msra.mxu0 0.0
    %1619 = vmatprep.subr.mxu0 0.0
    %1620 = vmatpush1.msra.mxu0 0.0
    %1621 = vmatprep.subr.mxu0 0.0
    %1622 = vmatpush1.msra.mxu0 0.0
    %1623 = vmatprep.subr.mxu0 0.0
    %1624 = vmatpush1.msra.mxu0 0.0
    %1625 = vmatprep.subr.mxu0 0.0
    %1626 = vmatpush1.msra.mxu0 0.0
    %1627 = vmatprep.subr.mxu0 0.0
    %1628 = vmatpush1.msra.mxu0 0.0
    %1629 = vmatprep.subr.mxu0 0.0
    %1630 = vmatpush1.msra.mxu0 0.0
    %1631 = vmatprep.subr.mxu0 0.0
    %1632 = vmatpush1.msra.mxu0 0.0
    %1633 = vmatprep.subr.mxu0 0.0
    %1634 = vmatpush1.msra.mxu0 0.0
    %1635 = vmatprep.mubr.f32.mxu0 0.0
    %1636 = vmatmul.mubr.f32.gmra.mrb[0].mxu0 %v1569
    %v1637 = vpop.f32.mrb[0].mxu0
    %v1638 = vadd.f32 0.0, %v1637
    %v1639 = vpop.f32.mrb[0].mxu0
    %1640 = vdwg.mxu0
    %v1642 = vrot.slane %v1638, 6
    %v1644 = vadd.f32 %v1567, %v1642
    %v1645 = vtanh.pop %v1644
    %v1648 = vunpack.c.l.s4 1966171168
    %v1649 = vunpack.c.0.s8 %v1648
    %v1650 = vlaneseq
    %v1651 = vshrl.u32 %v1650, 7
    %v1652 = vsub.s32 %v1649, %v1651
    %v1653 = vrot.slane %v1645, %v1652
    %v1654 = vcombine.high %v1653, %v1653
    %v1656 = vunpack.c.l.s4 1966171168
    %v1657 = vunpack.c.0.s8 %v1656
    %v1658 = vlaneseq
    %v1659 = vshrl.u32 %v1658, 7
    %v1660 = vsub.s32 %v1657, %v1659
    %v1661 = vrot.slane %v1653, %v1660
    %v1663 = vunpack.c.l.s4 1966171168
    %v1664 = vunpack.c.0.s8 %v1663
    %v1665 = vlaneseq
    %v1666 = vshrl.u32 %v1665, 7
    %v1667 = vsub.s32 %v1664, %v1666
    %v1668 = vrot.slane %v1654, %v1667
    %v1669 = vcombine.high %v1661, %v1661
    %v1670 = vcombine.high %v1668, %v1668
    %1673 = vst.msk [vmem:[#allocation2 + $0x2] sm:$0x1] %vm248, %v1669
    %1674 = vst.msk [vmem:[#allocation2 + $0xa] sm:$0x1] %vm248, %v1670
    %v1675 = vlaneseq
    %v1676 = vshrl.u32 %v1675, 7
    %v1677 = vsub.s32 0, %v1676
    %v1678 = vrot.slane %v1669, %v1677
    %v1679 = vlaneseq
    %v1680 = vshrl.u32 %v1679, 7
    %v1681 = vsub.s32 0, %v1680
    %v1682 = vrot.slane %v1670, %v1681
    %1683 = vrot.lane.b32.xlu0 %v1678, 96
    %v1684 = vpop.permute.xlu0 %1683
    %1685 = vrot.lane.b32.xlu0 %v1682, 96
    %v1686 = vpop.permute.xlu0 %1685
    %1689 = vst.msk [vmem:[#allocation3 + $0x5] sm:$0x1] %vm248, %v1684
    %1690 = vst.msk [vmem:[#allocation3 + $0xd] sm:$0x1] %vm248, %v1686
    %v1691 = vsel %vm527, %v1310, %v1292
    %v1693 = vrot.slane %v1292, 1
    %v1694 = vsel %vm527, %v1297, %v1693
    %v1696 = vsel %vm46, %v1691, %v1694
    %v1697 = vrot.slane %v1645, 2
    %v1698 = vsel %vm147, %v1697, 0
    %1700 = vmatprep.subr.mxu0 0.0
    %1701 = vmatpush1.msra.mxu0 %v1300
    %1702 = vmatprep.subr.mxu0 0.0
    %1703 = vmatpush1.msra.mxu0 %v1301
    %1704 = vmatprep.subr.mxu0 0.0
    %1705 = vmatpush1.msra.mxu0 %v1302
    %1706 = vmatprep.subr.mxu0 0.0
    %1707 = vmatpush1.msra.mxu0 %v1303
    %1708 = vmatprep.subr.mxu0 0.0
    %1709 = vmatpush1.msra.mxu0 %v1304
    %1710 = vmatprep.subr.mxu0 0.0
    %1711 = vmatpush1.msra.mxu0 %v1305
    %1712 = vmatprep.subr.mxu0 0.0
    %1713 = vmatpush1.msra.mxu0 %v1306
    %1714 = vmatprep.subr.mxu0 0.0
    %1715 = vmatpush1.msra.mxu0 %v1307
    %1716 = vmatprep.subr.mxu0 0.0
    %1717 = vmatpush1.msra.mxu0 0.0
    %1718 = vmatprep.subr.mxu0 0.0
    %1719 = vmatpush1.msra.mxu0 0.0
    %1720 = vmatprep.subr.mxu0 0.0
    %1721 = vmatpush1.msra.mxu0 0.0
    %1722 = vmatprep.subr.mxu0 0.0
    %1723 = vmatpush1.msra.mxu0 0.0
    %1724 = vmatprep.subr.mxu0 0.0
    %1725 = vmatpush1.msra.mxu0 0.0
    %1726 = vmatprep.subr.mxu0 0.0
    %1727 = vmatpush1.msra.mxu0 0.0
    %1728 = vmatprep.subr.mxu0 0.0
    %1729 = vmatpush1.msra.mxu0 0.0
    %1730 = vmatprep.subr.mxu0 0.0
    %1731 = vmatpush1.msra.mxu0 0.0
    %1732 = vmatprep.subr.mxu0 0.0
    %1733 = vmatpush1.msra.mxu0 0.0
    %1734 = vmatprep.subr.mxu0 0.0
    %1735 = vmatpush1.msra.mxu0 0.0
    %1736 = vmatprep.subr.mxu0 0.0
    %1737 = vmatpush1.msra.mxu0 0.0
    %1738 = vmatprep.subr.mxu0 0.0
    %1739 = vmatpush1.msra.mxu0 0.0
    %1740 = vmatprep.subr.mxu0 0.0
    %1741 = vmatpush1.msra.mxu0 0.0
    %1742 = vmatprep.subr.mxu0 0.0
    %1743 = vmatpush1.msra.mxu0 0.0
    %1744 = vmatprep.subr.mxu0 0.0
    %1745 = vmatpush1.msra.mxu0 0.0
    %1746 = vmatprep.subr.mxu0 0.0
    %1747 = vmatpush1.msra.mxu0 0.0
    %1748 = vmatprep.subr.mxu0 0.0
    %1749 = vmatpush1.msra.mxu0 0.0
    %1750 = vmatprep.subr.mxu0 0.0
    %1751 = vmatpush1.msra.mxu0 0.0
    %1752 = vmatprep.subr.mxu0 0.0
    %1753 = vmatpush1.msra.mxu0 0.0
    %1754 = vmatprep.subr.mxu0 0.0
    %1755 = vmatpush1.msra.mxu0 0.0
    %1756 = vmatprep.subr.mxu0 0.0
    %1757 = vmatpush1.msra.mxu0 0.0
    %1758 = vmatprep.subr.mxu0 0.0
    %1759 = vmatpush1.msra.mxu0 0.0
    %1760 = vmatprep.subr.mxu0 0.0
    %1761 = vmatpush1.msra.mxu0 0.0
    %1762 = vmatprep.subr.mxu0 0.0
    %1763 = vmatpush1.msra.mxu0 0.0
    %1764 = vmatprep.mubr.f32.mxu0 0.0
    %1765 = vmatmul.mubr.f32.gmra.mrb[0].mxu0 %v1698
    %v1766 = vpop.f32.mrb[0].mxu0
    %v1767 = vadd.f32 0.0, %v1766
    %v1768 = vpop.f32.mrb[0].mxu0
    %1769 = vdwg.mxu0
    %v1771 = vrot.slane %v1767, 5
    %v1773 = vadd.f32 %v1696, %v1771
    %v1774 = vtanh.pop %v1773
    %v1776 = vcombine.high %v1774, %v1774
    %v1778 = vunpack.c.l.s4 1966171168
    %v1779 = vunpack.c.0.s8 %v1778
    %v1780 = vlaneseq
    %v1781 = vshrl.u32 %v1780, 7
    %v1782 = vsub.s32 %v1779, %v1781
    %v1783 = vrot.slane %v1774, %v1782
    %v1785 = vunpack.c.l.s4 1966171168
    %v1786 = vunpack.c.0.s8 %v1785
    %v1787 = vlaneseq
    %v1788 = vshrl.u32 %v1787, 7
    %v1789 = vsub.s32 %v1786, %v1788
    %v1790 = vrot.slane %v1776, %v1789
    %v1791 = vcombine.high %v1783, %v1783
    %v1793 = vunpack.c.l.s4 1966171168
    %v1794 = vunpack.c.0.s8 %v1793
    %v1795 = vlaneseq
    %v1796 = vshrl.u32 %v1795, 7
    %v1797 = vsub.s32 %v1794, %v1796
    %v1798 = vrot.slane %v1790, %v1797
    %v1800 = vunpack.c.l.s4 1966171168
    %v1801 = vunpack.c.0.s8 %v1800
    %v1802 = vlaneseq
    %v1803 = vshrl.u32 %v1802, 7
    %v1804 = vsub.s32 %v1801, %v1803
    %v1805 = vrot.slane %v1791, %v1804
    %v1806 = vcombine.high %v1805, %v1805
    %1809 = vst.msk [vmem:[#allocation2 + $0x3] sm:$0x1] %vm248, %v1806
    %1810 = vst.msk [vmem:[#allocation2 + $0xb] sm:$0x1] %vm248, %v1798
    %v1811 = vlaneseq
    %v1812 = vshrl.u32 %v1811, 7
    %v1813 = vsub.s32 0, %v1812
    %v1814 = vrot.slane %v1806, %v1813
    %v1815 = vlaneseq
    %v1816 = vshrl.u32 %v1815, 7
    %v1817 = vsub.s32 0, %v1816
    %v1818 = vrot.slane %v1798, %v1817
    %1819 = vrot.lane.b32.xlu0 %v1814, 96
    %v1820 = vpop.permute.xlu0 %1819
    %1821 = vrot.lane.b32.xlu0 %v1818, 96
    %v1822 = vpop.permute.xlu0 %1821
    %1825 = vst.msk [vmem:[#allocation3 + $0x4] sm:$0x1] %vm248, %v1820
    %1826 = vst.msk [vmem:[#allocation3 + $0xc] sm:$0x1] %vm248, %v1822
    %v1827 = vsel %vm664, %v1310, %v1292
    %v1829 = vsel %vm664, %v1314, %v1313
    %v1831 = vsel %vm46, %v1827, %v1829
    %v1832 = vrot.slane %v1774, 3
    %v1833 = vsel %vm147, %v1832, 0
    %1835 = vmatprep.subr.mxu0 0.0
    %1836 = vmatpush1.msra.mxu0 %v1300
    %1837 = vmatprep.subr.mxu0 0.0
    %1838 = vmatpush1.msra.mxu0 %v1301
    %1839 = vmatprep.subr.mxu0 0.0
    %1840 = vmatpush1.msra.mxu0 %v1302
    %1841 = vmatprep.subr.mxu0 0.0
    %1842 = vmatpush1.msra.mxu0 %v1303
    %1843 = vmatprep.subr.mxu0 0.0
    %1844 = vmatpush1.msra.mxu0 %v1304
    %1845 = vmatprep.subr.mxu0 0.0
    %1846 = vmatpush1.msra.mxu0 %v1305
    %1847 = vmatprep.subr.mxu0 0.0
    %1848 = vmatpush1.msra.mxu0 %v1306
    %1849 = vmatprep.subr.mxu0 0.0
    %1850 = vmatpush1.msra.mxu0 %v1307
    %1851 = vmatprep.subr.mxu0 0.0
    %1852 = vmatpush1.msra.mxu0 0.0
    %1853 = vmatprep.subr.mxu0 0.0
    %1854 = vmatpush1.msra.mxu0 0.0
    %1855 = vmatprep.subr.mxu0 0.0
    %1856 = vmatpush1.msra.mxu0 0.0
    %1857 = vmatprep.subr.mxu0 0.0
    %1858 = vmatpush1.msra.mxu0 0.0
    %1859 = vmatprep.subr.mxu0 0.0
    %1860 = vmatpush1.msra.mxu0 0.0
    %1861 = vmatprep.subr.mxu0 0.0
    %1862 = vmatpush1.msra.mxu0 0.0
    %1863 = vmatprep.subr.mxu0 0.0
    %1864 = vmatpush1.msra.mxu0 0.0
    %1865 = vmatprep.subr.mxu0 0.0
    %1866 = vmatpush1.msra.mxu0 0.0
    %1867 = vmatprep.subr.mxu0 0.0
    %1868 = vmatpush1.msra.mxu0 0.0
    %1869 = vmatprep.subr.mxu0 0.0
    %1870 = vmatpush1.msra.mxu0 0.0
    %1871 = vmatprep.subr.mxu0 0.0
    %1872 = vmatpush1.msra.mxu0 0.0
    %1873 = vmatprep.subr.mxu0 0.0
    %1874 = vmatpush1.msra.mxu0 0.0
    %1875 = vmatprep.subr.mxu0 0.0
    %1876 = vmatpush1.msra.mxu0 0.0
    %1877 = vmatprep.subr.mxu0 0.0
    %1878 = vmatpush1.msra.mxu0 0.0
    %1879 = vmatprep.subr.mxu0 0.0
    %1880 = vmatpush1.msra.mxu0 0.0
    %1881 = vmatprep.subr.mxu0 0.0
    %1882 = vmatpush1.msra.mxu0 0.0
    %1883 = vmatprep.subr.mxu0 0.0
    %1884 = vmatpush1.msra.mxu0 0.0
    %1885 = vmatprep.subr.mxu0 0.0
    %1886 = vmatpush1.msra.mxu0 0.0
    %1887 = vmatprep.subr.mxu0 0.0
    %1888 = vmatpush1.msra.mxu0 0.0
    %1889 = vmatprep.subr.mxu0 0.0
    %1890 = vmatpush1.msra.mxu0 0.0
    %1891 = vmatprep.subr.mxu0 0.0
    %1892 = vmatpush1.msra.mxu0 0.0
    %1893 = vmatprep.subr.mxu0 0.0
    %1894 = vmatpush1.msra.mxu0 0.0
    %1895 = vmatprep.subr.mxu0 0.0
    %1896 = vmatpush1.msra.mxu0 0.0
    %1897 = vmatprep.subr.mxu0 0.0
    %1898 = vmatpush1.msra.mxu0 0.0
    %1899 = vmatprep.mubr.f32.mxu0 0.0
    %1900 = vmatmul.mubr.f32.gmra.mrb[0].mxu0 %v1833
    %v1901 = vpop.f32.mrb[0].mxu0
    %v1902 = vadd.f32 0.0, %v1901
    %v1903 = vpop.f32.mrb[0].mxu0
    %1904 = vdwg.mxu0
    %v1906 = vrot.slane %v1902, 4
    %v1908 = vadd.f32 %v1831, %v1906
    %v1909 = vtanh.pop %v1908
    %v1911 = vcombine.high %v1909, %v1909
    %v1913 = vunpack.c.l.s4 1966171168
    %v1914 = vunpack.c.0.s8 %v1913
    %v1915 = vlaneseq
    %v1916 = vshrl.u32 %v1915, 7
    %v1917 = vsub.s32 %v1914, %v1916
    %v1918 = vrot.slane %v1911, %v1917
    %v1919 = vcombine.high %v1918, %v1918
    %v1921 = vunpack.c.l.s4 1966171168
    %v1922 = vunpack.c.0.s8 %v1921
    %v1923 = vlaneseq
    %v1924 = vshrl.u32 %v1923, 7
    %v1925 = vsub.s32 %v1922, %v1924
    %v1926 = vrot.slane %v1918, %v1925
    %v1928 = vunpack.c.l.s4 1966171168
    %v1929 = vunpack.c.0.s8 %v1928
    %v1930 = vlaneseq
    %v1931 = vshrl.u32 %v1930, 7
    %v1932 = vsub.s32 %v1929, %v1931
    %v1933 = vrot.slane %v1919, %v1932
    %1936 = vst.msk [vmem:[#allocation2 + $0x4] sm:$0x1] %vm248, %v1926
    %1937 = vst.msk [vmem:[#allocation2 + $0xc] sm:$0x1] %vm248, %v1933
    %v1938 = vlaneseq
    %v1939 = vshrl.u32 %v1938, 7
    %v1940 = vsub.s32 0, %v1939
    %v1941 = vrot.slane %v1926, %v1940
    %v1942 = vlaneseq
    %v1943 = vshrl.u32 %v1942, 7
    %v1944 = vsub.s32 0, %v1943
    %v1945 = vrot.slane %v1933, %v1944
    %1946 = vrot.lane.b32.xlu0 %v1941, 96
    %v1947 = vpop.permute.xlu0 %1946
    %1948 = vrot.lane.b32.xlu0 %v1945, 96
    %v1949 = vpop.permute.xlu0 %1948
    %1952 = vst.msk [vmem:[#allocation3 + $0x3] sm:$0x1] %vm248, %v1947
    %1953 = vst.msk [vmem:[#allocation3 + $0xb] sm:$0x1] %vm248, %v1949
    %v1954 = vsel %vm792, %v1310, %v1292
    %v1956 = vsel %vm792, %v1436, %v1435
    %v1958 = vsel %vm46, %v1954, %v1956
    %v1959 = vrot.slane %v1909, 4
    %v1960 = vsel %vm147, %v1959, 0
    %1962 = vmatprep.subr.mxu0 0.0
    %1963 = vmatpush1.msra.mxu0 %v1300
    %1964 = vmatprep.subr.mxu0 0.0
    %1965 = vmatpush1.msra.mxu0 %v1301
    %1966 = vmatprep.subr.mxu0 0.0
    %1967 = vmatpush1.msra.mxu0 %v1302
    %1968 = vmatprep.subr.mxu0 0.0
    %1969 = vmatpush1.msra.mxu0 %v1303
    %1970 = vmatprep.subr.mxu0 0.0
    %1971 = vmatpush1.msra.mxu0 %v1304
    %1972 = vmatprep.subr.mxu0 0.0
    %1973 = vmatpush1.msra.mxu0 %v1305
    %1974 = vmatprep.subr.mxu0 0.0
    %1975 = vmatpush1.msra.mxu0 %v1306
    %1976 = vmatprep.subr.mxu0 0.0
    %1977 = vmatpush1.msra.mxu0 %v1307
    %1978 = vmatprep.subr.mxu0 0.0
    %1979 = vmatpush1.msra.mxu0 0.0
    %1980 = vmatprep.subr.mxu0 0.0
    %1981 = vmatpush1.msra.mxu0 0.0
    %1982 = vmatprep.subr.mxu0 0.0
    %1983 = vmatpush1.msra.mxu0 0.0
    %1984 = vmatprep.subr.mxu0 0.0
    %1985 = vmatpush1.msra.mxu0 0.0
    %1986 = vmatprep.subr.mxu0 0.0
    %1987 = vmatpush1.msra.mxu0 0.0
    %1988 = vmatprep.subr.mxu0 0.0
    %1989 = vmatpush1.msra.mxu0 0.0
    %1990 = vmatprep.subr.mxu0 0.0
    %1991 = vmatpush1.msra.mxu0 0.0
    %1992 = vmatprep.subr.mxu0 0.0
    %1993 = vmatpush1.msra.mxu0 0.0
    %1994 = vmatprep.subr.mxu0 0.0
    %1995 = vmatpush1.msra.mxu0 0.0
    %1996 = vmatprep.subr.mxu0 0.0
    %1997 = vmatpush1.msra.mxu0 0.0
    %1998 = vmatprep.subr.mxu0 0.0
    %1999 = vmatpush1.msra.mxu0 0.0
    %2000 = vmatprep.subr.mxu0 0.0
    %2001 = vmatpush1.msra.mxu0 0.0
    %2002 = vmatprep.subr.mxu0 0.0
    %2003 = vmatpush1.msra.mxu0 0.0
    %2004 = vmatprep.subr.mxu0 0.0
    %2005 = vmatpush1.msra.mxu0 0.0
    %2006 = vmatprep.subr.mxu0 0.0
    %2007 = vmatpush1.msra.mxu0 0.0
    %2008 = vmatprep.subr.mxu0 0.0
    %2009 = vmatpush1.msra.mxu0 0.0
    %2010 = vmatprep.subr.mxu0 0.0
    %2011 = vmatpush1.msra.mxu0 0.0
    %2012 = vmatprep.subr.mxu0 0.0
    %2013 = vmatpush1.msra.mxu0 0.0
    %2014 = vmatprep.subr.mxu0 0.0
    %2015 = vmatpush1.msra.mxu0 0.0
    %2016 = vmatprep.subr.mxu0 0.0
    %2017 = vmatpush1.msra.mxu0 0.0
    %2018 = vmatprep.subr.mxu0 0.0
    %2019 = vmatpush1.msra.mxu0 0.0
    %2020 = vmatprep.subr.mxu0 0.0
    %2021 = vmatpush1.msra.mxu0 0.0
    %2022 = vmatprep.subr.mxu0 0.0
    %2023 = vmatpush1.msra.mxu0 0.0
    %2024 = vmatprep.subr.mxu0 0.0
    %2025 = vmatpush1.msra.mxu0 0.0
    %2026 = vmatprep.mubr.f32.mxu0 0.0
    %2027 = vmatmul.mubr.f32.gmra.mrb[0].mxu0 %v1960
    %v2028 = vpop.f32.mrb[0].mxu0
    %v2029 = vadd.f32 0.0, %v2028
    %v2030 = vpop.f32.mrb[0].mxu0
    %2031 = vdwg.mxu0
    %v2033 = vrot.slane %v2029, 3
    %v2035 = vadd.f32 %v1958, %v2033
    %v2036 = vtanh.pop %v2035
    %v2038 = vcombine.high %v2036, %v2036
    %v2040 = vunpack.c.l.s4 1966171168
    %v2041 = vunpack.c.0.s8 %v2040
    %v2042 = vlaneseq
    %v2043 = vshrl.u32 %v2042, 7
    %v2044 = vsub.s32 %v2041, %v2043
    %v2045 = vrot.slane %v2038, %v2044
    %v2046 = vcombine.high %v2045, %v2045
    %v2048 = vunpack.c.l.s4 1966171168
    %v2049 = vunpack.c.0.s8 %v2048
    %v2050 = vlaneseq
    %v2051 = vshrl.u32 %v2050, 7
    %v2052 = vsub.s32 %v2049, %v2051
    %v2053 = vrot.slane %v2045, %v2052
    %v2055 = vunpack.c.l.s4 1966171168
    %v2056 = vunpack.c.0.s8 %v2055
    %v2057 = vlaneseq
    %v2058 = vshrl.u32 %v2057, 7
    %v2059 = vsub.s32 %v2056, %v2058
    %v2060 = vrot.slane %v2046, %v2059
    %v2061 = vcombine.high %v2053, %v2053
    %2064 = vst.msk [vmem:[#allocation2 + $0x5] sm:$0x1] %vm248, %v2060
    %2065 = vst.msk [vmem:[#allocation2 + $0xd] sm:$0x1] %vm248, %v2061
    %v2066 = vlaneseq
    %v2067 = vshrl.u32 %v2066, 7
    %v2068 = vsub.s32 0, %v2067
    %v2069 = vrot.slane %v2060, %v2068
    %v2070 = vlaneseq
    %v2071 = vshrl.u32 %v2070, 7
    %v2072 = vsub.s32 0, %v2071
    %v2073 = vrot.slane %v2061, %v2072
    %2074 = vrot.lane.b32.xlu0 %v2069, 96
    %v2075 = vpop.permute.xlu0 %2074
    %2076 = vrot.lane.b32.xlu0 %v2073, 96
    %v2077 = vpop.permute.xlu0 %2076
    %2080 = vst.msk [vmem:[#allocation3 + $0x2] sm:$0x1] %vm248, %v2075
    %2081 = vst.msk [vmem:[#allocation3 + $0xa] sm:$0x1] %vm248, %v2077
    %v2082 = vsel %vm921, %v1310, %v1292
    %v2084 = vsel %vm921, %v1564, %v1563
    %v2086 = vsel %vm46, %v2082, %v2084
    %v2087 = vrot.slane %v2036, 5
    %v2088 = vsel %vm147, %v2087, 0
    %2090 = vmatprep.subr.mxu0 0.0
    %2091 = vmatpush1.msra.mxu0 %v1300
    %2092 = vmatprep.subr.mxu0 0.0
    %2093 = vmatpush1.msra.mxu0 %v1301
    %2094 = vmatprep.subr.mxu0 0.0
    %2095 = vmatpush1.msra.mxu0 %v1302
    %2096 = vmatprep.subr.mxu0 0.0
    %2097 = vmatpush1.msra.mxu0 %v1303
    %2098 = vmatprep.subr.mxu0 0.0
    %2099 = vmatpush1.msra.mxu0 %v1304
    %2100 = vmatprep.subr.mxu0 0.0
    %2101 = vmatpush1.msra.mxu0 %v1305
    %2102 = vmatprep.subr.mxu0 0.0
    %2103 = vmatpush1.msra.mxu0 %v1306
    %2104 = vmatprep.subr.mxu0 0.0
    %2105 = vmatpush1.msra.mxu0 %v1307
    %2106 = vmatprep.subr.mxu0 0.0
    %2107 = vmatpush1.msra.mxu0 0.0
    %2108 = vmatprep.subr.mxu0 0.0
    %2109 = vmatpush1.msra.mxu0 0.0
    %2110 = vmatprep.subr.mxu0 0.0
    %2111 = vmatpush1.msra.mxu0 0.0
    %2112 = vmatprep.subr.mxu0 0.0
    %2113 = vmatpush1.msra.mxu0 0.0
    %2114 = vmatprep.subr.mxu0 0.0
    %2115 = vmatpush1.msra.mxu0 0.0
    %2116 = vmatprep.subr.mxu0 0.0
    %2117 = vmatpush1.msra.mxu0 0.0
    %2118 = vmatprep.subr.mxu0 0.0
    %2119 = vmatpush1.msra.mxu0 0.0
    %2120 = vmatprep.subr.mxu0 0.0
    %2121 = vmatpush1.msra.mxu0 0.0
    %2122 = vmatprep.subr.mxu0 0.0
    %2123 = vmatpush1.msra.mxu0 0.0
    %2124 = vmatprep.subr.mxu0 0.0
    %2125 = vmatpush1.msra.mxu0 0.0
    %2126 = vmatprep.subr.mxu0 0.0
    %2127 = vmatpush1.msra.mxu0 0.0
    %2128 = vmatprep.subr.mxu0 0.0
    %2129 = vmatpush1.msra.mxu0 0.0
    %2130 = vmatprep.subr.mxu0 0.0
    %2131 = vmatpush1.msra.mxu0 0.0
    %2132 = vmatprep.subr.mxu0 0.0
    %2133 = vmatpush1.msra.mxu0 0.0
    %2134 = vmatprep.subr.mxu0 0.0
    %2135 = vmatpush1.msra.mxu0 0.0
    %2136 = vmatprep.subr.mxu0 0.0
    %2137 = vmatpush1.msra.mxu0 0.0
    %2138 = vmatprep.subr.mxu0 0.0
    %2139 = vmatpush1.msra.mxu0 0.0
    %2140 = vmatprep.subr.mxu0 0.0
    %2141 = vmatpush1.msra.mxu0 0.0
    %2142 = vmatprep.subr.mxu0 0.0
    %2143 = vmatpush1.msra.mxu0 0.0
    %2144 = vmatprep.subr.mxu0 0.0
    %2145 = vmatpush1.msra.mxu0 0.0
    %2146 = vmatprep.subr.mxu0 0.0
    %2147 = vmatpush1.msra.mxu0 0.0
    %2148 = vmatprep.subr.mxu0 0.0
    %2149 = vmatpush1.msra.mxu0 0.0
    %2150 = vmatprep.subr.mxu0 0.0
    %2151 = vmatpush1.msra.mxu0 0.0
    %2152 = vmatprep.subr.mxu0 0.0
    %2153 = vmatpush1.msra.mxu0 0.0
    %2154 = vmatprep.mubr.f32.mxu0 0.0
    %2155 = vmatmul.mubr.f32.gmra.mrb[0].mxu0 %v2088
    %v2156 = vpop.f32.mrb[0].mxu0
    %v2157 = vadd.f32 0.0, %v2156
    %v2158 = vpop.f32.mrb[0].mxu0
    %2159 = vdwg.mxu0
    %v2161 = vrot.slane %v2157, 2
    %v2163 = vadd.f32 %v2086, %v2161
    %v2164 = vtanh.pop %v2163
    %v2166 = vcombine.high %v2164, %v2164
    %v2168 = vunpack.c.l.s4 1966171168
    %v2169 = vunpack.c.0.s8 %v2168
    %v2170 = vlaneseq
    %v2171 = vshrl.u32 %v2170, 7
    %v2172 = vsub.s32 %v2169, %v2171
    %v2173 = vrot.slane %v2166, %v2172
    %v2174 = vcombine.high %v2173, %v2173
    %v2176 = vunpack.c.l.s4 1966171168
    %v2177 = vunpack.c.0.s8 %v2176
    %v2178 = vlaneseq
    %v2179 = vshrl.u32 %v2178, 7
    %v2180 = vsub.s32 %v2177, %v2179
    %v2181 = vrot.slane %v2173, %v2180
    %v2183 = vunpack.c.l.s4 1966171168
    %v2184 = vunpack.c.0.s8 %v2183
    %v2185 = vlaneseq
    %v2186 = vshrl.u32 %v2185, 7
    %v2187 = vsub.s32 %v2184, %v2186
    %v2188 = vrot.slane %v2174, %v2187
    %v2189 = vcombine.high %v2181, %v2181
    %v2190 = vcombine.high %v2188, %v2188
    %2193 = vst.msk [vmem:[#allocation2 + $0x6] sm:$0x1] %vm248, %v2189
    %2194 = vst.msk [vmem:[#allocation2 + $0xe] sm:$0x1] %vm248, %v2190
    %v2195 = vlaneseq
    %v2196 = vshrl.u32 %v2195, 7
    %v2197 = vsub.s32 0, %v2196
    %v2198 = vrot.slane %v2189, %v2197
    %v2199 = vlaneseq
    %v2200 = vshrl.u32 %v2199, 7
    %v2201 = vsub.s32 0, %v2200
    %v2202 = vrot.slane %v2190, %v2201
    %2203 = vrot.lane.b32.xlu0 %v2198, 96
    %v2204 = vpop.permute.xlu0 %2203
    %2205 = vrot.lane.b32.xlu0 %v2202, 96
    %v2206 = vpop.permute.xlu0 %2205
    %2209 = vst.msk [vmem:[#allocation3 + $0x1] sm:$0x1] %vm248, %v2204
    %2210 = vst.msk [vmem:[#allocation3 + $0x9] sm:$0x1] %vm248, %v2206
    %v2215 = vsel %vm46, %v1292, %v1693
    %v2216 = vsel %vm46, %v1310, %v1297
    %v2217 = vrot.slane %v2164, 6
    %v2218 = vsel %vm147, %v2217, 0
    %2220 = vmatprep.subr.mxu0 0.0
    %2221 = vmatpush1.msra.mxu0 %v1300
    %2222 = vmatprep.subr.mxu0 0.0
    %2223 = vmatpush1.msra.mxu0 %v1301
    %2224 = vmatprep.subr.mxu0 0.0
    %2225 = vmatpush1.msra.mxu0 %v1302
    %2226 = vmatprep.subr.mxu0 0.0
    %2227 = vmatpush1.msra.mxu0 %v1303
    %2228 = vmatprep.subr.mxu0 0.0
    %2229 = vmatpush1.msra.mxu0 %v1304
    %2230 = vmatprep.subr.mxu0 0.0
    %2231 = vmatpush1.msra.mxu0 %v1305
    %2232 = vmatprep.subr.mxu0 0.0
    %2233 = vmatpush1.msra.mxu0 %v1306
    %2234 = vmatprep.subr.mxu0 0.0
    %2235 = vmatpush1.msra.mxu0 %v1307
    %2236 = vmatprep.subr.mxu0 0.0
    %2237 = vmatpush1.msra.mxu0 0.0
    %2238 = vmatprep.subr.mxu0 0.0
    %2239 = vmatpush1.msra.mxu0 0.0
    %2240 = vmatprep.subr.mxu0 0.0
    %2241 = vmatpush1.msra.mxu0 0.0
    %2242 = vmatprep.subr.mxu0 0.0
    %2243 = vmatpush1.msra.mxu0 0.0
    %2244 = vmatprep.subr.mxu0 0.0
    %2245 = vmatpush1.msra.mxu0 0.0
    %2246 = vmatprep.subr.mxu0 0.0
    %2247 = vmatpush1.msra.mxu0 0.0
    %2248 = vmatprep.subr.mxu0 0.0
    %2249 = vmatpush1.msra.mxu0 0.0
    %2250 = vmatprep.subr.mxu0 0.0
    %2251 = vmatpush1.msra.mxu0 0.0
    %2252 = vmatprep.subr.mxu0 0.0
    %2253 = vmatpush1.msra.mxu0 0.0
    %2254 = vmatprep.subr.mxu0 0.0
    %2255 = vmatpush1.msra.mxu0 0.0
    %2256 = vmatprep.subr.mxu0 0.0
    %2257 = vmatpush1.msra.mxu0 0.0
    %2258 = vmatprep.subr.mxu0 0.0
    %2259 = vmatpush1.msra.mxu0 0.0
    %2260 = vmatprep.subr.mxu0 0.0
    %2261 = vmatpush1.msra.mxu0 0.0
    %2262 = vmatprep.subr.mxu0 0.0
    %2263 = vmatpush1.msra.mxu0 0.0
    %2264 = vmatprep.subr.mxu0 0.0
    %2265 = vmatpush1.msra.mxu0 0.0
    %2266 = vmatprep.subr.mxu0 0.0
    %2267 = vmatpush1.msra.mxu0 0.0
    %2268 = vmatprep.subr.mxu0 0.0
    %2269 = vmatpush1.msra.mxu0 0.0
    %2270 = vmatprep.subr.mxu0 0.0
    %2271 = vmatpush1.msra.mxu0 0.0
    %2272 = vmatprep.subr.mxu0 0.0
    %2273 = vmatpush1.msra.mxu0 0.0
    %2274 = vmatprep.subr.mxu0 0.0
    %2275 = vmatpush1.msra.mxu0 0.0
    %2276 = vmatprep.subr.mxu0 0.0
    %2277 = vmatpush1.msra.mxu0 0.0
    %2278 = vmatprep.subr.mxu0 0.0
    %2279 = vmatpush1.msra.mxu0 0.0
    %2280 = vmatprep.subr.mxu0 0.0
    %2281 = vmatpush1.msra.mxu0 0.0
    %2282 = vmatprep.subr.mxu0 0.0
    %2283 = vmatpush1.msra.mxu0 0.0
    %2284 = vmatprep.mubr.f32.mxu0 0.0
    %2285 = vmatmul.mubr.f32.gmra.mrb[0].mxu0 %v2218
    %v2286 = vpop.f32.mrb[0].mxu0
    %v2287 = vadd.f32 0.0, %v2286
    %v2288 = vpop.f32.mrb[0].mxu0
    %2289 = vdwg.mxu0
    %v2291 = vrot.slane %v2287, 1
    %v2293 = vadd.f32 %v2215, %v2291
    %v2294 = vadd.f32 %v2216, %v2291
    %v2295 = vtanh.pop %v2293
    %v2296 = vtanh.pop %v2294
    %v2299 = vcombine.high %v2295, %v2295
    %v2301 = vunpack.c.l.s4 1966171168
    %v2302 = vunpack.c.0.s8 %v2301
    %v2303 = vlaneseq
    %v2304 = vshrl.u32 %v2303, 7
    %v2305 = vsub.s32 %v2302, %v2304
    %v2306 = vrot.slane %v2299, %v2305
    %v2307 = vcombine.high %v2306, %v2306
    %v2309 = vunpack.c.l.s4 1966171168
    %v2310 = vunpack.c.0.s8 %v2309
    %v2311 = vlaneseq
    %v2312 = vshrl.u32 %v2311, 7
    %v2313 = vsub.s32 %v2310, %v2312
    %v2314 = vrot.slane %v2307, %v2313
    %v2315 = vcombine.high %v2314, %v2314
    %v2317 = vunpack.c.l.s4 1966171168
    %v2318 = vunpack.c.0.s8 %v2317
    %v2319 = vlaneseq
    %v2320 = vshrl.u32 %v2319, 7
    %v2321 = vsub.s32 %v2318, %v2320
    %v2322 = vrot.slane %v2296, %v2321
    %v2324 = vunpack.c.l.s4 1966171168
    %v2325 = vunpack.c.0.s8 %v2324
    %v2326 = vlaneseq
    %v2327 = vshrl.u32 %v2326, 7
    %v2328 = vsub.s32 %v2325, %v2327
    %v2329 = vrot.slane %v2322, %v2328
    %2332 = vst.msk [vmem:[#allocation2 + $0x7] sm:$0x1] %vm248, %v2315
    %2333 = vst.msk [vmem:[#allocation2 + $0xf] sm:$0x1] %vm248, %v2329
    %v2334 = vlaneseq
    %v2335 = vshrl.u32 %v2334, 7
    %v2336 = vsub.s32 0, %v2335
    %v2337 = vrot.slane %v2315, %v2336
    %v2338 = vlaneseq
    %v2339 = vshrl.u32 %v2338, 7
    %v2340 = vsub.s32 0, %v2339
    %v2341 = vrot.slane %v2329, %v2340
    %2342 = vrot.lane.b32.xlu0 %v2337, 96
    %v2343 = vpop.permute.xlu0 %2342
    %2344 = vrot.lane.b32.xlu0 %v2341, 96
    %v2345 = vpop.permute.xlu0 %2344
    %2348 = vst.msk [vmem:[#allocation3] sm:$0x1] %vm248, %v2343
    %2349 = vst.msk [vmem:[#allocation3 + $0x8] sm:$0x1] %vm248, %v2345
    %v2350 = vld [vmem:[#allocation2 + $0x7] sm:$0x1]
    %v2351 = vld [vmem:[#allocation2 + $0xf] sm:$0x1]
    %v2352 = vld [vmem:[#allocation3 + $0x7] sm:$0x1]
    %v2353 = vld [vmem:[#allocation3 + $0xf] sm:$0x1]
    %v2356 = vrot.slane %v2351, 7
    %v2357 = vsel %vm139, %v2356, %v2350
    %v2361 = vrot.slane %v2353, 7
    %v2362 = vsel %vm139, %v2361, %v2352
    %2363 = vrot.lane.b32.xlu0 %v2362, 32
    %v2364 = vpop.permute.xlu0 %2363
    %v2366 = vsel %vm46, %v2357, %v2364
    %v2367 = vld [vmem:[%s7] sm:$0xff]
    %v2368 = vld [vmem:[%s7 + $0x8] sm:$0xff]
    %v2369 = vld [vmem:[%s7 + $0x10] sm:$0xff]
    %v2370 = vld [vmem:[%s7 + $0x18] sm:$0xff]
    %v2371 = vld [vmem:[%s7 + $0x20] sm:$0xff]
    %v2372 = vld [vmem:[%s7 + $0x28] sm:$0xff]
    %v2373 = vld [vmem:[%s7 + $0x30] sm:$0xff]
    %v2374 = vld [vmem:[%s7 + $0x38] sm:$0xff]
    %v2375 = vld [vmem:[%s8] sm:$0x1]
    %v2377 = vlaneseq
    %v2378 = vshrl.u32 %v2377, 7
    %v2379 = vsub.s32 0, %v2378
    %v2380 = vrot.slane %v2375, %v2379
    %v2383 = vsel %vm147, %v2366, 0
    %2385 = vmatprep.subr.mxu0 0.0
    %2386 = vmatpush1.msra.mxu0 %v2367
    %2387 = vmatprep.subr.mxu0 0.0
    %2388 = vmatpush1.msra.mxu0 %v2368
    %2389 = vmatprep.subr.mxu0 0.0
    %2390 = vmatpush1.msra.mxu0 %v2369
    %2391 = vmatprep.subr.mxu0 0.0
    %2392 = vmatpush1.msra.mxu0 %v2370
    %2393 = vmatprep.subr.mxu0 0.0
    %2394 = vmatpush1.msra.mxu0 %v2371
    %2395 = vmatprep.subr.mxu0 0.0
    %2396 = vmatpush1.msra.mxu0 %v2372
    %2397 = vmatprep.subr.mxu0 0.0
    %2398 = vmatpush1.msra.mxu0 %v2373
    %2399 = vmatprep.subr.mxu0 0.0
    %2400 = vmatpush1.msra.mxu0 %v2374
    %2401 = vmatprep.subr.mxu0 0.0
    %2402 = vmatpush1.msra.mxu0 0.0
    %2403 = vmatprep.subr.mxu0 0.0
    %2404 = vmatpush1.msra.mxu0 0.0
    %2405 = vmatprep.subr.mxu0 0.0
    %2406 = vmatpush1.msra.mxu0 0.0
    %2407 = vmatprep.subr.mxu0 0.0
    %2408 = vmatpush1.msra.mxu0 0.0
    %2409 = vmatprep.subr.mxu0 0.0
    %2410 = vmatpush1.msra.mxu0 0.0
    %2411 = vmatprep.subr.mxu0 0.0
    %2412 = vmatpush1.msra.mxu0 0.0
    %2413 = vmatprep.subr.mxu0 0.0
    %2414 = vmatpush1.msra.mxu0 0.0
    %2415 = vmatprep.subr.mxu0 0.0
    %2416 = vmatpush1.msra.mxu0 0.0
    %2417 = vmatprep.subr.mxu0 0.0
    %2418 = vmatpush1.msra.mxu0 0.0
    %2419 = vmatprep.subr.mxu0 0.0
    %2420 = vmatpush1.msra.mxu0 0.0
    %2421 = vmatprep.subr.mxu0 0.0
    %2422 = vmatpush1.msra.mxu0 0.0
    %2423 = vmatprep.subr.mxu0 0.0
    %2424 = vmatpush1.msra.mxu0 0.0
    %2425 = vmatprep.subr.mxu0 0.0
    %2426 = vmatpush1.msra.mxu0 0.0
    %2427 = vmatprep.subr.mxu0 0.0
    %2428 = vmatpush1.msra.mxu0 0.0
    %2429 = vmatprep.subr.mxu0 0.0
    %2430 = vmatpush1.msra.mxu0 0.0
    %2431 = vmatprep.subr.mxu0 0.0
    %2432 = vmatpush1.msra.mxu0 0.0
    %2433 = vmatprep.subr.mxu0 0.0
    %2434 = vmatpush1.msra.mxu0 0.0
    %2435 = vmatprep.subr.mxu0 0.0
    %2436 = vmatpush1.msra.mxu0 0.0
    %2437 = vmatprep.subr.mxu0 0.0
    %2438 = vmatpush1.msra.mxu0 0.0
    %2439 = vmatprep.subr.mxu0 0.0
    %2440 = vmatpush1.msra.mxu0 0.0
    %2441 = vmatprep.subr.mxu0 0.0
    %2442 = vmatpush1.msra.mxu0 0.0
    %2443 = vmatprep.subr.mxu0 0.0
    %2444 = vmatpush1.msra.mxu0 0.0
    %2445 = vmatprep.subr.mxu0 0.0
    %2446 = vmatpush1.msra.mxu0 0.0
    %2447 = vmatprep.subr.mxu0 0.0
    %2448 = vmatpush1.msra.mxu0 0.0
    %2449 = vmatprep.mubr.f32.mxu0 0.0
    %2450 = vmatmul.mubr.f32.gmra.mrb[0].mxu0 %v2383
    %v2451 = vpop.f32.mrb[0].mxu0
    %v2452 = vadd.f32 %v2380, %v2451
    %v2453 = vpop.f32.mrb[0].mxu0
    %2454 = vdwg.mxu0
    %vm2455 = vcmask 1041408
    %v2456 = vsel %vm2455, %v2452, -inf
    %2457 = vmax.xlane.f32.xlu0 %v2456
    %v2458 = vpop.xlane.xlu0 %2457
    %v2459 = vsub.f32 %v2452, %v2458
    %v2460 = vmul.f32 %v2459, 1.442695
    %v2461 = vpow.pop %v2460
    %v2462 = vsel %vm2455, %v2461, 0.0
    %2463 = vadd.xlane.f32.xlu0 %v2462
    %v2464 = vpop.xlane.xlu0 %2463
    %v2465 = vrcp.pop %v2464
    %v2466 = vmul.f32 %v2461, %v2465
    %2467 = vst [vmem:[#allocation4] sm:$0x3] %v2466
    // Predicated region
    $region38: #{forward.1} parent=1 // pred_check
      _
    $region39: #{forward.1} parent=1 // pred_check_branch
      %2469 = sbr.rel (0) target = $region41
    $region40: #{forward.1} parent=1 // pred_region
      %s2471 = ssub.s32 32, 32
      %2472 = vsyncadd [#allocation5], %s2471
      %s2474 = sshll.u32 [#allocation4], 4
      %s2475 = int_to_ptr.vmem [resolvable:$true] %s2474
      %2477 = dma.vmem_to_hbm [thread:$0]  %s2475, 32, %s9, [#allocation5]
    $region41: #{forward.1} parent=1 // pred_fallthru
      _
    // Predicated region
    $region42: #{forward.1} parent=1 // pred_check
      _
    $region43: #{forward.1} parent=1 // pred_check_branch
      %2479 = sbr.rel (0) target = $region45
    $region44: #{forward.1} parent=1 // pred_region
      %2480 = dma.done [#allocation5], 32
    $region45: #{forward.1} parent=1 // pred_fallthru
      _
    %2481 = vsyncpa [#allocation5], 1

</llo_original>
